<compile_context>
chip_gen: v5e
topology: v5e:2x2
jax: 0.10.0
libtpu: 0.0.40
codegen_flags: <defaults>
</compile_context>

<pallas_src>
import numpy as np
import jax
import jax.numpy as jnp
from jax.experimental import pallas as pl
from jax.experimental.pallas import tpu as pltpu

# ---------------- config (mirrors BasicGNN(per_node_input, output_ch, W, D)) -------------
B = 2                 # batch (production callers should stack frames/poses here)
PER_NODE_INPUT = 8    # per_node_input
W_HIDDEN = 32         # W
DEPTH = 4             # D
OUTPUT_CH = 8         # output_ch
WEIGHT_DTYPE = jnp.bfloat16   # bf16 MXU operands; f32 accumulation kept in-kernel

# Synthetic skeleton (16 joints), root at joint 0.
JOINT_TREES = np.array([0, 0, 1, 2, 3, 0, 5, 6, 7, 0, 9, 10, 11, 9, 13, 14], dtype=np.int32)
ROOT_ID = 0
N_JOINTS = int(len(JOINT_TREES))
RIGID_IDXS = None


def skeleton_to_graph(joint_trees):
    """numpy port of skeleton_to_graph(): adjacency with self loops."""
    edges = []
    for i, j in enumerate(joint_trees):
        if i == j:
            continue
        edges.append([int(j), int(i)])
    n_nodes = int(np.max(edges)) + 1
    adj = np.eye(n_nodes, dtype=np.float32)
    for e in edges:
        adj[e[0], e[1]] = 1.0
        adj[e[1], e[0]] = 1.0
    return adj, edges


def init_params(key):
    """Deterministic parameter init matching DensePNGCN / DenseWGCN shapes."""
    adj_np, _ = skeleton_to_graph(JOINT_TREES)
    adj = jnp.asarray(adj_np)                       # (N, N), self loops already set

    layer_dims = [(PER_NODE_INPUT, W_HIDDEN)]
    for _ in range(DEPTH - 2):
        layer_dims.append((W_HIDDEN, W_HIDDEN))
    layer_dims.append((W_HIDDEN, OUTPUT_CH))

    idx = jnp.arange(N_JOINTS)
    params = []
    for (cin, cout) in layer_dims:
        key, k_w, k_a, k_b = jax.random.split(key, 4)
        # ParallelLinear weight: one (cin, cout) matrix per node, no bias.
        w = jax.random.normal(k_w, (N_JOINTS, cin, cout), jnp.float32) / np.sqrt(cin)
        # DenseWGCN adj_w init: adj * clamp(0.05 + (U-0.5)*0.1, 0.01, 1.0); diagonal = 1.
        rand = jax.random.uniform(k_a, (N_JOINTS, N_JOINTS), dtype=jnp.float32)
        adj_w = adj * jnp.clip(0.05 + (rand - 0.5) * 0.1, 0.01, 1.0)
        adj_w = adj_w.at[idx, idx].set(1.0)
        adjw_eff = adj_w * adj                      # get_adjw() = adj_w * adj
        # DenseWGCN bias is zero-initialized; randomize here to exercise the path.
        b = jax.random.normal(k_b, (1, 1, cout), jnp.float32) * 0.1
        params.append((w, adjw_eff, b))
    return params


def fuse_params(params, mask):
    """Fold (per-node W, weighted adjacency, root mask, bias) into one matmul per layer.

    h[b,n,o] = sum_{m,i} x[b,m,i] * (adjw[n,m] * W[m,i,o])  + bias[o]
    => flat_h = flat_x @ M + b_flat, with M[(m,i),(n,o)] = adjw[n,m]*W[m,i,o].
    M is formed in f32 and cast ONCE to WEIGHT_DTYPE at the end (bias stays f32).
    """
    fused = []
    for li, (w, adjw, b) in enumerate(params):
        n_nodes, cin, cout = w.shape
        m = jnp.einsum('nm,mio->mino', adjw, w)            # (m, i, n, o) — pure outer product
        m = m.reshape(n_nodes * cin, n_nodes * cout)
        if li == 0 and mask is not None:
            # mask_root: zero the root node's input rows (== x*mask before layer 0)
            row_mask = jnp.broadcast_to(mask.reshape(n_nodes, 1), (n_nodes, cin))
            m = m * row_mask.reshape(n_nodes * cin, 1)
        b_flat = jnp.tile(b.reshape(1, cout), (1, n_nodes))  # (1, N*cout), col n*cout+o -> b[o]
        fused.append((m.astype(WEIGHT_DTYPE), b_flat.astype(jnp.float32)))
    return fused


# ---------------------------------- Pallas kernel ----------------------------------------
def _gnn_kernel(x_ref, *refs):
    h_ref = refs[-1]          # VMEM f32 scratch (tile, N*W_HIDDEN): per-layer activation home
    out_ref = refs[-2]
    param_refs = refs[:-2]
    num_layers = len(param_refs) // 2

    h = x_ref[...]                                           # (TILE_B, N*C0), f32
    for i in range(num_layers):
        m_ref = param_refs[2 * i]
        b_ref = param_refs[2 * i + 1]
        # bf16 MXU operands, f32 accumulation.
        acc = jnp.dot(h.astype(m_ref.dtype), m_ref[...],
                      preferred_element_type=jnp.float32)    # (TILE_B, N*Cout)
        acc = acc + b_ref[...]                               # f32 epilogue (v5e-safe)
        if i + 1 < num_layers:                               # F.relu between layers
            h_ref[...] = jnp.maximum(acc, 0.0)               # bound live range per layer
            h = h_ref[...]
        else:
            out_ref[...] = acc.astype(out_ref.dtype)


def basic_gnn_forward(x, fused_params, *, tile_b=512):
    """x: (B, N, C0) -> (B, N, OUTPUT_CH). Lane-dense 2D kernel I/O, batch-tiled grid."""
    bsz, n_nodes, c0 = x.shape
    assert n_nodes == N_JOINTS and c0 == PER_NODE_INPUT
    in_dim = n_nodes * c0
    out_dim = n_nodes * OUTPUT_CH
    hid_dim = n_nodes * W_HIDDEN

    x2 = x.reshape(bsz, in_dim)
    if bsz <= 16:
        # block == full array; (8,128) rule satisfied by the full-extent exemption.
        tile = bsz
        bp = bsz
    else:
        # >= 2 grid steps so ("parallel",) feeds both v7x TensorCores; tile is a
        # multiple of 8 and capped at tile_b to keep per-step MXU work >> overhead.
        half = -(-bsz // 2)
        tile = min(int(tile_b), ((half + 7) // 8) * 8)
        bp = ((bsz + tile - 1) // tile) * tile
        if bp != bsz:
            # Ragged batch only: padded rows are sliced off below.
            x2 = jnp.pad(x2, ((0, bp - bsz), (0, 0)))
    grid = (bp // tile,)

    flat = [t for mb in fused_params for t in mb]

    def build(single_buffer_weights):
        # Grid-invariant index_maps -> weights/biases stay resident in VMEM;
        # single-buffer them (they never change) when pipeline_mode is supported.
        w_kwargs = {"pipeline_mode": pl.Buffered(1)} if single_buffer_weights else {}
        in_specs = [pl.BlockSpec((tile, in_dim), lambda i: (i, 0))]
        for (m, b) in fused_params:
            in_specs.append(pl.BlockSpec(m.shape, lambda i: (0, 0), **w_kwargs))
            in_specs.append(pl.BlockSpec(b.shape, lambda i: (0, 0), **w_kwargs))
        return pl.pallas_call(
            _gnn_kernel,
            out_shape=jax.ShapeDtypeStruct((bp, out_dim), jnp.float32),
            grid=grid,
            in_specs=in_specs,
            out_specs=pl.BlockSpec((tile, out_dim), lambda i: (i, 0)),
            scratch_shapes=[pltpu.VMEM((tile, hid_dim), jnp.float32)],
            compiler_params=pltpu.CompilerParams(
                dimension_semantics=("parallel",),        # shard batch blocks across TCs
                vmem_limit_bytes=32 * 1024 * 1024,        # headroom on v5e/v6e/v7x
            ),
        )

    try:
        out = build(True)(x2, *flat)
    except Exception:
        # Fallback for jax builds without BlockSpec pipeline_mode support in the
        # pallas_call pipeline; weights are then simply double-buffered.
        out = build(False)(x2, *flat)
    return out[:bsz].reshape(bsz, n_nodes, OUTPUT_CH)


# ------------------------------- pure-JAX references -------------------------------------
def reference_forward(x, mask, params):
    """Module-faithful f32 formulation, mirroring the PyTorch forward."""
    n = x * mask
    for i, (w, a, b) in enumerate(params):
        h = jnp.einsum('bni,nio->bno', n, w)   # ParallelLinear (per-node, no bias)
        h = jnp.einsum('nm,bmo->bno', a, h)    # torch.matmul(adj_w, out)
        h = h + b                              # DenseWGCN bias
        if i + 1 < len(params):
            h = jax.nn.relu(h)
        n = h
    return n


def fused_reference_forward(x, fused_params):
    """Same fused bf16 math as the kernel, in plain XLA (tight numerical check)."""
    bsz = x.shape[0]
    h = x.reshape(bsz, -1)
    for i, (m, b) in enumerate(fused_params):
        h = jnp.dot(h.astype(m.dtype), m, preferred_element_type=jnp.float32) + b
        if i + 1 < len(fused_params):
            h = jnp.maximum(h, 0.0)
    return h.reshape(bsz, N_JOINTS, OUTPUT_CH)


if __name__ == "__main__":
    key = jax.random.PRNGKey(0)
    key, kx = jax.random.split(key)
    x = jax.random.normal(kx, (B, N_JOINTS, PER_NODE_INPUT), jnp.float32)
    mask = jnp.ones((1, N_JOINTS, 1), jnp.float32).at[:, ROOT_ID, :].set(0.0)

    params = init_params(key)
    fused_params = fuse_params(params, mask)

    out = basic_gnn_forward(x, fused_params)
    out = jax.block_until_ready(out)
    assert out.shape == (B, N_JOINTS, OUTPUT_CH)

    # Tight check vs. the identical fused bf16 math run through XLA.
    ref_fused = fused_reference_forward(x, fused_params)
    np.testing.assert_allclose(np.asarray(out), np.asarray(ref_fused),
                               rtol=1e-3, atol=1e-3)

    # Semantics check vs. the module-faithful f32 reference (bf16 weight tolerance).
    ref_f32 = reference_forward(x, mask, params)
    np.testing.assert_allclose(np.asarray(out), np.asarray(ref_f32),
                               rtol=3e-2, atol=3e-2)

    print("KERNEL_OK")
</pallas_src>

<mosaic_0001>
module attributes {stable_mosaic.version = 11 : i64} {
  func.func @_gnn_kernel(%arg0: i32, %arg1: memref<2x128xf32, #tpu.memory_space<vmem>>, %arg2: memref<128x512xbf16, #tpu.memory_space<vmem>>, %arg3: memref<1x512xf32, #tpu.memory_space<vmem>>, %arg4: memref<512x512xbf16, #tpu.memory_space<vmem>>, %arg5: memref<1x512xf32, #tpu.memory_space<vmem>>, %arg6: memref<512x512xbf16, #tpu.memory_space<vmem>>, %arg7: memref<1x512xf32, #tpu.memory_space<vmem>>, %arg8: memref<512x128xbf16, #tpu.memory_space<vmem>>, %arg9: memref<1x128xf32, #tpu.memory_space<vmem>>, %arg10: memref<2x128xf32, #tpu.memory_space<vmem>>, %arg11: memref<2x512xf32, #tpu.memory_space<vmem>>) attributes {dimension_semantics = [#tpu.dimension_semantics<parallel>], iteration_bounds = array<i64: 1>, scalar_prefetch = 0 : i64, scratch_operands = 1 : i64, tpu.core_type = #tpu.core_type<tc>, window_params = [{transform_indices = @transform_0, window_bounds = array<i64: 2, 128>}, {pipeline_mode = #tpu.pipeline_mode<synchronous>, transform_indices = @transform_1, window_bounds = array<i64: 128, 512>}, {pipeline_mode = #tpu.pipeline_mode<synchronous>, transform_indices = @transform_2, window_bounds = array<i64: 1, 512>}, {pipeline_mode = #tpu.pipeline_mode<synchronous>, transform_indices = @transform_3, window_bounds = array<i64: 512, 512>}, {pipeline_mode = #tpu.pipeline_mode<synchronous>, transform_indices = @transform_4, window_bounds = array<i64: 1, 512>}, {pipeline_mode = #tpu.pipeline_mode<synchronous>, transform_indices = @transform_5, window_bounds = array<i64: 512, 512>}, {pipeline_mode = #tpu.pipeline_mode<synchronous>, transform_indices = @transform_6, window_bounds = array<i64: 1, 512>}, {pipeline_mode = #tpu.pipeline_mode<synchronous>, transform_indices = @transform_7, window_bounds = array<i64: 512, 128>}, {pipeline_mode = #tpu.pipeline_mode<synchronous>, transform_indices = @transform_8, window_bounds = array<i64: 1, 128>}, {transform_indices = @transform_9, window_bounds = array<i64: 2, 128>}]} {
    %c0 = arith.constant 0 : index
    %c0_0 = arith.constant 0 : index
    %0 = vector.load %arg1[%c0, %c0_0] : memref<2x128xf32, #tpu.memory_space<vmem>>, vector<2x128xf32>
    %1 = arith.truncf %0 : vector<2x128xf32> to vector<2x128xbf16>
    %c0_1 = arith.constant 0 : index
    %c0_2 = arith.constant 0 : index
    %2 = vector.load %arg2[%c0_1, %c0_2] : memref<128x512xbf16, #tpu.memory_space<vmem>>, vector<128x512xbf16>
    %cst = arith.constant dense<0.000000e+00> : vector<2x512xf32>
    %3 = tpu.matmul %1, %2, %cst {dimension_numbers = #tpu.dot_dimension_numbers<[1], [0], [0], [1], [0, 0, 1, 1], [], []>} : vector<2x128xbf16>, vector<128x512xbf16>, vector<2x512xf32> -> vector<2x512xf32>
    %c0_3 = arith.constant 0 : index
    %c0_4 = arith.constant 0 : index
    %4 = vector.load %arg3[%c0_3, %c0_4] : memref<1x512xf32, #tpu.memory_space<vmem>>, vector<1x512xf32>
    %5 = vector.broadcast %4 : vector<1x512xf32> to vector<2x512xf32>
    %6 = arith.addf %3, %5 : vector<2x512xf32>
    %cst_5 = arith.constant 0.000000e+00 : f32
    %7 = vector.broadcast %cst_5 : f32 to vector<2x512xf32>
    %8 = arith.maximumf %6, %7 : vector<2x512xf32>
    %c0_6 = arith.constant 0 : index
    %c0_7 = arith.constant 0 : index
    %9 = vector.load %arg11[%c0_6, %c0_7] : memref<2x512xf32, #tpu.memory_space<vmem>>, vector<2x512xf32>
    tpu.vector_store %arg11[%c0_6, %c0_7], %8 {strides = array<i32>} : memref<2x512xf32, #tpu.memory_space<vmem>>, vector<2x512xf32>,
    %c0_8 = arith.constant 0 : index
    %c0_9 = arith.constant 0 : index
    %10 = vector.load %arg11[%c0_8, %c0_9] : memref<2x512xf32, #tpu.memory_space<vmem>>, vector<2x512xf32>
    %11 = arith.truncf %10 : vector<2x512xf32> to vector<2x512xbf16>
    %c0_10 = arith.constant 0 : index
    %c0_11 = arith.constant 0 : index
    %12 = vector.load %arg4[%c0_10, %c0_11] : memref<512x512xbf16, #tpu.memory_space<vmem>>, vector<512x512xbf16>
    %cst_12 = arith.constant dense<0.000000e+00> : vector<2x512xf32>
    %13 = tpu.matmul %11, %12, %cst_12 {dimension_numbers = #tpu.dot_dimension_numbers<[1], [0], [0], [1], [0, 0, 1, 1], [], []>} : vector<2x512xbf16>, vector<512x512xbf16>, vector<2x512xf32> -> vector<2x512xf32>
    %c0_13 = arith.constant 0 : index
    %c0_14 = arith.constant 0 : index
    %14 = vector.load %arg5[%c0_13, %c0_14] : memref<1x512xf32, #tpu.memory_space<vmem>>, vector<1x512xf32>
    %15 = vector.broadcast %14 : vector<1x512xf32> to vector<2x512xf32>
    %16 = arith.addf %13, %15 : vector<2x512xf32>
    %cst_15 = arith.constant 0.000000e+00 : f32
    %17 = vector.broadcast %cst_15 : f32 to vector<2x512xf32>
    %18 = arith.maximumf %16, %17 : vector<2x512xf32>
    %c0_16 = arith.constant 0 : index
    %c0_17 = arith.constant 0 : index
    %19 = vector.load %arg11[%c0_16, %c0_17] : memref<2x512xf32, #tpu.memory_space<vmem>>, vector<2x512xf32>
    tpu.vector_store %arg11[%c0_16, %c0_17], %18 {strides = array<i32>} : memref<2x512xf32, #tpu.memory_space<vmem>>, vector<2x512xf32>,
    %c0_18 = arith.constant 0 : index
    %c0_19 = arith.constant 0 : index
    %20 = vector.load %arg11[%c0_18, %c0_19] : memref<2x512xf32, #tpu.memory_space<vmem>>, vector<2x512xf32>
    %21 = arith.truncf %20 : vector<2x512xf32> to vector<2x512xbf16>
    %c0_20 = arith.constant 0 : index
    %c0_21 = arith.constant 0 : index
    %22 = vector.load %arg6[%c0_20, %c0_21] : memref<512x512xbf16, #tpu.memory_space<vmem>>, vector<512x512xbf16>
    %cst_22 = arith.constant dense<0.000000e+00> : vector<2x512xf32>
    %23 = tpu.matmul %21, %22, %cst_22 {dimension_numbers = #tpu.dot_dimension_numbers<[1], [0], [0], [1], [0, 0, 1, 1], [], []>} : vector<2x512xbf16>, vector<512x512xbf16>, vector<2x512xf32> -> vector<2x512xf32>
    %c0_23 = arith.constant 0 : index
    %c0_24 = arith.constant 0 : index
    %24 = vector.load %arg7[%c0_23, %c0_24] : memref<1x512xf32, #tpu.memory_space<vmem>>, vector<1x512xf32>
    %25 = vector.broadcast %24 : vector<1x512xf32> to vector<2x512xf32>
    %26 = arith.addf %23, %25 : vector<2x512xf32>
    %cst_25 = arith.constant 0.000000e+00 : f32
    %27 = vector.broadcast %cst_25 : f32 to vector<2x512xf32>
    %28 = arith.maximumf %26, %27 : vector<2x512xf32>
    %c0_26 = arith.constant 0 : index
    %c0_27 = arith.constant 0 : index
    %29 = vector.load %arg11[%c0_26, %c0_27] : memref<2x512xf32, #tpu.memory_space<vmem>>, vector<2x512xf32>
    tpu.vector_store %arg11[%c0_26, %c0_27], %28 {strides = array<i32>} : memref<2x512xf32, #tpu.memory_space<vmem>>, vector<2x512xf32>,
    %c0_28 = arith.constant 0 : index
    %c0_29 = arith.constant 0 : index
    %30 = vector.load %arg11[%c0_28, %c0_29] : memref<2x512xf32, #tpu.memory_space<vmem>>, vector<2x512xf32>
    %31 = arith.truncf %30 : vector<2x512xf32> to vector<2x512xbf16>
    %c0_30 = arith.constant 0 : index
    %c0_31 = arith.constant 0 : index
    %32 = vector.load %arg8[%c0_30, %c0_31] : memref<512x128xbf16, #tpu.memory_space<vmem>>, vector<512x128xbf16>
    %cst_32 = arith.constant dense<0.000000e+00> : vector<2x128xf32>
    %33 = tpu.matmul %31, %32, %cst_32 {dimension_numbers = #tpu.dot_dimension_numbers<[1], [0], [0], [1], [0, 0, 1, 1], [], []>} : vector<2x512xbf16>, vector<512x128xbf16>, vector<2x128xf32> -> vector<2x128xf32>
    %c0_33 = arith.constant 0 : index
    %c0_34 = arith.constant 0 : index
    %34 = vector.load %arg9[%c0_33, %c0_34] : memref<1x128xf32, #tpu.memory_space<vmem>>, vector<1x128xf32>
    %35 = vector.broadcast %34 : vector<1x128xf32> to vector<2x128xf32>
    %36 = arith.addf %33, %35 : vector<2x128xf32>
    %c0_35 = arith.constant 0 : index
    %c0_36 = arith.constant 0 : index
    %37 = vector.load %arg10[%c0_35, %c0_36] : memref<2x128xf32, #tpu.memory_space<vmem>>, vector<2x128xf32>
    tpu.vector_store %arg10[%c0_35, %c0_36], %36 {strides = array<i32>} : memref<2x128xf32, #tpu.memory_space<vmem>>, vector<2x128xf32>,
    return
  }
  func.func @transform_0(%arg0: i32) -> (i32, i32) {
    %c0_i32 = arith.constant 0 : i32
    %c0_i32_0 = arith.constant 0 : i32
    return %arg0, %c0_i32 : i32, i32
  }
  func.func @transform_1(%arg0: i32) -> (i32, i32) {
    %c0_i32 = arith.constant 0 : i32
    %c0_i32_0 = arith.constant 0 : i32
    %c0_i32_1 = arith.constant 0 : i32
    return %c0_i32, %c0_i32_0 : i32, i32
  }
  func.func @transform_2(%arg0: i32) -> (i32, i32) {
    %c0_i32 = arith.constant 0 : i32
    %c0_i32_0 = arith.constant 0 : i32
    %c0_i32_1 = arith.constant 0 : i32
    return %c0_i32, %c0_i32_0 : i32, i32
  }
  func.func @transform_3(%arg0: i32) -> (i32, i32) {
    %c0_i32 = arith.constant 0 : i32
    %c0_i32_0 = arith.constant 0 : i32
    %c0_i32_1 = arith.constant 0 : i32
    return %c0_i32, %c0_i32_0 : i32, i32
  }
  func.func @transform_4(%arg0: i32) -> (i32, i32) {
    %c0_i32 = arith.constant 0 : i32
    %c0_i32_0 = arith.constant 0 : i32
    %c0_i32_1 = arith.constant 0 : i32
    return %c0_i32, %c0_i32_0 : i32, i32
  }
  func.func @transform_5(%arg0: i32) -> (i32, i32) {
    %c0_i32 = arith.constant 0 : i32
    %c0_i32_0 = arith.constant 0 : i32
    %c0_i32_1 = arith.constant 0 : i32
    return %c0_i32, %c0_i32_0 : i32, i32
  }
  func.func @transform_6(%arg0: i32) -> (i32, i32) {
    %c0_i32 = arith.constant 0 : i32
    %c0_i32_0 = arith.constant 0 : i32
    %c0_i32_1 = arith.constant 0 : i32
    return %c0_i32, %c0_i32_0 : i32, i32
  }
  func.func @transform_7(%arg0: i32) -> (i32, i32) {
    %c0_i32 = arith.constant 0 : i32
    %c0_i32_0 = arith.constant 0 : i32
    %c0_i32_1 = arith.constant 0 : i32
    return %c0_i32, %c0_i32_0 : i32, i32
  }
  func.func @transform_8(%arg0: i32) -> (i32, i32) {
    %c0_i32 = arith.constant 0 : i32
    %c0_i32_0 = arith.constant 0 : i32
    %c0_i32_1 = arith.constant 0 : i32
    return %c0_i32, %c0_i32_0 : i32, i32
  }
  func.func @transform_9(%arg0: i32) -> (i32, i32) {
    %c0_i32 = arith.constant 0 : i32
    %c0_i32_0 = arith.constant 0 : i32
    return %arg0, %c0_i32 : i32, i32
  }
}

module attributes {stable_mosaic.version = 11 : i64} {
  func.func @_gnn_kernel(%arg0: i32, %arg1: memref<2x128xf32, #tpu.memory_space<vmem>>, %arg2: memref<128x512xbf16, #tpu.memory_space<vmem>>, %arg3: memref<1x512xf32, #tpu.memory_space<vmem>>, %arg4: memref<512x512xbf16, #tpu.memory_space<vmem>>, %arg5: memref<1x512xf32, #tpu.memory_space<vmem>>, %arg6: memref<512x512xbf16, #tpu.memory_space<vmem>>, %arg7: memref<1x512xf32, #tpu.memory_space<vmem>>, %arg8: memref<512x128xbf16, #tpu.memory_space<vmem>>, %arg9: memref<1x128xf32, #tpu.memory_space<vmem>>, %arg10: memref<2x128xf32, #tpu.memory_space<vmem>>, %arg11: memref<2x512xf32, #tpu.memory_space<vmem>>) attributes {dimension_semantics = [#tpu.dimension_semantics<parallel>], iteration_bounds = array<i64: 1>, scalar_prefetch = 0 : i64, scratch_operands = 1 : i64, tpu.core_type = #tpu.core_type<tc>, window_params = [{transform_indices = @transform_0, window_bounds = array<i64: 2, 128>}, {pipeline_mode = #tpu.pipeline_mode<synchronous>, transform_indices = @transform_1, window_bounds = array<i64: 128, 512>}, {pipeline_mode = #tpu.pipeline_mode<synchronous>, transform_indices = @transform_2, window_bounds = array<i64: 1, 512>}, {pipeline_mode = #tpu.pipeline_mode<synchronous>, transform_indices = @transform_3, window_bounds = array<i64: 512, 512>}, {pipeline_mode = #tpu.pipeline_mode<synchronous>, transform_indices = @transform_4, window_bounds = array<i64: 1, 512>}, {pipeline_mode = #tpu.pipeline_mode<synchronous>, transform_indices = @transform_5, window_bounds = array<i64: 512, 512>}, {pipeline_mode = #tpu.pipeline_mode<synchronous>, transform_indices = @transform_6, window_bounds = array<i64: 1, 512>}, {pipeline_mode = #tpu.pipeline_mode<synchronous>, transform_indices = @transform_7, window_bounds = array<i64: 512, 128>}, {pipeline_mode = #tpu.pipeline_mode<synchronous>, transform_indices = @transform_8, window_bounds = array<i64: 1, 128>}, {transform_indices = @transform_9, window_bounds = array<i64: 2, 128>}]} {
    %c0 = arith.constant 0 : index
    %c0_0 = arith.constant 0 : index
    %0 = vector.load %arg1[%c0, %c0_0] : memref<2x128xf32, #tpu.memory_space<vmem>>, vector<2x128xf32>
    %1 = arith.truncf %0 : vector<2x128xf32> to vector<2x128xbf16>
    %c0_1 = arith.constant 0 : index
    %c0_2 = arith.constant 0 : index
    %2 = vector.load %arg2[%c0_1, %c0_2] : memref<128x512xbf16, #tpu.memory_space<vmem>>, vector<128x512xbf16>
    %cst = arith.constant dense<0.000000e+00> : vector<2x512xf32>
    %3 = tpu.matmul %1, %2, %cst {dimension_numbers = #tpu.dot_dimension_numbers<[1], [0], [0], [1], [0, 0, 1, 1], [], []>} : vector<2x128xbf16>, vector<128x512xbf16>, vector<2x512xf32> -> vector<2x512xf32>
    %c0_3 = arith.constant 0 : index
    %c0_4 = arith.constant 0 : index
    %4 = vector.load %arg3[%c0_3, %c0_4] : memref<1x512xf32, #tpu.memory_space<vmem>>, vector<1x512xf32>
    %5 = vector.broadcast %4 : vector<1x512xf32> to vector<2x512xf32>
    %6 = arith.addf %3, %5 : vector<2x512xf32>
    %cst_5 = arith.constant 0.000000e+00 : f32
    %7 = vector.broadcast %cst_5 : f32 to vector<2x512xf32>
    %8 = arith.maximumf %6, %7 : vector<2x512xf32>
    %c0_6 = arith.constant 0 : index
    %c0_7 = arith.constant 0 : index
    %9 = vector.load %arg11[%c0_6, %c0_7] : memref<2x512xf32, #tpu.memory_space<vmem>>, vector<2x512xf32>
    tpu.vector_store %arg11[%c0_6, %c0_7], %8 {strides = array<i32>} : memref<2x512xf32, #tpu.memory_space<vmem>>, vector<2x512xf32>,
    %c0_8 = arith.constant 0 : index
    %c0_9 = arith.constant 0 : index
    %10 = vector.load %arg11[%c0_8, %c0_9] : memref<2x512xf32, #tpu.memory_space<vmem>>, vector<2x512xf32>
    %11 = arith.truncf %10 : vector<2x512xf32> to vector<2x512xbf16>
    %c0_10 = arith.constant 0 : index
    %c0_11 = arith.constant 0 : index
    %12 = vector.load %arg4[%c0_10, %c0_11] : memref<512x512xbf16, #tpu.memory_space<vmem>>, vector<512x512xbf16>
    %cst_12 = arith.constant dense<0.000000e+00> : vector<2x512xf32>
    %13 = tpu.matmul %11, %12, %cst_12 {dimension_numbers = #tpu.dot_dimension_numbers<[1], [0], [0], [1], [0, 0, 1, 1], [], []>} : vector<2x512xbf16>, vector<512x512xbf16>, vector<2x512xf32> -> vector<2x512xf32>
    %c0_13 = arith.constant 0 : index
    %c0_14 = arith.constant 0 : index
    %14 = vector.load %arg5[%c0_13, %c0_14] : memref<1x512xf32, #tpu.memory_space<vmem>>, vector<1x512xf32>
    %15 = vector.broadcast %14 : vector<1x512xf32> to vector<2x512xf32>
    %16 = arith.addf %13, %15 : vector<2x512xf32>
    %cst_15 = arith.constant 0.000000e+00 : f32
    %17 = vector.broadcast %cst_15 : f32 to vector<2x512xf32>
    %18 = arith.maximumf %16, %17 : vector<2x512xf32>
    %c0_16 = arith.constant 0 : index
    %c0_17 = arith.constant 0 : index
    %19 = vector.load %arg11[%c0_16, %c0_17] : memref<2x512xf32, #tpu.memory_space<vmem>>, vector<2x512xf32>
    tpu.vector_store %arg11[%c0_16, %c0_17], %18 {strides = array<i32>} : memref<2x512xf32, #tpu.memory_space<vmem>>, vector<2x512xf32>,
    %c0_18 = arith.constant 0 : index
    %c0_19 = arith.constant 0 : index
    %20 = vector.load %arg11[%c0_18, %c0_19] : memref<2x512xf32, #tpu.memory_space<vmem>>, vector<2x512xf32>
    %21 = arith.truncf %20 : vector<2x512xf32> to vector<2x512xbf16>
    %c0_20 = arith.constant 0 : index
    %c0_21 = arith.constant 0 : index
    %22 = vector.load %arg6[%c0_20, %c0_21] : memref<512x512xbf16, #tpu.memory_space<vmem>>, vector<512x512xbf16>
    %cst_22 = arith.constant dense<0.000000e+00> : vector<2x512xf32>
    %23 = tpu.matmul %21, %22, %cst_22 {dimension_numbers = #tpu.dot_dimension_numbers<[1], [0], [0], [1], [0, 0, 1, 1], [], []>} : vector<2x512xbf16>, vector<512x512xbf16>, vector<2x512xf32> -> vector<2x512xf32>
    %c0_23 = arith.constant 0 : index
    %c0_24 = arith.constant 0 : index
    %24 = vector.load %arg7[%c0_23, %c0_24] : memref<1x512xf32, #tpu.memory_space<vmem>>, vector<1x512xf32>
    %25 = vector.broadcast %24 : vector<1x512xf32> to vector<2x512xf32>
    %26 = arith.addf %23, %25 : vector<2x512xf32>
    %cst_25 = arith.constant 0.000000e+00 : f32
    %27 = vector.broadcast %cst_25 : f32 to vector<2x512xf32>
    %28 = arith.maximumf %26, %27 : vector<2x512xf32>
    %c0_26 = arith.constant 0 : index
    %c0_27 = arith.constant 0 : index
    %29 = vector.load %arg11[%c0_26, %c0_27] : memref<2x512xf32, #tpu.memory_space<vmem>>, vector<2x512xf32>
    tpu.vector_store %arg11[%c0_26, %c0_27], %28 {strides = array<i32>} : memref<2x512xf32, #tpu.memory_space<vmem>>, vector<2x512xf32>,
    %c0_28 = arith.constant 0 : index
    %c0_29 = arith.constant 0 : index
    %30 = vector.load %arg11[%c0_28, %c0_29] : memref<2x512xf32, #tpu.memory_space<vmem>>, vector<2x512xf32>
    %31 = arith.truncf %30 : vector<2x512xf32> to vector<2x512xbf16>
    %c0_30 = arith.constant 0 : index
    %c0_31 = arith.constant 0 : index
    %32 = vector.load %arg8[%c0_30, %c0_31] : memref<512x128xbf16, #tpu.memory_space<vmem>>, vector<512x128xbf16>
    %cst_32 = arith.constant dense<0.000000e+00> : vector<2x128xf32>
    %33 = tpu.matmul %31, %32, %cst_32 {dimension_numbers = #tpu.dot_dimension_numbers<[1], [0], [0], [1], [0, 0, 1, 1], [], []>} : vector<2x512xbf16>, vector<512x128xbf16>, vector<2x128xf32> -> vector<2x128xf32>
    %c0_33 = arith.constant 0 : index
    %c0_34 = arith.constant 0 : index
    %34 = vector.load %arg9[%c0_33, %c0_34] : memref<1x128xf32, #tpu.memory_space<vmem>>, vector<1x128xf32>
    %35 = vector.broadcast %34 : vector<1x128xf32> to vector<2x128xf32>
    %36 = arith.addf %33, %35 : vector<2x128xf32>
    %c0_35 = arith.constant 0 : index
    %c0_36 = arith.constant 0 : index
    %37 = vector.load %arg10[%c0_35, %c0_36] : memref<2x128xf32, #tpu.memory_space<vmem>>, vector<2x128xf32>
    tpu.vector_store %arg10[%c0_35, %c0_36], %36 {strides = array<i32>} : memref<2x128xf32, #tpu.memory_space<vmem>>, vector<2x128xf32>,
    return
  }
  func.func @transform_0(%arg0: i32) -> (i32, i32) {
    %c0_i32 = arith.constant 0 : i32
    %c0_i32_0 = arith.constant 0 : i32
    return %arg0, %c0_i32 : i32, i32
  }
  func.func @transform_1(%arg0: i32) -> (i32, i32) {
    %c0_i32 = arith.constant 0 : i32
    %c0_i32_0 = arith.constant 0 : i32
    %c0_i32_1 = arith.constant 0 : i32
    return %c0_i32, %c0_i32_0 : i32, i32
  }
  func.func @transform_2(%arg0: i32) -> (i32, i32) {
    %c0_i32 = arith.constant 0 : i32
    %c0_i32_0 = arith.constant 0 : i32
    %c0_i32_1 = arith.constant 0 : i32
    return %c0_i32, %c0_i32_0 : i32, i32
  }
  func.func @transform_3(%arg0: i32) -> (i32, i32) {
    %c0_i32 = arith.constant 0 : i32
    %c0_i32_0 = arith.constant 0 : i32
    %c0_i32_1 = arith.constant 0 : i32
    return %c0_i32, %c0_i32_0 : i32, i32
  }
  func.func @transform_4(%arg0: i32) -> (i32, i32) {
    %c0_i32 = arith.constant 0 : i32
    %c0_i32_0 = arith.constant 0 : i32
    %c0_i32_1 = arith.constant 0 : i32
    return %c0_i32, %c0_i32_0 : i32, i32
  }
  func.func @transform_5(%arg0: i32) -> (i32, i32) {
    %c0_i32 = arith.constant 0 : i32
    %c0_i32_0 = arith.constant 0 : i32
    %c0_i32_1 = arith.constant 0 : i32
    return %c0_i32, %c0_i32_0 : i32, i32
  }
  func.func @transform_6(%arg0: i32) -> (i32, i32) {
    %c0_i32 = arith.constant 0 : i32
    %c0_i32_0 = arith.constant 0 : i32
    %c0_i32_1 = arith.constant 0 : i32
    return %c0_i32, %c0_i32_0 : i32, i32
  }
  func.func @transform_7(%arg0: i32) -> (i32, i32) {
    %c0_i32 = arith.constant 0 : i32
    %c0_i32_0 = arith.constant 0 : i32
    %c0_i32_1 = arith.constant 0 : i32
    return %c0_i32, %c0_i32_0 : i32, i32
  }
  func.func @transform_8(%arg0: i32) -> (i32, i32) {
    %c0_i32 = arith.constant 0 : i32
    %c0_i32_0 = arith.constant 0 : i32
    %c0_i32_1 = arith.constant 0 : i32
    return %c0_i32, %c0_i32_0 : i32, i32
  }
  func.func @transform_9(%arg0: i32) -> (i32, i32) {
    %c0_i32 = arith.constant 0 : i32
    %c0_i32_0 = arith.constant 0 : i32
    return %arg0, %c0_i32 : i32, i32
  }
}

</mosaic_0001>

<llo_original>
// kernel: tpu_custom_call.1
$region0: #{tpu_custom_call.1}
  #allocation0 [shape = 'u32[]', space=smem, size = 0x4, offset = 0x4, fixed_abs, tag = 'smem constant byte address 0x4 - core index']
  #allocation1 [shape = 'u32[72,128]{1,0:T(1,128)}', space=vmem, size = 0x9000, scoped, tag = 'internal scratch']
  #allocation2 [shape = 'f32[2,512]{1,0:T(2,128)}', space=vmem, size = 0x1000, scoped, tag = 'scratch operand']
  %s0 = inlined_call_operand.hbm [shape: f32[2,128], index: 0, kind: input, shape index: {}]
  %s1 = inlined_call_operand.hbm [shape: bf16[128,512], index: 1, kind: input, shape index: {}]
  %s2 = inlined_call_operand.hbm [shape: f32[1,512], index: 2, kind: input, shape index: {}]
  %s3 = inlined_call_operand.hbm [shape: bf16[512,512], index: 3, kind: input, shape index: {}]
  %s4 = inlined_call_operand.hbm [shape: f32[1,512], index: 4, kind: input, shape index: {}]
  %s5 = inlined_call_operand.hbm [shape: bf16[512,512], index: 5, kind: input, shape index: {}]
  %s6 = inlined_call_operand.vmem [shape: f32[1,512], index: 6, kind: input, shape index: {}]
  %s7 = inlined_call_operand.hbm [shape: bf16[512,128], index: 7, kind: input, shape index: {}]
  %s8 = inlined_call_operand.vmem [shape: f32[1,128], index: 8, kind: input, shape index: {}]
  %s9 = inlined_call_operand.hbm [shape: f32[2,128], index: 9, kind: output, shape index: {}]
  %s10 = sld [smem:[#allocation0]]
  $region74: #{tpu_custom_call.1} parent=0
    _
  %s12 = ssub.s32 1, %s10
  %s13 = scalar_select 0, %s12, %s10
  $region1: #{tpu_custom_call.1} parent=0
    #allocation3 [shape = 'u8[1024]{0}', space=vmem, size = 0x400, scoped, tag = 'input window, operand 0, single buffered']
    #allocation4 [shape = 's32[1]{0}', space=sflag, size = 0x4, scoped, tag = 'scoped memory for tpu_custom_call.1']
    #allocation5 [shape = 's32[1]{0}', space=sflag, size = 0x4, scoped, tag = 'scoped memory for tpu_custom_call.1']
    #allocation6 [shape = 'u8[131072]{0}', space=vmem, size = 0x20000, scoped, tag = 'input window, operand 1, single buffered']
    #allocation7 [shape = 's32[1]{0}', space=sflag, size = 0x4, scoped, tag = 'scoped memory for tpu_custom_call.1']
    #allocation8 [shape = 'u8[2048]{0}', space=vmem, size = 0x800, scoped, tag = 'input window, operand 2, single buffered']
    #allocation9 [shape = 'u8[524288]{0}', space=vmem, size = 0x80000, scoped, tag = 'input window, operand 3, single buffered']
    #allocation10 [shape = 's32[1]{0}', space=sflag, size = 0x4, scoped, tag = 'scoped memory for tpu_custom_call.1']
    #allocation11 [shape = 'u8[2048]{0}', space=vmem, size = 0x800, scoped, tag = 'input window, operand 4, single buffered']
    #allocation12 [shape = 'u8[524288]{0}', space=vmem, size = 0x80000, scoped, tag = 'input window, operand 5, single buffered']
    #allocation13 [shape = 's32[1]{0}', space=sflag, size = 0x4, scoped, tag = 'scoped memory for tpu_custom_call.1']
    #allocation14 [shape = 'u8[131072]{0}', space=vmem, size = 0x20000, scoped, tag = 'input window, operand 7, single buffered']
    #allocation15 [shape = 'u8[1024]{0}', space=vmem, size = 0x400, scoped, tag = 'output window, operand 0, single buffered']
    %14 = vsyncpa [#allocation4], 0
    %15 = vsyncpa [#allocation7], 0
    %16 = vsyncpa [#allocation10], 0
    %17 = vsyncpa [#allocation13], 0
    %18 = vsyncpa [#allocation5], 0
    // Predicated region
    $region2: #{tpu_custom_call.1} parent=1 // pred_check
      _
    $region3: #{tpu_custom_call.1} parent=1 // pred_check_branch
      %20 = sbr.rel (0) target = $region5
    $region4: #{tpu_custom_call.1} parent=1 // pred_region
      %22 = vsyncadd [#allocation4], 0
      %s24 = sshll.u32 %s0, 4
      %s25 = int_to_ptr.hbm [resolvable:$true] %s24
      %s26 = sshll.u32 [#allocation3], 4
      %s27 = int_to_ptr.vmem [resolvable:$true] %s26
      %29 = dma.hbm_to_vmem [thread:$0]  %s25, 32, %s27, [#allocation4]
    $region5: #{tpu_custom_call.1} parent=1 // pred_fallthru
      _
    // Predicated region
    $region6: #{tpu_custom_call.1} parent=1 // pred_check
      _
    $region7: #{tpu_custom_call.1} parent=1 // pred_check_branch
      %31 = sbr.rel (0) target = $region9
    $region8: #{tpu_custom_call.1} parent=1 // pred_region
      %33 = vsyncadd [#allocation7], 0
      %s34 = sshll.u32 %s1, 4
      %s35 = int_to_ptr.hbm [resolvable:$true] %s34
      %s36 = sshll.u32 [#allocation6], 4
      %s37 = int_to_ptr.vmem [resolvable:$true] %s36
      %42 = dma.hbm_to_vmem [thread:$0]  %s35, 4096, %s37, [#allocation7], 256, 256, 16
    $region9: #{tpu_custom_call.1} parent=1 // pred_fallthru
      _
    // Predicated region
    $region10: #{tpu_custom_call.1} parent=1 // pred_check
      _
    $region11: #{tpu_custom_call.1} parent=1 // pred_check_branch
      %44 = sbr.rel (0) target = $region13
    $region12: #{tpu_custom_call.1} parent=1 // pred_region
      %46 = vsyncadd [#allocation7], 0
      %s48 = sshll.u32 %s2, 4
      %s49 = int_to_ptr.hbm [resolvable:$true] %s48
      %s50 = sshll.u32 [#allocation8], 4
      %s51 = int_to_ptr.vmem [resolvable:$true] %s50
      %53 = dma.hbm_to_vmem [thread:$0]  %s49, 64, %s51, [#allocation7]
    $region13: #{tpu_custom_call.1} parent=1 // pred_fallthru
      _
    // Predicated region
    $region14: #{tpu_custom_call.1} parent=1 // pred_check
      _
    $region15: #{tpu_custom_call.1} parent=1 // pred_check_branch
      %55 = sbr.rel (0) target = $region17
    $region16: #{tpu_custom_call.1} parent=1 // pred_region
      %57 = vsyncadd [#allocation10], 0
      %s58 = sshll.u32 %s3, 4
      %s59 = int_to_ptr.hbm [resolvable:$true] %s58
      %s60 = sshll.u32 [#allocation9], 4
      %s61 = int_to_ptr.vmem [resolvable:$true] %s60
      %66 = dma.hbm_to_vmem [thread:$0]  %s59, 16384, %s61, [#allocation10], 256, 256, 16
    $region17: #{tpu_custom_call.1} parent=1 // pred_fallthru
      _
    // Predicated region
    $region18: #{tpu_custom_call.1} parent=1 // pred_check
      _
    $region19: #{tpu_custom_call.1} parent=1 // pred_check_branch
      %68 = sbr.rel (0) target = $region21
    $region20: #{tpu_custom_call.1} parent=1 // pred_region
      %70 = vsyncadd [#allocation10], 0
      %s72 = sshll.u32 %s4, 4
      %s73 = int_to_ptr.hbm [resolvable:$true] %s72
      %s74 = sshll.u32 [#allocation11], 4
      %s75 = int_to_ptr.vmem [resolvable:$true] %s74
      %77 = dma.hbm_to_vmem [thread:$0]  %s73, 64, %s75, [#allocation10]
    $region21: #{tpu_custom_call.1} parent=1 // pred_fallthru
      _
    // Predicated region
    $region22: #{tpu_custom_call.1} parent=1 // pred_check
      _
    $region23: #{tpu_custom_call.1} parent=1 // pred_check_branch
      %79 = sbr.rel (0) target = $region25
    $region24: #{tpu_custom_call.1} parent=1 // pred_region
      %81 = vsyncadd [#allocation13], 0
      %s82 = sshll.u32 %s5, 4
      %s83 = int_to_ptr.hbm [resolvable:$true] %s82
      %s84 = sshll.u32 [#allocation12], 4
      %s85 = int_to_ptr.vmem [resolvable:$true] %s84
      %90 = dma.hbm_to_vmem [thread:$0]  %s83, 16384, %s85, [#allocation13], 256, 256, 16
    $region25: #{tpu_custom_call.1} parent=1 // pred_fallthru
      _
    // Predicated region
    $region26: #{tpu_custom_call.1} parent=1 // pred_check
      _
    $region27: #{tpu_custom_call.1} parent=1 // pred_check_branch
      %92 = sbr.rel (0) target = $region29
    $region28: #{tpu_custom_call.1} parent=1 // pred_region
      _
    $region29: #{tpu_custom_call.1} parent=1 // pred_fallthru
      _
    // Predicated region
    $region30: #{tpu_custom_call.1} parent=1 // pred_check
      _
    $region31: #{tpu_custom_call.1} parent=1 // pred_check_branch
      %94 = sbr.rel (0) target = $region33
    $region32: #{tpu_custom_call.1} parent=1 // pred_region
      %96 = vsyncadd [#allocation13], 0
      %s97 = sshll.u32 %s7, 4
      %s98 = int_to_ptr.hbm [resolvable:$true] %s97
      %s99 = sshll.u32 [#allocation14], 4
      %s100 = int_to_ptr.vmem [resolvable:$true] %s99
      %105 = dma.hbm_to_vmem [thread:$0]  %s98, 4096, %s100, [#allocation13], 64, 64, 4
    $region33: #{tpu_custom_call.1} parent=1 // pred_fallthru
      _
    // Predicated region
    $region34: #{tpu_custom_call.1} parent=1 // pred_check
      _
    $region35: #{tpu_custom_call.1} parent=1 // pred_check_branch
      %107 = sbr.rel (0) target = $region37
    $region36: #{tpu_custom_call.1} parent=1 // pred_region
      _
    $region37: #{tpu_custom_call.1} parent=1 // pred_fallthru
      _
    // Predicated region
    $region38: #{tpu_custom_call.1} parent=1 // pred_check
      _
    $region39: #{tpu_custom_call.1} parent=1 // pred_check_branch
      %109 = sbr.rel (0) target = $region41
    $region40: #{tpu_custom_call.1} parent=1 // pred_region
      %111 = dma.done [#allocation4], 32
    $region41: #{tpu_custom_call.1} parent=1 // pred_fallthru
      _
    // Predicated region
    $region42: #{tpu_custom_call.1} parent=1 // pred_check
      _
    $region43: #{tpu_custom_call.1} parent=1 // pred_check_branch
      %113 = sbr.rel (0) target = $region45
    $region44: #{tpu_custom_call.1} parent=1 // pred_region
      %115 = dma.done [#allocation7], 4096
    $region45: #{tpu_custom_call.1} parent=1 // pred_fallthru
      _
    // Predicated region
    $region46: #{tpu_custom_call.1} parent=1 // pred_check
      _
    $region47: #{tpu_custom_call.1} parent=1 // pred_check_branch
      %117 = sbr.rel (0) target = $region49
    $region48: #{tpu_custom_call.1} parent=1 // pred_region
      %119 = dma.done [#allocation7], 64
    $region49: #{tpu_custom_call.1} parent=1 // pred_fallthru
      _
    // Predicated region
    $region50: #{tpu_custom_call.1} parent=1 // pred_check
      _
    $region51: #{tpu_custom_call.1} parent=1 // pred_check_branch
      %121 = sbr.rel (0) target = $region53
    $region52: #{tpu_custom_call.1} parent=1 // pred_region
      %123 = dma.done [#allocation10], 16384
    $region53: #{tpu_custom_call.1} parent=1 // pred_fallthru
      _
    // Predicated region
    $region54: #{tpu_custom_call.1} parent=1 // pred_check
      _
    $region55: #{tpu_custom_call.1} parent=1 // pred_check_branch
      %125 = sbr.rel (0) target = $region57
    $region56: #{tpu_custom_call.1} parent=1 // pred_region
      %127 = dma.done [#allocation10], 64
    $region57: #{tpu_custom_call.1} parent=1 // pred_fallthru
      _
    // Predicated region
    $region58: #{tpu_custom_call.1} parent=1 // pred_check
      _
    $region59: #{tpu_custom_call.1} parent=1 // pred_check_branch
      %129 = sbr.rel (0) target = $region61
    $region60: #{tpu_custom_call.1} parent=1 // pred_region
      %131 = dma.done [#allocation13], 16384
    $region61: #{tpu_custom_call.1} parent=1 // pred_fallthru
      _
    // Predicated region
    $region62: #{tpu_custom_call.1} parent=1 // pred_check
      _
    $region63: #{tpu_custom_call.1} parent=1 // pred_check_branch
      %133 = sbr.rel (0) target = $region65
    $region64: #{tpu_custom_call.1} parent=1 // pred_region
      %135 = dma.done [#allocation13], 4096
    $region65: #{tpu_custom_call.1} parent=1 // pred_fallthru
      _
    %v136 = vld [vmem:[#allocation3] sm:$0x3]
    %v137 = vpack.c.bf16 %v136, %v136
    %v138 = vld [vmem:[#allocation6] sm:$0xff]
    %v139 = vld [vmem:[#allocation6 + $0x8] sm:$0xff]
    %v140 = vld [vmem:[#allocation6 + $0x10] sm:$0xff]
    %v141 = vld [vmem:[#allocation6 + $0x18] sm:$0xff]
    %v142 = vld [vmem:[#allocation6 + $0x20] sm:$0xff]
    %v143 = vld [vmem:[#allocation6 + $0x28] sm:$0xff]
    %v144 = vld [vmem:[#allocation6 + $0x30] sm:$0xff]
    %v145 = vld [vmem:[#allocation6 + $0x38] sm:$0xff]
    %v146 = vld [vmem:[#allocation6 + $0x40] sm:$0xff]
    %v147 = vld [vmem:[#allocation6 + $0x48] sm:$0xff]
    %v148 = vld [vmem:[#allocation6 + $0x50] sm:$0xff]
    %v149 = vld [vmem:[#allocation6 + $0x58] sm:$0xff]
    %v150 = vld [vmem:[#allocation6 + $0x60] sm:$0xff]
    %v151 = vld [vmem:[#allocation6 + $0x68] sm:$0xff]
    %v152 = vld [vmem:[#allocation6 + $0x70] sm:$0xff]
    %v153 = vld [vmem:[#allocation6 + $0x78] sm:$0xff]
    %v154 = vld [vmem:[#allocation6 + $0x80] sm:$0xff]
    %v155 = vld [vmem:[#allocation6 + $0x88] sm:$0xff]
    %v156 = vld [vmem:[#allocation6 + $0x90] sm:$0xff]
    %v157 = vld [vmem:[#allocation6 + $0x98] sm:$0xff]
    %v158 = vld [vmem:[#allocation6 + $0xa0] sm:$0xff]
    %v159 = vld [vmem:[#allocation6 + $0xa8] sm:$0xff]
    %v160 = vld [vmem:[#allocation6 + $0xb0] sm:$0xff]
    %v161 = vld [vmem:[#allocation6 + $0xb8] sm:$0xff]
    %v162 = vld [vmem:[#allocation6 + $0xc0] sm:$0xff]
    %v163 = vld [vmem:[#allocation6 + $0xc8] sm:$0xff]
    %v164 = vld [vmem:[#allocation6 + $0xd0] sm:$0xff]
    %v165 = vld [vmem:[#allocation6 + $0xd8] sm:$0xff]
    %v166 = vld [vmem:[#allocation6 + $0xe0] sm:$0xff]
    %v167 = vld [vmem:[#allocation6 + $0xe8] sm:$0xff]
    %v168 = vld [vmem:[#allocation6 + $0xf0] sm:$0xff]
    %v169 = vld [vmem:[#allocation6 + $0xf8] sm:$0xff]
    %v170 = vld [vmem:[#allocation8] sm:$0xf]
    %v172 = vperm.slane %v170, 0
    %v173 = vperm.slane %v170, 1
    %v174 = vperm.slane %v170, 2
    %v175 = vperm.slane %v170, 3
    %v212 = vunpack.c.l.b16 %v138
    %v213 = vunpack.c.h.b16 %v138
    %v214 = vunpack.c.l.b16 %v139
    %v215 = vunpack.c.h.b16 %v139
    %v216 = vunpack.c.l.b16 %v140
    %v217 = vunpack.c.h.b16 %v140
    %v218 = vunpack.c.l.b16 %v141
    %v219 = vunpack.c.h.b16 %v141
    %v220 = vunpack.c.l.b16 %v142
    %v221 = vunpack.c.h.b16 %v142
    %v222 = vunpack.c.l.b16 %v143
    %v223 = vunpack.c.h.b16 %v143
    %v224 = vunpack.c.l.b16 %v144
    %v225 = vunpack.c.h.b16 %v144
    %v226 = vunpack.c.l.b16 %v145
    %v227 = vunpack.c.h.b16 %v145
    %v228 = vunpack.c.l.b16 %v146
    %v229 = vunpack.c.h.b16 %v146
    %v230 = vunpack.c.l.b16 %v147
    %v231 = vunpack.c.h.b16 %v147
    %v232 = vunpack.c.l.b16 %v148
    %v233 = vunpack.c.h.b16 %v148
    %v234 = vunpack.c.l.b16 %v149
    %v235 = vunpack.c.h.b16 %v149
    %v236 = vunpack.c.l.b16 %v150
    %v237 = vunpack.c.h.b16 %v150
    %v238 = vunpack.c.l.b16 %v151
    %v239 = vunpack.c.h.b16 %v151
    %v240 = vunpack.c.l.b16 %v152
    %v241 = vunpack.c.h.b16 %v152
    %v242 = vunpack.c.l.b16 %v153
    %v243 = vunpack.c.h.b16 %v153
    %v244 = vunpack.c.l.b16 %v154
    %v245 = vunpack.c.h.b16 %v154
    %v246 = vunpack.c.l.b16 %v155
    %v247 = vunpack.c.h.b16 %v155
    %v248 = vunpack.c.l.b16 %v156
    %v249 = vunpack.c.h.b16 %v156
    %v250 = vunpack.c.l.b16 %v157
    %v251 = vunpack.c.h.b16 %v157
    %v252 = vunpack.c.l.b16 %v158
    %v253 = vunpack.c.h.b16 %v158
    %v254 = vunpack.c.l.b16 %v159
    %v255 = vunpack.c.h.b16 %v159
    %v256 = vunpack.c.l.b16 %v160
    %v257 = vunpack.c.h.b16 %v160
    %v258 = vunpack.c.l.b16 %v161
    %v259 = vunpack.c.h.b16 %v161
    %v260 = vunpack.c.l.b16 %v162
    %v261 = vunpack.c.h.b16 %v162
    %v262 = vunpack.c.l.b16 %v163
    %v263 = vunpack.c.h.b16 %v163
    %v264 = vunpack.c.l.b16 %v164
    %v265 = vunpack.c.h.b16 %v164
    %v266 = vunpack.c.l.b16 %v165
    %v267 = vunpack.c.h.b16 %v165
    %v268 = vunpack.c.l.b16 %v166
    %v269 = vunpack.c.h.b16 %v166
    %v270 = vunpack.c.l.b16 %v167
    %v271 = vunpack.c.h.b16 %v167
    %v272 = vunpack.c.l.b16 %v168
    %v273 = vunpack.c.h.b16 %v168
    %v274 = vunpack.c.l.b16 %v169
    %v275 = vunpack.c.h.b16 %v169
    %v276 = vpack.c.b16 %v216, %v212
    %v277 = vpack.c.b16 %v217, %v213
    %v278 = vpack.c.b16 %v218, %v214
    %v279 = vpack.c.b16 %v219, %v215
    %v280 = vpack.c.b16 %v224, %v220
    %v281 = vpack.c.b16 %v225, %v221
    %v282 = vpack.c.b16 %v226, %v222
    %v283 = vpack.c.b16 %v227, %v223
    %v284 = vpack.c.b16 %v232, %v228
    %v285 = vpack.c.b16 %v233, %v229
    %v286 = vpack.c.b16 %v234, %v230
    %v287 = vpack.c.b16 %v235, %v231
    %v288 = vpack.c.b16 %v240, %v236
    %v289 = vpack.c.b16 %v241, %v237
    %v290 = vpack.c.b16 %v242, %v238
    %v291 = vpack.c.b16 %v243, %v239
    %v292 = vpack.c.b16 %v248, %v244
    %v293 = vpack.c.b16 %v249, %v245
    %v294 = vpack.c.b16 %v250, %v246
    %v295 = vpack.c.b16 %v251, %v247
    %v296 = vpack.c.b16 %v256, %v252
    %v297 = vpack.c.b16 %v257, %v253
    %v298 = vpack.c.b16 %v258, %v254
    %v299 = vpack.c.b16 %v259, %v255
    %v300 = vpack.c.b16 %v264, %v260
    %v301 = vpack.c.b16 %v265, %v261
    %v302 = vpack.c.b16 %v266, %v262
    %v303 = vpack.c.b16 %v267, %v263
    %v304 = vpack.c.b16 %v272, %v268
    %v305 = vpack.c.b16 %v273, %v269
    %v306 = vpack.c.b16 %v274, %v270
    %v307 = vpack.c.b16 %v275, %v271
    %340 = vmatpush.bf16.msra.mxu0 %v304
    %341 = vmatpush.bf16.msra.mxu0 %v300
    %342 = vmatpush.bf16.msra.mxu0 %v296
    %343 = vmatpush.bf16.msra.mxu0 %v292
    %344 = vmatpush.bf16.msra.mxu0 %v288
    %345 = vmatpush.bf16.msra.mxu0 %v284
    %346 = vmatpush.bf16.msra.mxu0 %v280
    %347 = vmatpush.bf16.msra.mxu0 %v276
    %348 = vmatmul.bf16.gmra.mxu0 %v137
    %v349 = vpop.f32.mrf.mxu0
    %v350 = vadd.f32 %v172, %v349
    %v351 = vpop.f32.mrf.mxu0
    %352 = vdwg.mxu0
    %353 = vmatpush.bf16.msra.mxu0 %v305
    %354 = vmatpush.bf16.msra.mxu0 %v301
    %355 = vmatpush.bf16.msra.mxu0 %v297
    %356 = vmatpush.bf16.msra.mxu0 %v293
    %357 = vmatpush.bf16.msra.mxu0 %v289
    %358 = vmatpush.bf16.msra.mxu0 %v285
    %359 = vmatpush.bf16.msra.mxu0 %v281
    %360 = vmatpush.bf16.msra.mxu0 %v277
    %361 = vmatmul.bf16.gmra.mxu0 %v137
    %v362 = vpop.f32.mrf.mxu0
    %v363 = vadd.f32 %v173, %v362
    %v364 = vpop.f32.mrf.mxu0
    %365 = vdwg.mxu0
    %366 = vmatpush.bf16.msra.mxu0 %v306
    %367 = vmatpush.bf16.msra.mxu0 %v302
    %368 = vmatpush.bf16.msra.mxu0 %v298
    %369 = vmatpush.bf16.msra.mxu0 %v294
    %370 = vmatpush.bf16.msra.mxu0 %v290
    %371 = vmatpush.bf16.msra.mxu0 %v286
    %372 = vmatpush.bf16.msra.mxu0 %v282
    %373 = vmatpush.bf16.msra.mxu0 %v278
    %374 = vmatmul.bf16.gmra.mxu0 %v137
    %v375 = vpop.f32.mrf.mxu0
    %v376 = vadd.f32 %v174, %v375
    %v377 = vpop.f32.mrf.mxu0
    %378 = vdwg.mxu0
    %379 = vmatpush.bf16.msra.mxu0 %v307
    %380 = vmatpush.bf16.msra.mxu0 %v303
    %381 = vmatpush.bf16.msra.mxu0 %v299
    %382 = vmatpush.bf16.msra.mxu0 %v295
    %383 = vmatpush.bf16.msra.mxu0 %v291
    %384 = vmatpush.bf16.msra.mxu0 %v287
    %385 = vmatpush.bf16.msra.mxu0 %v283
    %386 = vmatpush.bf16.msra.mxu0 %v279
    %387 = vmatmul.bf16.gmra.mxu0 %v137
    %v388 = vpop.f32.mrf.mxu0
    %v389 = vadd.f32 %v175, %v388
    %v390 = vpop.f32.mrf.mxu0
    %391 = vdwg.mxu0
    %v392 = vmax.f32 %v350, 0.0
    %v393 = vmax.f32 %v363, 0.0
    %v394 = vmax.f32 %v376, 0.0
    %v395 = vmax.f32 %v389, 0.0
    %v400 = vrot.slane %v393, 6
    %v401 = vrot.slane %v394, 4
    %v402 = vrot.slane %v395, 2
    %vm403 = vcmask 1041408
    %v404 = vsel %vm403, %v392, %v400
    %vm405 = vcmask 1045508
    %v406 = vsel %vm405, %v401, %v402
    %vm407 = vcmask 1043456
    %v408 = vsel %vm407, %v404, %v406
    %410 = vst [vmem:[#allocation2] sm:$0xff] %v408
    %v411 = vld [vmem:[#allocation2] sm:$0xff]
    %413 = vst [vmem:[#allocation1] ss:$4 sm:$0xff] %v411
    %v414 = vld.sshfl [vmem:[#allocation1] sm:$0xff pattern:$0x73625140]
    %v415 = vld.sshfl [vmem:[#allocation1 + $0x8] sm:$0xff pattern:$0x73625140]
    %v416 = vld.sshfl [vmem:[#allocation1 + $0x10] sm:$0xff pattern:$0x73625140]
    %v417 = vld.sshfl [vmem:[#allocation1 + $0x18] sm:$0xff pattern:$0x73625140]
    %v422 = vpack.c.bf16 %v414, %v414
    %v423 = vpack.c.bf16 %v415, %v415
    %v424 = vpack.c.bf16 %v416, %v416
    %v425 = vpack.c.bf16 %v417, %v417
    %v426 = vld [vmem:[#allocation9] sm:$0xff]
    %v427 = vld [vmem:[#allocation9 + $0x8] sm:$0xff]
    %v428 = vld [vmem:[#allocation9 + $0x10] sm:$0xff]
    %v429 = vld [vmem:[#allocation9 + $0x18] sm:$0xff]
    %v430 = vld [vmem:[#allocation9 + $0x20] sm:$0xff]
    %v431 = vld [vmem:[#allocation9 + $0x28] sm:$0xff]
    %v432 = vld [vmem:[#allocation9 + $0x30] sm:$0xff]
    %v433 = vld [vmem:[#allocation9 + $0x38] sm:$0xff]
    %v434 = vld [vmem:[#allocation9 + $0x40] sm:$0xff]
    %v435 = vld [vmem:[#allocation9 + $0x48] sm:$0xff]
    %v436 = vld [vmem:[#allocation9 + $0x50] sm:$0xff]
    %v437 = vld [vmem:[#allocation9 + $0x58] sm:$0xff]
    %v438 = vld [vmem:[#allocation9 + $0x60] sm:$0xff]
    %v439 = vld [vmem:[#allocation9 + $0x68] sm:$0xff]
    %v440 = vld [vmem:[#allocation9 + $0x70] sm:$0xff]
    %v441 = vld [vmem:[#allocation9 + $0x78] sm:$0xff]
    %v442 = vld [vmem:[#allocation9 + $0x80] sm:$0xff]
    %v443 = vld [vmem:[#allocation9 + $0x88] sm:$0xff]
    %v444 = vld [vmem:[#allocation9 + $0x90] sm:$0xff]
    %v445 = vld [vmem:[#allocation9 + $0x98] sm:$0xff]
    %v446 = vld [vmem:[#allocation9 + $0xa0] sm:$0xff]
    %v447 = vld [vmem:[#allocation9 + $0xa8] sm:$0xff]
    %v448 = vld [vmem:[#allocation9 + $0xb0] sm:$0xff]
    %v449 = vld [vmem:[#allocation9 + $0xb8] sm:$0xff]
    %v450 = vld [vmem:[#allocation9 + $0xc0] sm:$0xff]
    %v451 = vld [vmem:[#allocation9 + $0xc8] sm:$0xff]
    %v452 = vld [vmem:[#allocation9 + $0xd0] sm:$0xff]
    %v453 = vld [vmem:[#allocation9 + $0xd8] sm:$0xff]
    %v454 = vld [vmem:[#allocation9 + $0xe0] sm:$0xff]
    %v455 = vld [vmem:[#allocation9 + $0xe8] sm:$0xff]
    %v456 = vld [vmem:[#allocation9 + $0xf0] sm:$0xff]
    %v457 = vld [vmem:[#allocation9 + $0xf8] sm:$0xff]
    %v458 = vld [vmem:[#allocation9 + $0x100] sm:$0xff]
    %v459 = vld [vmem:[#allocation9 + $0x108] sm:$0xff]
    %v460 = vld [vmem:[#allocation9 + $0x110] sm:$0xff]
    %v461 = vld [vmem:[#allocation9 + $0x118] sm:$0xff]
    %v462 = vld [vmem:[#allocation9 + $0x120] sm:$0xff]
    %v463 = vld [vmem:[#allocation9 + $0x128] sm:$0xff]
    %v464 = vld [vmem:[#allocation9 + $0x130] sm:$0xff]
    %v465 = vld [vmem:[#allocation9 + $0x138] sm:$0xff]
    %v466 = vld [vmem:[#allocation9 + $0x140] sm:$0xff]
    %v467 = vld [vmem:[#allocation9 + $0x148] sm:$0xff]
    %v468 = vld [vmem:[#allocation9 + $0x150] sm:$0xff]
    %v469 = vld [vmem:[#allocation9 + $0x158] sm:$0xff]
    %v470 = vld [vmem:[#allocation9 + $0x160] sm:$0xff]
    %v471 = vld [vmem:[#allocation9 + $0x168] sm:$0xff]
    %v472 = vld [vmem:[#allocation9 + $0x170] sm:$0xff]
    %v473 = vld [vmem:[#allocation9 + $0x178] sm:$0xff]
    %v474 = vld [vmem:[#allocation9 + $0x180] sm:$0xff]
    %v475 = vld [vmem:[#allocation9 + $0x188] sm:$0xff]
    %v476 = vld [vmem:[#allocation9 + $0x190] sm:$0xff]
    %v477 = vld [vmem:[#allocation9 + $0x198] sm:$0xff]
    %v478 = vld [vmem:[#allocation9 + $0x1a0] sm:$0xff]
    %v479 = vld [vmem:[#allocation9 + $0x1a8] sm:$0xff]
    %v480 = vld [vmem:[#allocation9 + $0x1b0] sm:$0xff]
    %v481 = vld [vmem:[#allocation9 + $0x1b8] sm:$0xff]
    %v482 = vld [vmem:[#allocation9 + $0x1c0] sm:$0xff]
    %v483 = vld [vmem:[#allocation9 + $0x1c8] sm:$0xff]
    %v484 = vld [vmem:[#allocation9 + $0x1d0] sm:$0xff]
    %v485 = vld [vmem:[#allocation9 + $0x1d8] sm:$0xff]
    %v486 = vld [vmem:[#allocation9 + $0x1e0] sm:$0xff]
    %v487 = vld [vmem:[#allocation9 + $0x1e8] sm:$0xff]
    %v488 = vld [vmem:[#allocation9 + $0x1f0] sm:$0xff]
    %v489 = vld [vmem:[#allocation9 + $0x1f8] sm:$0xff]
    %v490 = vld [vmem:[#allocation9 + $0x200] sm:$0xff]
    %v491 = vld [vmem:[#allocation9 + $0x208] sm:$0xff]
    %v492 = vld [vmem:[#allocation9 + $0x210] sm:$0xff]
    %v493 = vld [vmem:[#allocation9 + $0x218] sm:$0xff]
    %v494 = vld [vmem:[#allocation9 + $0x220] sm:$0xff]
    %v495 = vld [vmem:[#allocation9 + $0x228] sm:$0xff]
    %v496 = vld [vmem:[#allocation9 + $0x230] sm:$0xff]
    %v497 = vld [vmem:[#allocation9 + $0x238] sm:$0xff]
    %v498 = vld [vmem:[#allocation9 + $0x240] sm:$0xff]
    %v499 = vld [vmem:[#allocation9 + $0x248] sm:$0xff]
    %v500 = vld [vmem:[#allocation9 + $0x250] sm:$0xff]
    %v501 = vld [vmem:[#allocation9 + $0x258] sm:$0xff]
    %v502 = vld [vmem:[#allocation9 + $0x260] sm:$0xff]
    %v503 = vld [vmem:[#allocation9 + $0x268] sm:$0xff]
    %v504 = vld [vmem:[#allocation9 + $0x270] sm:$0xff]
    %v505 = vld [vmem:[#allocation9 + $0x278] sm:$0xff]
    %v506 = vld [vmem:[#allocation9 + $0x280] sm:$0xff]
    %v507 = vld [vmem:[#allocation9 + $0x288] sm:$0xff]
    %v508 = vld [vmem:[#allocation9 + $0x290] sm:$0xff]
    %v509 = vld [vmem:[#allocation9 + $0x298] sm:$0xff]
    %v510 = vld [vmem:[#allocation9 + $0x2a0] sm:$0xff]
    %v511 = vld [vmem:[#allocation9 + $0x2a8] sm:$0xff]
    %v512 = vld [vmem:[#allocation9 + $0x2b0] sm:$0xff]
    %v513 = vld [vmem:[#allocation9 + $0x2b8] sm:$0xff]
    %v514 = vld [vmem:[#allocation9 + $0x2c0] sm:$0xff]
    %v515 = vld [vmem:[#allocation9 + $0x2c8] sm:$0xff]
    %v516 = vld [vmem:[#allocation9 + $0x2d0] sm:$0xff]
    %v517 = vld [vmem:[#allocation9 + $0x2d8] sm:$0xff]
    %v518 = vld [vmem:[#allocation9 + $0x2e0] sm:$0xff]
    %v519 = vld [vmem:[#allocation9 + $0x2e8] sm:$0xff]
    %v520 = vld [vmem:[#allocation9 + $0x2f0] sm:$0xff]
    %v521 = vld [vmem:[#allocation9 + $0x2f8] sm:$0xff]
    %v522 = vld [vmem:[#allocation9 + $0x300] sm:$0xff]
    %v523 = vld [vmem:[#allocation9 + $0x308] sm:$0xff]
    %v524 = vld [vmem:[#allocation9 + $0x310] sm:$0xff]
    %v525 = vld [vmem:[#allocation9 + $0x318] sm:$0xff]
    %v526 = vld [vmem:[#allocation9 + $0x320] sm:$0xff]
    %v527 = vld [vmem:[#allocation9 + $0x328] sm:$0xff]
    %v528 = vld [vmem:[#allocation9 + $0x330] sm:$0xff]
    %v529 = vld [vmem:[#allocation9 + $0x338] sm:$0xff]
    %v530 = vld [vmem:[#allocation9 + $0x340] sm:$0xff]
    %v531 = vld [vmem:[#allocation9 + $0x348] sm:$0xff]
    %v532 = vld [vmem:[#allocation9 + $0x350] sm:$0xff]
    %v533 = vld [vmem:[#allocation9 + $0x358] sm:$0xff]
    %v534 = vld [vmem:[#allocation9 + $0x360] sm:$0xff]
    %v535 = vld [vmem:[#allocation9 + $0x368] sm:$0xff]
    %v536 = vld [vmem:[#allocation9 + $0x370] sm:$0xff]
    %v537 = vld [vmem:[#allocation9 + $0x378] sm:$0xff]
    %v538 = vld [vmem:[#allocation9 + $0x380] sm:$0xff]
    %v539 = vld [vmem:[#allocation9 + $0x388] sm:$0xff]
    %v540 = vld [vmem:[#allocation9 + $0x390] sm:$0xff]
    %v541 = vld [vmem:[#allocation9 + $0x398] sm:$0xff]
    %v542 = vld [vmem:[#allocation9 + $0x3a0] sm:$0xff]
    %v543 = vld [vmem:[#allocation9 + $0x3a8] sm:$0xff]
    %v544 = vld [vmem:[#allocation9 + $0x3b0] sm:$0xff]
    %v545 = vld [vmem:[#allocation9 + $0x3b8] sm:$0xff]
    %v546 = vld [vmem:[#allocation9 + $0x3c0] sm:$0xff]
    %v547 = vld [vmem:[#allocation9 + $0x3c8] sm:$0xff]
    %v548 = vld [vmem:[#allocation9 + $0x3d0] sm:$0xff]
    %v549 = vld [vmem:[#allocation9 + $0x3d8] sm:$0xff]
    %v550 = vld [vmem:[#allocation9 + $0x3e0] sm:$0xff]
    %v551 = vld [vmem:[#allocation9 + $0x3e8] sm:$0xff]
    %v552 = vld [vmem:[#allocation9 + $0x3f0] sm:$0xff]
    %v553 = vld [vmem:[#allocation9 + $0x3f8] sm:$0xff]
    %v554 = vld [vmem:[#allocation11] sm:$0xf]
    %v556 = vperm.slane %v554, 0
    %v557 = vperm.slane %v554, 1
    %v558 = vperm.slane %v554, 2
    %v559 = vperm.slane %v554, 3
    %v692 = vunpack.c.l.b16 %v426
    %v693 = vunpack.c.h.b16 %v426
    %v694 = vunpack.c.l.b16 %v427
    %v695 = vunpack.c.h.b16 %v427
    %v696 = vunpack.c.l.b16 %v428
    %v697 = vunpack.c.h.b16 %v428
    %v698 = vunpack.c.l.b16 %v429
    %v699 = vunpack.c.h.b16 %v429
    %v700 = vunpack.c.l.b16 %v430
    %v701 = vunpack.c.h.b16 %v430
    %v702 = vunpack.c.l.b16 %v431
    %v703 = vunpack.c.h.b16 %v431
    %v704 = vunpack.c.l.b16 %v432
    %v705 = vunpack.c.h.b16 %v432
    %v706 = vunpack.c.l.b16 %v433
    %v707 = vunpack.c.h.b16 %v433
    %v708 = vunpack.c.l.b16 %v434
    %v709 = vunpack.c.h.b16 %v434
    %v710 = vunpack.c.l.b16 %v435
    %v711 = vunpack.c.h.b16 %v435
    %v712 = vunpack.c.l.b16 %v436
    %v713 = vunpack.c.h.b16 %v436
    %v714 = vunpack.c.l.b16 %v437
    %v715 = vunpack.c.h.b16 %v437
    %v716 = vunpack.c.l.b16 %v438
    %v717 = vunpack.c.h.b16 %v438
    %v718 = vunpack.c.l.b16 %v439
    %v719 = vunpack.c.h.b16 %v439
    %v720 = vunpack.c.l.b16 %v440
    %v721 = vunpack.c.h.b16 %v440
    %v722 = vunpack.c.l.b16 %v441
    %v723 = vunpack.c.h.b16 %v441
    %v724 = vunpack.c.l.b16 %v442
    %v725 = vunpack.c.h.b16 %v442
    %v726 = vunpack.c.l.b16 %v443
    %v727 = vunpack.c.h.b16 %v443
    %v728 = vunpack.c.l.b16 %v444
    %v729 = vunpack.c.h.b16 %v444
    %v730 = vunpack.c.l.b16 %v445
    %v731 = vunpack.c.h.b16 %v445
    %v732 = vunpack.c.l.b16 %v446
    %v733 = vunpack.c.h.b16 %v446
    %v734 = vunpack.c.l.b16 %v447
    %v735 = vunpack.c.h.b16 %v447
    %v736 = vunpack.c.l.b16 %v448
    %v737 = vunpack.c.h.b16 %v448
    %v738 = vunpack.c.l.b16 %v449
    %v739 = vunpack.c.h.b16 %v449
    %v740 = vunpack.c.l.b16 %v450
    %v741 = vunpack.c.h.b16 %v450
    %v742 = vunpack.c.l.b16 %v451
    %v743 = vunpack.c.h.b16 %v451
    %v744 = vunpack.c.l.b16 %v452
    %v745 = vunpack.c.h.b16 %v452
    %v746 = vunpack.c.l.b16 %v453
    %v747 = vunpack.c.h.b16 %v453
    %v748 = vunpack.c.l.b16 %v454
    %v749 = vunpack.c.h.b16 %v454
    %v750 = vunpack.c.l.b16 %v455
    %v751 = vunpack.c.h.b16 %v455
    %v752 = vunpack.c.l.b16 %v456
    %v753 = vunpack.c.h.b16 %v456
    %v754 = vunpack.c.l.b16 %v457
    %v755 = vunpack.c.h.b16 %v457
    %v756 = vunpack.c.l.b16 %v458
    %v757 = vunpack.c.h.b16 %v458
    %v758 = vunpack.c.l.b16 %v459
    %v759 = vunpack.c.h.b16 %v459
    %v760 = vunpack.c.l.b16 %v460
    %v761 = vunpack.c.h.b16 %v460
    %v762 = vunpack.c.l.b16 %v461
    %v763 = vunpack.c.h.b16 %v461
    %v764 = vunpack.c.l.b16 %v462
    %v765 = vunpack.c.h.b16 %v462
    %v766 = vunpack.c.l.b16 %v463
    %v767 = vunpack.c.h.b16 %v463
    %v768 = vunpack.c.l.b16 %v464
    %v769 = vunpack.c.h.b16 %v464
    %v770 = vunpack.c.l.b16 %v465
    %v771 = vunpack.c.h.b16 %v465
    %v772 = vunpack.c.l.b16 %v466
    %v773 = vunpack.c.h.b16 %v466
    %v774 = vunpack.c.l.b16 %v467
    %v775 = vunpack.c.h.b16 %v467
    %v776 = vunpack.c.l.b16 %v468
    %v777 = vunpack.c.h.b16 %v468
    %v778 = vunpack.c.l.b16 %v469
    %v779 = vunpack.c.h.b16 %v469
    %v780 = vunpack.c.l.b16 %v470
    %v781 = vunpack.c.h.b16 %v470
    %v782 = vunpack.c.l.b16 %v471
    %v783 = vunpack.c.h.b16 %v471
    %v784 = vunpack.c.l.b16 %v472
    %v785 = vunpack.c.h.b16 %v472
    %v786 = vunpack.c.l.b16 %v473
    %v787 = vunpack.c.h.b16 %v473
    %v788 = vunpack.c.l.b16 %v474
    %v789 = vunpack.c.h.b16 %v474
    %v790 = vunpack.c.l.b16 %v475
    %v791 = vunpack.c.h.b16 %v475
    %v792 = vunpack.c.l.b16 %v476
    %v793 = vunpack.c.h.b16 %v476
    %v794 = vunpack.c.l.b16 %v477
    %v795 = vunpack.c.h.b16 %v477
    %v796 = vunpack.c.l.b16 %v478
    %v797 = vunpack.c.h.b16 %v478
    %v798 = vunpack.c.l.b16 %v479
    %v799 = vunpack.c.h.b16 %v479
    %v800 = vunpack.c.l.b16 %v480
    %v801 = vunpack.c.h.b16 %v480
    %v802 = vunpack.c.l.b16 %v481
    %v803 = vunpack.c.h.b16 %v481
    %v804 = vunpack.c.l.b16 %v482
    %v805 = vunpack.c.h.b16 %v482
    %v806 = vunpack.c.l.b16 %v483
    %v807 = vunpack.c.h.b16 %v483
    %v808 = vunpack.c.l.b16 %v484
    %v809 = vunpack.c.h.b16 %v484
    %v810 = vunpack.c.l.b16 %v485
    %v811 = vunpack.c.h.b16 %v485
    %v812 = vunpack.c.l.b16 %v486
    %v813 = vunpack.c.h.b16 %v486
    %v814 = vunpack.c.l.b16 %v487
    %v815 = vunpack.c.h.b16 %v487
    %v816 = vunpack.c.l.b16 %v488
    %v817 = vunpack.c.h.b16 %v488
    %v818 = vunpack.c.l.b16 %v489
    %v819 = vunpack.c.h.b16 %v489
    %v820 = vunpack.c.l.b16 %v490
    %v821 = vunpack.c.h.b16 %v490
    %v822 = vunpack.c.l.b16 %v491
    %v823 = vunpack.c.h.b16 %v491
    %v824 = vunpack.c.l.b16 %v492
    %v825 = vunpack.c.h.b16 %v492
    %v826 = vunpack.c.l.b16 %v493
    %v827 = vunpack.c.h.b16 %v493
    %v828 = vunpack.c.l.b16 %v494
    %v829 = vunpack.c.h.b16 %v494
    %v830 = vunpack.c.l.b16 %v495
    %v831 = vunpack.c.h.b16 %v495
    %v832 = vunpack.c.l.b16 %v496
    %v833 = vunpack.c.h.b16 %v496
    %v834 = vunpack.c.l.b16 %v497
    %v835 = vunpack.c.h.b16 %v497
    %v836 = vunpack.c.l.b16 %v498
    %v837 = vunpack.c.h.b16 %v498
    %v838 = vunpack.c.l.b16 %v499
    %v839 = vunpack.c.h.b16 %v499
    %v840 = vunpack.c.l.b16 %v500
    %v841 = vunpack.c.h.b16 %v500
    %v842 = vunpack.c.l.b16 %v501
    %v843 = vunpack.c.h.b16 %v501
    %v844 = vunpack.c.l.b16 %v502
    %v845 = vunpack.c.h.b16 %v502
    %v846 = vunpack.c.l.b16 %v503
    %v847 = vunpack.c.h.b16 %v503
    %v848 = vunpack.c.l.b16 %v504
    %v849 = vunpack.c.h.b16 %v504
    %v850 = vunpack.c.l.b16 %v505
    %v851 = vunpack.c.h.b16 %v505
    %v852 = vunpack.c.l.b16 %v506
    %v853 = vunpack.c.h.b16 %v506
    %v854 = vunpack.c.l.b16 %v507
    %v855 = vunpack.c.h.b16 %v507
    %v856 = vunpack.c.l.b16 %v508
    %v857 = vunpack.c.h.b16 %v508
    %v858 = vunpack.c.l.b16 %v509
    %v859 = vunpack.c.h.b16 %v509
    %v860 = vunpack.c.l.b16 %v510
    %v861 = vunpack.c.h.b16 %v510
    %v862 = vunpack.c.l.b16 %v511
    %v863 = vunpack.c.h.b16 %v511
    %v864 = vunpack.c.l.b16 %v512
    %v865 = vunpack.c.h.b16 %v512
    %v866 = vunpack.c.l.b16 %v513
    %v867 = vunpack.c.h.b16 %v513
    %v868 = vunpack.c.l.b16 %v514
    %v869 = vunpack.c.h.b16 %v514
    %v870 = vunpack.c.l.b16 %v515
    %v871 = vunpack.c.h.b16 %v515
    %v872 = vunpack.c.l.b16 %v516
    %v873 = vunpack.c.h.b16 %v516
    %v874 = vunpack.c.l.b16 %v517
    %v875 = vunpack.c.h.b16 %v517
    %v876 = vunpack.c.l.b16 %v518
    %v877 = vunpack.c.h.b16 %v518
    %v878 = vunpack.c.l.b16 %v519
    %v879 = vunpack.c.h.b16 %v519
    %v880 = vunpack.c.l.b16 %v520
    %v881 = vunpack.c.h.b16 %v520
    %v882 = vunpack.c.l.b16 %v521
    %v883 = vunpack.c.h.b16 %v521
    %v884 = vunpack.c.l.b16 %v522
    %v885 = vunpack.c.h.b16 %v522
    %v886 = vunpack.c.l.b16 %v523
    %v887 = vunpack.c.h.b16 %v523
    %v888 = vunpack.c.l.b16 %v524
    %v889 = vunpack.c.h.b16 %v524
    %v890 = vunpack.c.l.b16 %v525
    %v891 = vunpack.c.h.b16 %v525
    %v892 = vunpack.c.l.b16 %v526
    %v893 = vunpack.c.h.b16 %v526
    %v894 = vunpack.c.l.b16 %v527
    %v895 = vunpack.c.h.b16 %v527
    %v896 = vunpack.c.l.b16 %v528
    %v897 = vunpack.c.h.b16 %v528
    %v898 = vunpack.c.l.b16 %v529
    %v899 = vunpack.c.h.b16 %v529
    %v900 = vunpack.c.l.b16 %v530
    %v901 = vunpack.c.h.b16 %v530
    %v902 = vunpack.c.l.b16 %v531
    %v903 = vunpack.c.h.b16 %v531
    %v904 = vunpack.c.l.b16 %v532
    %v905 = vunpack.c.h.b16 %v532
    %v906 = vunpack.c.l.b16 %v533
    %v907 = vunpack.c.h.b16 %v533
    %v908 = vunpack.c.l.b16 %v534
    %v909 = vunpack.c.h.b16 %v534
    %v910 = vunpack.c.l.b16 %v535
    %v911 = vunpack.c.h.b16 %v535
    %v912 = vunpack.c.l.b16 %v536
    %v913 = vunpack.c.h.b16 %v536
    %v914 = vunpack.c.l.b16 %v537
    %v915 = vunpack.c.h.b16 %v537
    %v916 = vunpack.c.l.b16 %v538
    %v917 = vunpack.c.h.b16 %v538
    %v918 = vunpack.c.l.b16 %v539
    %v919 = vunpack.c.h.b16 %v539
    %v920 = vunpack.c.l.b16 %v540
    %v921 = vunpack.c.h.b16 %v540
    %v922 = vunpack.c.l.b16 %v541
    %v923 = vunpack.c.h.b16 %v541
    %v924 = vunpack.c.l.b16 %v542
    %v925 = vunpack.c.h.b16 %v542
    %v926 = vunpack.c.l.b16 %v543
    %v927 = vunpack.c.h.b16 %v543
    %v928 = vunpack.c.l.b16 %v544
    %v929 = vunpack.c.h.b16 %v544
    %v930 = vunpack.c.l.b16 %v545
    %v931 = vunpack.c.h.b16 %v545
    %v932 = vunpack.c.l.b16 %v546
    %v933 = vunpack.c.h.b16 %v546
    %v934 = vunpack.c.l.b16 %v547
    %v935 = vunpack.c.h.b16 %v547
    %v936 = vunpack.c.l.b16 %v548
    %v937 = vunpack.c.h.b16 %v548
    %v938 = vunpack.c.l.b16 %v549
    %v939 = vunpack.c.h.b16 %v549
    %v940 = vunpack.c.l.b16 %v550
    %v941 = vunpack.c.h.b16 %v550
    %v942 = vunpack.c.l.b16 %v551
    %v943 = vunpack.c.h.b16 %v551
    %v944 = vunpack.c.l.b16 %v552
    %v945 = vunpack.c.h.b16 %v552
    %v946 = vunpack.c.l.b16 %v553
    %v947 = vunpack.c.h.b16 %v553
    %v948 = vpack.c.b16 %v696, %v692
    %v949 = vpack.c.b16 %v697, %v693
    %v950 = vpack.c.b16 %v698, %v694
    %v951 = vpack.c.b16 %v699, %v695
    %v952 = vpack.c.b16 %v704, %v700
    %v953 = vpack.c.b16 %v705, %v701
    %v954 = vpack.c.b16 %v706, %v702
    %v955 = vpack.c.b16 %v707, %v703
    %v956 = vpack.c.b16 %v712, %v708
    %v957 = vpack.c.b16 %v713, %v709
    %v958 = vpack.c.b16 %v714, %v710
    %v959 = vpack.c.b16 %v715, %v711
    %v960 = vpack.c.b16 %v720, %v716
    %v961 = vpack.c.b16 %v721, %v717
    %v962 = vpack.c.b16 %v722, %v718
    %v963 = vpack.c.b16 %v723, %v719
    %v964 = vpack.c.b16 %v728, %v724
    %v965 = vpack.c.b16 %v729, %v725
    %v966 = vpack.c.b16 %v730, %v726
    %v967 = vpack.c.b16 %v731, %v727
    %v968 = vpack.c.b16 %v736, %v732
    %v969 = vpack.c.b16 %v737, %v733
    %v970 = vpack.c.b16 %v738, %v734
    %v971 = vpack.c.b16 %v739, %v735
    %v972 = vpack.c.b16 %v744, %v740
    %v973 = vpack.c.b16 %v745, %v741
    %v974 = vpack.c.b16 %v746, %v742
    %v975 = vpack.c.b16 %v747, %v743
    %v976 = vpack.c.b16 %v752, %v748
    %v977 = vpack.c.b16 %v753, %v749
    %v978 = vpack.c.b16 %v754, %v750
    %v979 = vpack.c.b16 %v755, %v751
    %v980 = vpack.c.b16 %v760, %v756
    %v981 = vpack.c.b16 %v761, %v757
    %v982 = vpack.c.b16 %v762, %v758
    %v983 = vpack.c.b16 %v763, %v759
    %v984 = vpack.c.b16 %v768, %v764
    %v985 = vpack.c.b16 %v769, %v765
    %v986 = vpack.c.b16 %v770, %v766
    %v987 = vpack.c.b16 %v771, %v767
    %v988 = vpack.c.b16 %v776, %v772
    %v989 = vpack.c.b16 %v777, %v773
    %v990 = vpack.c.b16 %v778, %v774
    %v991 = vpack.c.b16 %v779, %v775
    %v992 = vpack.c.b16 %v784, %v780
    %v993 = vpack.c.b16 %v785, %v781
    %v994 = vpack.c.b16 %v786, %v782
    %v995 = vpack.c.b16 %v787, %v783
    %v996 = vpack.c.b16 %v792, %v788
    %v997 = vpack.c.b16 %v793, %v789
    %v998 = vpack.c.b16 %v794, %v790
    %v999 = vpack.c.b16 %v795, %v791
    %v1000 = vpack.c.b16 %v800, %v796
    %v1001 = vpack.c.b16 %v801, %v797
    %v1002 = vpack.c.b16 %v802, %v798
    %v1003 = vpack.c.b16 %v803, %v799
    %v1004 = vpack.c.b16 %v808, %v804
    %v1005 = vpack.c.b16 %v809, %v805
    %v1006 = vpack.c.b16 %v810, %v806
    %v1007 = vpack.c.b16 %v811, %v807
    %v1008 = vpack.c.b16 %v816, %v812
    %v1009 = vpack.c.b16 %v817, %v813
    %v1010 = vpack.c.b16 %v818, %v814
    %v1011 = vpack.c.b16 %v819, %v815
    %v1012 = vpack.c.b16 %v824, %v820
    %v1013 = vpack.c.b16 %v825, %v821
    %v1014 = vpack.c.b16 %v826, %v822
    %v1015 = vpack.c.b16 %v827, %v823
    %v1016 = vpack.c.b16 %v832, %v828
    %v1017 = vpack.c.b16 %v833, %v829
    %v1018 = vpack.c.b16 %v834, %v830
    %v1019 = vpack.c.b16 %v835, %v831
    %v1020 = vpack.c.b16 %v840, %v836
    %v1021 = vpack.c.b16 %v841, %v837
    %v1022 = vpack.c.b16 %v842, %v838
    %v1023 = vpack.c.b16 %v843, %v839
    %v1024 = vpack.c.b16 %v848, %v844
    %v1025 = vpack.c.b16 %v849, %v845
    %v1026 = vpack.c.b16 %v850, %v846
    %v1027 = vpack.c.b16 %v851, %v847
    %v1028 = vpack.c.b16 %v856, %v852
    %v1029 = vpack.c.b16 %v857, %v853
    %v1030 = vpack.c.b16 %v858, %v854
    %v1031 = vpack.c.b16 %v859, %v855
    %v1032 = vpack.c.b16 %v864, %v860
    %v1033 = vpack.c.b16 %v865, %v861
    %v1034 = vpack.c.b16 %v866, %v862
    %v1035 = vpack.c.b16 %v867, %v863
    %v1036 = vpack.c.b16 %v872, %v868
    %v1037 = vpack.c.b16 %v873, %v869
    %v1038 = vpack.c.b16 %v874, %v870
    %v1039 = vpack.c.b16 %v875, %v871
    %v1040 = vpack.c.b16 %v880, %v876
    %v1041 = vpack.c.b16 %v881, %v877
    %v1042 = vpack.c.b16 %v882, %v878
    %v1043 = vpack.c.b16 %v883, %v879
    %v1044 = vpack.c.b16 %v888, %v884
    %v1045 = vpack.c.b16 %v889, %v885
    %v1046 = vpack.c.b16 %v890, %v886
    %v1047 = vpack.c.b16 %v891, %v887
    %v1048 = vpack.c.b16 %v896, %v892
    %v1049 = vpack.c.b16 %v897, %v893
    %v1050 = vpack.c.b16 %v898, %v894
    %v1051 = vpack.c.b16 %v899, %v895
    %v1052 = vpack.c.b16 %v904, %v900
    %v1053 = vpack.c.b16 %v905, %v901
    %v1054 = vpack.c.b16 %v906, %v902
    %v1055 = vpack.c.b16 %v907, %v903
    %v1056 = vpack.c.b16 %v912, %v908
    %v1057 = vpack.c.b16 %v913, %v909
    %v1058 = vpack.c.b16 %v914, %v910
    %v1059 = vpack.c.b16 %v915, %v911
    %v1060 = vpack.c.b16 %v920, %v916
    %v1061 = vpack.c.b16 %v921, %v917
    %v1062 = vpack.c.b16 %v922, %v918
    %v1063 = vpack.c.b16 %v923, %v919
    %v1064 = vpack.c.b16 %v928, %v924
    %v1065 = vpack.c.b16 %v929, %v925
    %v1066 = vpack.c.b16 %v930, %v926
    %v1067 = vpack.c.b16 %v931, %v927
    %v1068 = vpack.c.b16 %v936, %v932
    %v1069 = vpack.c.b16 %v937, %v933
    %v1070 = vpack.c.b16 %v938, %v934
    %v1071 = vpack.c.b16 %v939, %v935
    %v1072 = vpack.c.b16 %v944, %v940
    %v1073 = vpack.c.b16 %v945, %v941
    %v1074 = vpack.c.b16 %v946, %v942
    %v1075 = vpack.c.b16 %v947, %v943
    %1204 = vmatpush.bf16.msra.mxu0 %v976
    %1205 = vmatpush.bf16.msra.mxu0 %v972
    %1206 = vmatpush.bf16.msra.mxu0 %v968
    %1207 = vmatpush.bf16.msra.mxu0 %v964
    %1208 = vmatpush.bf16.msra.mxu0 %v960
    %1209 = vmatpush.bf16.msra.mxu0 %v956
    %1210 = vmatpush.bf16.msra.mxu0 %v952
    %1211 = vmatpush.bf16.msra.mxu0 %v948
    %1212 = vmatmul.bf16.gmra.mxu0 %v422
    %v1213 = vpop.f32.mrf.mxu0
    %v1214 = vadd.f32 %v556, %v1213
    %v1215 = vpop.f32.mrf.mxu0
    %1216 = vdwg.mxu0
    %1217 = vmatpush.bf16.msra.mxu0 %v1008
    %1218 = vmatpush.bf16.msra.mxu0 %v1004
    %1219 = vmatpush.bf16.msra.mxu0 %v1000
    %1220 = vmatpush.bf16.msra.mxu0 %v996
    %1221 = vmatpush.bf16.msra.mxu0 %v992
    %1222 = vmatpush.bf16.msra.mxu0 %v988
    %1223 = vmatpush.bf16.msra.mxu0 %v984
    %1224 = vmatpush.bf16.msra.mxu0 %v980
    %1225 = vmatmul.bf16.gmra.mxu0 %v423
    %v1226 = vpop.f32.mrf.mxu0
    %v1227 = vadd.f32 %v1214, %v1226
    %v1228 = vpop.f32.mrf.mxu0
    %1229 = vdwg.mxu0
    %1230 = vmatpush.bf16.msra.mxu0 %v1040
    %1231 = vmatpush.bf16.msra.mxu0 %v1036
    %1232 = vmatpush.bf16.msra.mxu0 %v1032
    %1233 = vmatpush.bf16.msra.mxu0 %v1028
    %1234 = vmatpush.bf16.msra.mxu0 %v1024
    %1235 = vmatpush.bf16.msra.mxu0 %v1020
    %1236 = vmatpush.bf16.msra.mxu0 %v1016
    %1237 = vmatpush.bf16.msra.mxu0 %v1012
    %1238 = vmatmul.bf16.gmra.mxu0 %v424
    %v1239 = vpop.f32.mrf.mxu0
    %v1240 = vadd.f32 %v1227, %v1239
    %v1241 = vpop.f32.mrf.mxu0
    %1242 = vdwg.mxu0
    %1243 = vmatpush.bf16.msra.mxu0 %v1072
    %1244 = vmatpush.bf16.msra.mxu0 %v1068
    %1245 = vmatpush.bf16.msra.mxu0 %v1064
    %1246 = vmatpush.bf16.msra.mxu0 %v1060
    %1247 = vmatpush.bf16.msra.mxu0 %v1056
    %1248 = vmatpush.bf16.msra.mxu0 %v1052
    %1249 = vmatpush.bf16.msra.mxu0 %v1048
    %1250 = vmatpush.bf16.msra.mxu0 %v1044
    %1251 = vmatmul.bf16.gmra.mxu0 %v425
    %v1252 = vpop.f32.mrf.mxu0
    %v1253 = vadd.f32 %v1240, %v1252
    %v1254 = vpop.f32.mrf.mxu0
    %1255 = vdwg.mxu0
    %1256 = vmatpush.bf16.msra.mxu0 %v977
    %1257 = vmatpush.bf16.msra.mxu0 %v973
    %1258 = vmatpush.bf16.msra.mxu0 %v969
    %1259 = vmatpush.bf16.msra.mxu0 %v965
    %1260 = vmatpush.bf16.msra.mxu0 %v961
    %1261 = vmatpush.bf16.msra.mxu0 %v957
    %1262 = vmatpush.bf16.msra.mxu0 %v953
    %1263 = vmatpush.bf16.msra.mxu0 %v949
    %1264 = vmatmul.bf16.gmra.mxu0 %v422
    %v1265 = vpop.f32.mrf.mxu0
    %v1266 = vadd.f32 %v557, %v1265
    %v1267 = vpop.f32.mrf.mxu0
    %1268 = vdwg.mxu0
    %1269 = vmatpush.bf16.msra.mxu0 %v1009
    %1270 = vmatpush.bf16.msra.mxu0 %v1005
    %1271 = vmatpush.bf16.msra.mxu0 %v1001
    %1272 = vmatpush.bf16.msra.mxu0 %v997
    %1273 = vmatpush.bf16.msra.mxu0 %v993
    %1274 = vmatpush.bf16.msra.mxu0 %v989
    %1275 = vmatpush.bf16.msra.mxu0 %v985
    %1276 = vmatpush.bf16.msra.mxu0 %v981
    %1277 = vmatmul.bf16.gmra.mxu0 %v423
    %v1278 = vpop.f32.mrf.mxu0
    %v1279 = vadd.f32 %v1266, %v1278
    %v1280 = vpop.f32.mrf.mxu0
    %1281 = vdwg.mxu0
    %1282 = vmatpush.bf16.msra.mxu0 %v1041
    %1283 = vmatpush.bf16.msra.mxu0 %v1037
    %1284 = vmatpush.bf16.msra.mxu0 %v1033
    %1285 = vmatpush.bf16.msra.mxu0 %v1029
    %1286 = vmatpush.bf16.msra.mxu0 %v1025
    %1287 = vmatpush.bf16.msra.mxu0 %v1021
    %1288 = vmatpush.bf16.msra.mxu0 %v1017
    %1289 = vmatpush.bf16.msra.mxu0 %v1013
    %1290 = vmatmul.bf16.gmra.mxu0 %v424
    %v1291 = vpop.f32.mrf.mxu0
    %v1292 = vadd.f32 %v1279, %v1291
    %v1293 = vpop.f32.mrf.mxu0
    %1294 = vdwg.mxu0
    %1295 = vmatpush.bf16.msra.mxu0 %v1073
    %1296 = vmatpush.bf16.msra.mxu0 %v1069
    %1297 = vmatpush.bf16.msra.mxu0 %v1065
    %1298 = vmatpush.bf16.msra.mxu0 %v1061
    %1299 = vmatpush.bf16.msra.mxu0 %v1057
    %1300 = vmatpush.bf16.msra.mxu0 %v1053
    %1301 = vmatpush.bf16.msra.mxu0 %v1049
    %1302 = vmatpush.bf16.msra.mxu0 %v1045
    %1303 = vmatmul.bf16.gmra.mxu0 %v425
    %v1304 = vpop.f32.mrf.mxu0
    %v1305 = vadd.f32 %v1292, %v1304
    %v1306 = vpop.f32.mrf.mxu0
    %1307 = vdwg.mxu0
    %1308 = vmatpush.bf16.msra.mxu0 %v978
    %1309 = vmatpush.bf16.msra.mxu0 %v974
    %1310 = vmatpush.bf16.msra.mxu0 %v970
    %1311 = vmatpush.bf16.msra.mxu0 %v966
    %1312 = vmatpush.bf16.msra.mxu0 %v962
    %1313 = vmatpush.bf16.msra.mxu0 %v958
    %1314 = vmatpush.bf16.msra.mxu0 %v954
    %1315 = vmatpush.bf16.msra.mxu0 %v950
    %1316 = vmatmul.bf16.gmra.mxu0 %v422
    %v1317 = vpop.f32.mrf.mxu0
    %v1318 = vadd.f32 %v558, %v1317
    %v1319 = vpop.f32.mrf.mxu0
    %1320 = vdwg.mxu0
    %1321 = vmatpush.bf16.msra.mxu0 %v1010
    %1322 = vmatpush.bf16.msra.mxu0 %v1006
    %1323 = vmatpush.bf16.msra.mxu0 %v1002
    %1324 = vmatpush.bf16.msra.mxu0 %v998
    %1325 = vmatpush.bf16.msra.mxu0 %v994
    %1326 = vmatpush.bf16.msra.mxu0 %v990
    %1327 = vmatpush.bf16.msra.mxu0 %v986
    %1328 = vmatpush.bf16.msra.mxu0 %v982
    %1329 = vmatmul.bf16.gmra.mxu0 %v423
    %v1330 = vpop.f32.mrf.mxu0
    %v1331 = vadd.f32 %v1318, %v1330
    %v1332 = vpop.f32.mrf.mxu0
    %1333 = vdwg.mxu0
    %1334 = vmatpush.bf16.msra.mxu0 %v1042
    %1335 = vmatpush.bf16.msra.mxu0 %v1038
    %1336 = vmatpush.bf16.msra.mxu0 %v1034
    %1337 = vmatpush.bf16.msra.mxu0 %v1030
    %1338 = vmatpush.bf16.msra.mxu0 %v1026
    %1339 = vmatpush.bf16.msra.mxu0 %v1022
    %1340 = vmatpush.bf16.msra.mxu0 %v1018
    %1341 = vmatpush.bf16.msra.mxu0 %v1014
    %1342 = vmatmul.bf16.gmra.mxu0 %v424
    %v1343 = vpop.f32.mrf.mxu0
    %v1344 = vadd.f32 %v1331, %v1343
    %v1345 = vpop.f32.mrf.mxu0
    %1346 = vdwg.mxu0
    %1347 = vmatpush.bf16.msra.mxu0 %v1074
    %1348 = vmatpush.bf16.msra.mxu0 %v1070
    %1349 = vmatpush.bf16.msra.mxu0 %v1066
    %1350 = vmatpush.bf16.msra.mxu0 %v1062
    %1351 = vmatpush.bf16.msra.mxu0 %v1058
    %1352 = vmatpush.bf16.msra.mxu0 %v1054
    %1353 = vmatpush.bf16.msra.mxu0 %v1050
    %1354 = vmatpush.bf16.msra.mxu0 %v1046
    %1355 = vmatmul.bf16.gmra.mxu0 %v425
    %v1356 = vpop.f32.mrf.mxu0
    %v1357 = vadd.f32 %v1344, %v1356
    %v1358 = vpop.f32.mrf.mxu0
    %1359 = vdwg.mxu0
    %1360 = vmatpush.bf16.msra.mxu0 %v979
    %1361 = vmatpush.bf16.msra.mxu0 %v975
    %1362 = vmatpush.bf16.msra.mxu0 %v971
    %1363 = vmatpush.bf16.msra.mxu0 %v967
    %1364 = vmatpush.bf16.msra.mxu0 %v963
    %1365 = vmatpush.bf16.msra.mxu0 %v959
    %1366 = vmatpush.bf16.msra.mxu0 %v955
    %1367 = vmatpush.bf16.msra.mxu0 %v951
    %1368 = vmatmul.bf16.gmra.mxu0 %v422
    %v1369 = vpop.f32.mrf.mxu0
    %v1370 = vadd.f32 %v559, %v1369
    %v1371 = vpop.f32.mrf.mxu0
    %1372 = vdwg.mxu0
    %1373 = vmatpush.bf16.msra.mxu0 %v1011
    %1374 = vmatpush.bf16.msra.mxu0 %v1007
    %1375 = vmatpush.bf16.msra.mxu0 %v1003
    %1376 = vmatpush.bf16.msra.mxu0 %v999
    %1377 = vmatpush.bf16.msra.mxu0 %v995
    %1378 = vmatpush.bf16.msra.mxu0 %v991
    %1379 = vmatpush.bf16.msra.mxu0 %v987
    %1380 = vmatpush.bf16.msra.mxu0 %v983
    %1381 = vmatmul.bf16.gmra.mxu0 %v423
    %v1382 = vpop.f32.mrf.mxu0
    %v1383 = vadd.f32 %v1370, %v1382
    %v1384 = vpop.f32.mrf.mxu0
    %1385 = vdwg.mxu0
    %1386 = vmatpush.bf16.msra.mxu0 %v1043
    %1387 = vmatpush.bf16.msra.mxu0 %v1039
    %1388 = vmatpush.bf16.msra.mxu0 %v1035
    %1389 = vmatpush.bf16.msra.mxu0 %v1031
    %1390 = vmatpush.bf16.msra.mxu0 %v1027
    %1391 = vmatpush.bf16.msra.mxu0 %v1023
    %1392 = vmatpush.bf16.msra.mxu0 %v1019
    %1393 = vmatpush.bf16.msra.mxu0 %v1015
    %1394 = vmatmul.bf16.gmra.mxu0 %v424
    %v1395 = vpop.f32.mrf.mxu0
    %v1396 = vadd.f32 %v1383, %v1395
    %v1397 = vpop.f32.mrf.mxu0
    %1398 = vdwg.mxu0
    %1399 = vmatpush.bf16.msra.mxu0 %v1075
    %1400 = vmatpush.bf16.msra.mxu0 %v1071
    %1401 = vmatpush.bf16.msra.mxu0 %v1067
    %1402 = vmatpush.bf16.msra.mxu0 %v1063
    %1403 = vmatpush.bf16.msra.mxu0 %v1059
    %1404 = vmatpush.bf16.msra.mxu0 %v1055
    %1405 = vmatpush.bf16.msra.mxu0 %v1051
    %1406 = vmatpush.bf16.msra.mxu0 %v1047
    %1407 = vmatmul.bf16.gmra.mxu0 %v425
    %v1408 = vpop.f32.mrf.mxu0
    %v1409 = vadd.f32 %v1396, %v1408
    %v1410 = vpop.f32.mrf.mxu0
    %1411 = vdwg.mxu0
    %v1412 = vmax.f32 %v1253, 0.0
    %v1413 = vmax.f32 %v1305, 0.0
    %v1414 = vmax.f32 %v1357, 0.0
    %v1415 = vmax.f32 %v1409, 0.0
    %v1420 = vrot.slane %v1413, 6
    %v1421 = vrot.slane %v1414, 4
    %v1422 = vrot.slane %v1415, 2
    %v1423 = vsel %vm403, %v1412, %v1420
    %v1424 = vsel %vm405, %v1421, %v1422
    %v1425 = vsel %vm407, %v1423, %v1424
    %1427 = vst [vmem:[#allocation2] sm:$0xff] %v1425
    %v1428 = vld [vmem:[#allocation2] sm:$0xff]
    %1430 = vst [vmem:[#allocation1] ss:$4 sm:$0xff] %v1428
    %v1431 = vld.sshfl [vmem:[#allocation1] sm:$0xff pattern:$0x73625140]
    %v1432 = vld.sshfl [vmem:[#allocation1 + $0x8] sm:$0xff pattern:$0x73625140]
    %v1433 = vld.sshfl [vmem:[#allocation1 + $0x10] sm:$0xff pattern:$0x73625140]
    %v1434 = vld.sshfl [vmem:[#allocation1 + $0x18] sm:$0xff pattern:$0x73625140]
    %v1439 = vpack.c.bf16 %v1431, %v1431
    %v1440 = vpack.c.bf16 %v1432, %v1432
    %v1441 = vpack.c.bf16 %v1433, %v1433
    %v1442 = vpack.c.bf16 %v1434, %v1434
    %v1443 = vld [vmem:[#allocation12] sm:$0xff]
    %v1444 = vld [vmem:[#allocation12 + $0x8] sm:$0xff]
    %v1445 = vld [vmem:[#allocation12 + $0x10] sm:$0xff]
    %v1446 = vld [vmem:[#allocation12 + $0x18] sm:$0xff]
    %v1447 = vld [vmem:[#allocation12 + $0x20] sm:$0xff]
    %v1448 = vld [vmem:[#allocation12 + $0x28] sm:$0xff]
    %v1449 = vld [vmem:[#allocation12 + $0x30] sm:$0xff]
    %v1450 = vld [vmem:[#allocation12 + $0x38] sm:$0xff]
    %v1451 = vld [vmem:[#allocation12 + $0x40] sm:$0xff]
    %v1452 = vld [vmem:[#allocation12 + $0x48] sm:$0xff]
    %v1453 = vld [vmem:[#allocation12 + $0x50] sm:$0xff]
    %v1454 = vld [vmem:[#allocation12 + $0x58] sm:$0xff]
    %v1455 = vld [vmem:[#allocation12 + $0x60] sm:$0xff]
    %v1456 = vld [vmem:[#allocation12 + $0x68] sm:$0xff]
    %v1457 = vld [vmem:[#allocation12 + $0x70] sm:$0xff]
    %v1458 = vld [vmem:[#allocation12 + $0x78] sm:$0xff]
    %v1459 = vld [vmem:[#allocation12 + $0x80] sm:$0xff]
    %v1460 = vld [vmem:[#allocation12 + $0x88] sm:$0xff]
    %v1461 = vld [vmem:[#allocation12 + $0x90] sm:$0xff]
    %v1462 = vld [vmem:[#allocation12 + $0x98] sm:$0xff]
    %v1463 = vld [vmem:[#allocation12 + $0xa0] sm:$0xff]
    %v1464 = vld [vmem:[#allocation12 + $0xa8] sm:$0xff]
    %v1465 = vld [vmem:[#allocation12 + $0xb0] sm:$0xff]
    %v1466 = vld [vmem:[#allocation12 + $0xb8] sm:$0xff]
    %v1467 = vld [vmem:[#allocation12 + $0xc0] sm:$0xff]
    %v1468 = vld [vmem:[#allocation12 + $0xc8] sm:$0xff]
    %v1469 = vld [vmem:[#allocation12 + $0xd0] sm:$0xff]
    %v1470 = vld [vmem:[#allocation12 + $0xd8] sm:$0xff]
    %v1471 = vld [vmem:[#allocation12 + $0xe0] sm:$0xff]
    %v1472 = vld [vmem:[#allocation12 + $0xe8] sm:$0xff]
    %v1473 = vld [vmem:[#allocation12 + $0xf0] sm:$0xff]
    %v1474 = vld [vmem:[#allocation12 + $0xf8] sm:$0xff]
    %v1475 = vld [vmem:[#allocation12 + $0x100] sm:$0xff]
    %v1476 = vld [vmem:[#allocation12 + $0x108] sm:$0xff]
    %v1477 = vld [vmem:[#allocation12 + $0x110] sm:$0xff]
    %v1478 = vld [vmem:[#allocation12 + $0x118] sm:$0xff]
    %v1479 = vld [vmem:[#allocation12 + $0x120] sm:$0xff]
    %v1480 = vld [vmem:[#allocation12 + $0x128] sm:$0xff]
    %v1481 = vld [vmem:[#allocation12 + $0x130] sm:$0xff]
    %v1482 = vld [vmem:[#allocation12 + $0x138] sm:$0xff]
    %v1483 = vld [vmem:[#allocation12 + $0x140] sm:$0xff]
    %v1484 = vld [vmem:[#allocation12 + $0x148] sm:$0xff]
    %v1485 = vld [vmem:[#allocation12 + $0x150] sm:$0xff]
    %v1486 = vld [vmem:[#allocation12 + $0x158] sm:$0xff]
    %v1487 = vld [vmem:[#allocation12 + $0x160] sm:$0xff]
    %v1488 = vld [vmem:[#allocation12 + $0x168] sm:$0xff]
    %v1489 = vld [vmem:[#allocation12 + $0x170] sm:$0xff]
    %v1490 = vld [vmem:[#allocation12 + $0x178] sm:$0xff]
    %v1491 = vld [vmem:[#allocation12 + $0x180] sm:$0xff]
    %v1492 = vld [vmem:[#allocation12 + $0x188] sm:$0xff]
    %v1493 = vld [vmem:[#allocation12 + $0x190] sm:$0xff]
    %v1494 = vld [vmem:[#allocation12 + $0x198] sm:$0xff]
    %v1495 = vld [vmem:[#allocation12 + $0x1a0] sm:$0xff]
    %v1496 = vld [vmem:[#allocation12 + $0x1a8] sm:$0xff]
    %v1497 = vld [vmem:[#allocation12 + $0x1b0] sm:$0xff]
    %v1498 = vld [vmem:[#allocation12 + $0x1b8] sm:$0xff]
    %v1499 = vld [vmem:[#allocation12 + $0x1c0] sm:$0xff]
    %v1500 = vld [vmem:[#allocation12 + $0x1c8] sm:$0xff]
    %v1501 = vld [vmem:[#allocation12 + $0x1d0] sm:$0xff]
    %v1502 = vld [vmem:[#allocation12 + $0x1d8] sm:$0xff]
    %v1503 = vld [vmem:[#allocation12 + $0x1e0] sm:$0xff]
    %v1504 = vld [vmem:[#allocation12 + $0x1e8] sm:$0xff]
    %v1505 = vld [vmem:[#allocation12 + $0x1f0] sm:$0xff]
    %v1506 = vld [vmem:[#allocation12 + $0x1f8] sm:$0xff]
    %v1507 = vld [vmem:[#allocation12 + $0x200] sm:$0xff]
    %v1508 = vld [vmem:[#allocation12 + $0x208] sm:$0xff]
    %v1509 = vld [vmem:[#allocation12 + $0x210] sm:$0xff]
    %v1510 = vld [vmem:[#allocation12 + $0x218] sm:$0xff]
    %v1511 = vld [vmem:[#allocation12 + $0x220] sm:$0xff]
    %v1512 = vld [vmem:[#allocation12 + $0x228] sm:$0xff]
    %v1513 = vld [vmem:[#allocation12 + $0x230] sm:$0xff]
    %v1514 = vld [vmem:[#allocation12 + $0x238] sm:$0xff]
    %v1515 = vld [vmem:[#allocation12 + $0x240] sm:$0xff]
    %v1516 = vld [vmem:[#allocation12 + $0x248] sm:$0xff]
    %v1517 = vld [vmem:[#allocation12 + $0x250] sm:$0xff]
    %v1518 = vld [vmem:[#allocation12 + $0x258] sm:$0xff]
    %v1519 = vld [vmem:[#allocation12 + $0x260] sm:$0xff]
    %v1520 = vld [vmem:[#allocation12 + $0x268] sm:$0xff]
    %v1521 = vld [vmem:[#allocation12 + $0x270] sm:$0xff]
    %v1522 = vld [vmem:[#allocation12 + $0x278] sm:$0xff]
    %v1523 = vld [vmem:[#allocation12 + $0x280] sm:$0xff]
    %v1524 = vld [vmem:[#allocation12 + $0x288] sm:$0xff]
    %v1525 = vld [vmem:[#allocation12 + $0x290] sm:$0xff]
    %v1526 = vld [vmem:[#allocation12 + $0x298] sm:$0xff]
    %v1527 = vld [vmem:[#allocation12 + $0x2a0] sm:$0xff]
    %v1528 = vld [vmem:[#allocation12 + $0x2a8] sm:$0xff]
    %v1529 = vld [vmem:[#allocation12 + $0x2b0] sm:$0xff]
    %v1530 = vld [vmem:[#allocation12 + $0x2b8] sm:$0xff]
    %v1531 = vld [vmem:[#allocation12 + $0x2c0] sm:$0xff]
    %v1532 = vld [vmem:[#allocation12 + $0x2c8] sm:$0xff]
    %v1533 = vld [vmem:[#allocation12 + $0x2d0] sm:$0xff]
    %v1534 = vld [vmem:[#allocation12 + $0x2d8] sm:$0xff]
    %v1535 = vld [vmem:[#allocation12 + $0x2e0] sm:$0xff]
    %v1536 = vld [vmem:[#allocation12 + $0x2e8] sm:$0xff]
    %v1537 = vld [vmem:[#allocation12 + $0x2f0] sm:$0xff]
    %v1538 = vld [vmem:[#allocation12 + $0x2f8] sm:$0xff]
    %v1539 = vld [vmem:[#allocation12 + $0x300] sm:$0xff]
    %v1540 = vld [vmem:[#allocation12 + $0x308] sm:$0xff]
    %v1541 = vld [vmem:[#allocation12 + $0x310] sm:$0xff]
    %v1542 = vld [vmem:[#allocation12 + $0x318] sm:$0xff]
    %v1543 = vld [vmem:[#allocation12 + $0x320] sm:$0xff]
    %v1544 = vld [vmem:[#allocation12 + $0x328] sm:$0xff]
    %v1545 = vld [vmem:[#allocation12 + $0x330] sm:$0xff]
    %v1546 = vld [vmem:[#allocation12 + $0x338] sm:$0xff]
    %v1547 = vld [vmem:[#allocation12 + $0x340] sm:$0xff]
    %v1548 = vld [vmem:[#allocation12 + $0x348] sm:$0xff]
    %v1549 = vld [vmem:[#allocation12 + $0x350] sm:$0xff]
    %v1550 = vld [vmem:[#allocation12 + $0x358] sm:$0xff]
    %v1551 = vld [vmem:[#allocation12 + $0x360] sm:$0xff]
    %v1552 = vld [vmem:[#allocation12 + $0x368] sm:$0xff]
    %v1553 = vld [vmem:[#allocation12 + $0x370] sm:$0xff]
    %v1554 = vld [vmem:[#allocation12 + $0x378] sm:$0xff]
    %v1555 = vld [vmem:[#allocation12 + $0x380] sm:$0xff]
    %v1556 = vld [vmem:[#allocation12 + $0x388] sm:$0xff]
    %v1557 = vld [vmem:[#allocation12 + $0x390] sm:$0xff]
    %v1558 = vld [vmem:[#allocation12 + $0x398] sm:$0xff]
    %v1559 = vld [vmem:[#allocation12 + $0x3a0] sm:$0xff]
    %v1560 = vld [vmem:[#allocation12 + $0x3a8] sm:$0xff]
    %v1561 = vld [vmem:[#allocation12 + $0x3b0] sm:$0xff]
    %v1562 = vld [vmem:[#allocation12 + $0x3b8] sm:$0xff]
    %v1563 = vld [vmem:[#allocation12 + $0x3c0] sm:$0xff]
    %v1564 = vld [vmem:[#allocation12 + $0x3c8] sm:$0xff]
    %v1565 = vld [vmem:[#allocation12 + $0x3d0] sm:$0xff]
    %v1566 = vld [vmem:[#allocation12 + $0x3d8] sm:$0xff]
    %v1567 = vld [vmem:[#allocation12 + $0x3e0] sm:$0xff]
    %v1568 = vld [vmem:[#allocation12 + $0x3e8] sm:$0xff]
    %v1569 = vld [vmem:[#allocation12 + $0x3f0] sm:$0xff]
    %v1570 = vld [vmem:[#allocation12 + $0x3f8] sm:$0xff]
    %v1571 = vld [vmem:[%s6] sm:$0xf]
    %v1573 = vperm.slane %v1571, 0
    %v1574 = vperm.slane %v1571, 1
    %v1575 = vperm.slane %v1571, 2
    %v1576 = vperm.slane %v1571, 3
    %v1709 = vunpack.c.l.b16 %v1443
    %v1710 = vunpack.c.h.b16 %v1443
    %v1711 = vunpack.c.l.b16 %v1444
    %v1712 = vunpack.c.h.b16 %v1444
    %v1713 = vunpack.c.l.b16 %v1445
    %v1714 = vunpack.c.h.b16 %v1445
    %v1715 = vunpack.c.l.b16 %v1446
    %v1716 = vunpack.c.h.b16 %v1446
    %v1717 = vunpack.c.l.b16 %v1447
    %v1718 = vunpack.c.h.b16 %v1447
    %v1719 = vunpack.c.l.b16 %v1448
    %v1720 = vunpack.c.h.b16 %v1448
    %v1721 = vunpack.c.l.b16 %v1449
    %v1722 = vunpack.c.h.b16 %v1449
    %v1723 = vunpack.c.l.b16 %v1450
    %v1724 = vunpack.c.h.b16 %v1450
    %v1725 = vunpack.c.l.b16 %v1451
    %v1726 = vunpack.c.h.b16 %v1451
    %v1727 = vunpack.c.l.b16 %v1452
    %v1728 = vunpack.c.h.b16 %v1452
    %v1729 = vunpack.c.l.b16 %v1453
    %v1730 = vunpack.c.h.b16 %v1453
    %v1731 = vunpack.c.l.b16 %v1454
    %v1732 = vunpack.c.h.b16 %v1454
    %v1733 = vunpack.c.l.b16 %v1455
    %v1734 = vunpack.c.h.b16 %v1455
    %v1735 = vunpack.c.l.b16 %v1456
    %v1736 = vunpack.c.h.b16 %v1456
    %v1737 = vunpack.c.l.b16 %v1457
    %v1738 = vunpack.c.h.b16 %v1457
    %v1739 = vunpack.c.l.b16 %v1458
    %v1740 = vunpack.c.h.b16 %v1458
    %v1741 = vunpack.c.l.b16 %v1459
    %v1742 = vunpack.c.h.b16 %v1459
    %v1743 = vunpack.c.l.b16 %v1460
    %v1744 = vunpack.c.h.b16 %v1460
    %v1745 = vunpack.c.l.b16 %v1461
    %v1746 = vunpack.c.h.b16 %v1461
    %v1747 = vunpack.c.l.b16 %v1462
    %v1748 = vunpack.c.h.b16 %v1462
    %v1749 = vunpack.c.l.b16 %v1463
    %v1750 = vunpack.c.h.b16 %v1463
    %v1751 = vunpack.c.l.b16 %v1464
    %v1752 = vunpack.c.h.b16 %v1464
    %v1753 = vunpack.c.l.b16 %v1465
    %v1754 = vunpack.c.h.b16 %v1465
    %v1755 = vunpack.c.l.b16 %v1466
    %v1756 = vunpack.c.h.b16 %v1466
    %v1757 = vunpack.c.l.b16 %v1467
    %v1758 = vunpack.c.h.b16 %v1467
    %v1759 = vunpack.c.l.b16 %v1468
    %v1760 = vunpack.c.h.b16 %v1468
    %v1761 = vunpack.c.l.b16 %v1469
    %v1762 = vunpack.c.h.b16 %v1469
    %v1763 = vunpack.c.l.b16 %v1470
    %v1764 = vunpack.c.h.b16 %v1470
    %v1765 = vunpack.c.l.b16 %v1471
    %v1766 = vunpack.c.h.b16 %v1471
    %v1767 = vunpack.c.l.b16 %v1472
    %v1768 = vunpack.c.h.b16 %v1472
    %v1769 = vunpack.c.l.b16 %v1473
    %v1770 = vunpack.c.h.b16 %v1473
    %v1771 = vunpack.c.l.b16 %v1474
    %v1772 = vunpack.c.h.b16 %v1474
    %v1773 = vunpack.c.l.b16 %v1475
    %v1774 = vunpack.c.h.b16 %v1475
    %v1775 = vunpack.c.l.b16 %v1476
    %v1776 = vunpack.c.h.b16 %v1476
    %v1777 = vunpack.c.l.b16 %v1477
    %v1778 = vunpack.c.h.b16 %v1477
    %v1779 = vunpack.c.l.b16 %v1478
    %v1780 = vunpack.c.h.b16 %v1478
    %v1781 = vunpack.c.l.b16 %v1479
    %v1782 = vunpack.c.h.b16 %v1479
    %v1783 = vunpack.c.l.b16 %v1480
    %v1784 = vunpack.c.h.b16 %v1480
    %v1785 = vunpack.c.l.b16 %v1481
    %v1786 = vunpack.c.h.b16 %v1481
    %v1787 = vunpack.c.l.b16 %v1482
    %v1788 = vunpack.c.h.b16 %v1482
    %v1789 = vunpack.c.l.b16 %v1483
    %v1790 = vunpack.c.h.b16 %v1483
    %v1791 = vunpack.c.l.b16 %v1484
    %v1792 = vunpack.c.h.b16 %v1484
    %v1793 = vunpack.c.l.b16 %v1485
    %v1794 = vunpack.c.h.b16 %v1485
    %v1795 = vunpack.c.l.b16 %v1486
    %v1796 = vunpack.c.h.b16 %v1486
    %v1797 = vunpack.c.l.b16 %v1487
    %v1798 = vunpack.c.h.b16 %v1487
    %v1799 = vunpack.c.l.b16 %v1488
    %v1800 = vunpack.c.h.b16 %v1488
    %v1801 = vunpack.c.l.b16 %v1489
    %v1802 = vunpack.c.h.b16 %v1489
    %v1803 = vunpack.c.l.b16 %v1490
    %v1804 = vunpack.c.h.b16 %v1490
    %v1805 = vunpack.c.l.b16 %v1491
    %v1806 = vunpack.c.h.b16 %v1491
    %v1807 = vunpack.c.l.b16 %v1492
    %v1808 = vunpack.c.h.b16 %v1492
    %v1809 = vunpack.c.l.b16 %v1493
    %v1810 = vunpack.c.h.b16 %v1493
    %v1811 = vunpack.c.l.b16 %v1494
    %v1812 = vunpack.c.h.b16 %v1494
    %v1813 = vunpack.c.l.b16 %v1495
    %v1814 = vunpack.c.h.b16 %v1495
    %v1815 = vunpack.c.l.b16 %v1496
    %v1816 = vunpack.c.h.b16 %v1496
    %v1817 = vunpack.c.l.b16 %v1497
    %v1818 = vunpack.c.h.b16 %v1497
    %v1819 = vunpack.c.l.b16 %v1498
    %v1820 = vunpack.c.h.b16 %v1498
    %v1821 = vunpack.c.l.b16 %v1499
    %v1822 = vunpack.c.h.b16 %v1499
    %v1823 = vunpack.c.l.b16 %v1500
    %v1824 = vunpack.c.h.b16 %v1500
    %v1825 = vunpack.c.l.b16 %v1501
    %v1826 = vunpack.c.h.b16 %v1501
    %v1827 = vunpack.c.l.b16 %v1502
    %v1828 = vunpack.c.h.b16 %v1502
    %v1829 = vunpack.c.l.b16 %v1503
    %v1830 = vunpack.c.h.b16 %v1503
    %v1831 = vunpack.c.l.b16 %v1504
    %v1832 = vunpack.c.h.b16 %v1504
    %v1833 = vunpack.c.l.b16 %v1505
    %v1834 = vunpack.c.h.b16 %v1505
    %v1835 = vunpack.c.l.b16 %v1506
    %v1836 = vunpack.c.h.b16 %v1506
    %v1837 = vunpack.c.l.b16 %v1507
    %v1838 = vunpack.c.h.b16 %v1507
    %v1839 = vunpack.c.l.b16 %v1508
    %v1840 = vunpack.c.h.b16 %v1508
    %v1841 = vunpack.c.l.b16 %v1509
    %v1842 = vunpack.c.h.b16 %v1509
    %v1843 = vunpack.c.l.b16 %v1510
    %v1844 = vunpack.c.h.b16 %v1510
    %v1845 = vunpack.c.l.b16 %v1511
    %v1846 = vunpack.c.h.b16 %v1511
    %v1847 = vunpack.c.l.b16 %v1512
    %v1848 = vunpack.c.h.b16 %v1512
    %v1849 = vunpack.c.l.b16 %v1513
    %v1850 = vunpack.c.h.b16 %v1513
    %v1851 = vunpack.c.l.b16 %v1514
    %v1852 = vunpack.c.h.b16 %v1514
    %v1853 = vunpack.c.l.b16 %v1515
    %v1854 = vunpack.c.h.b16 %v1515
    %v1855 = vunpack.c.l.b16 %v1516
    %v1856 = vunpack.c.h.b16 %v1516
    %v1857 = vunpack.c.l.b16 %v1517
    %v1858 = vunpack.c.h.b16 %v1517
    %v1859 = vunpack.c.l.b16 %v1518
    %v1860 = vunpack.c.h.b16 %v1518
    %v1861 = vunpack.c.l.b16 %v1519
    %v1862 = vunpack.c.h.b16 %v1519
    %v1863 = vunpack.c.l.b16 %v1520
    %v1864 = vunpack.c.h.b16 %v1520
    %v1865 = vunpack.c.l.b16 %v1521
    %v1866 = vunpack.c.h.b16 %v1521
    %v1867 = vunpack.c.l.b16 %v1522
    %v1868 = vunpack.c.h.b16 %v1522
    %v1869 = vunpack.c.l.b16 %v1523
    %v1870 = vunpack.c.h.b16 %v1523
    %v1871 = vunpack.c.l.b16 %v1524
    %v1872 = vunpack.c.h.b16 %v1524
    %v1873 = vunpack.c.l.b16 %v1525
    %v1874 = vunpack.c.h.b16 %v1525
    %v1875 = vunpack.c.l.b16 %v1526
    %v1876 = vunpack.c.h.b16 %v1526
    %v1877 = vunpack.c.l.b16 %v1527
    %v1878 = vunpack.c.h.b16 %v1527
    %v1879 = vunpack.c.l.b16 %v1528
    %v1880 = vunpack.c.h.b16 %v1528
    %v1881 = vunpack.c.l.b16 %v1529
    %v1882 = vunpack.c.h.b16 %v1529
    %v1883 = vunpack.c.l.b16 %v1530
    %v1884 = vunpack.c.h.b16 %v1530
    %v1885 = vunpack.c.l.b16 %v1531
    %v1886 = vunpack.c.h.b16 %v1531
    %v1887 = vunpack.c.l.b16 %v1532
    %v1888 = vunpack.c.h.b16 %v1532
    %v1889 = vunpack.c.l.b16 %v1533
    %v1890 = vunpack.c.h.b16 %v1533
    %v1891 = vunpack.c.l.b16 %v1534
    %v1892 = vunpack.c.h.b16 %v1534
    %v1893 = vunpack.c.l.b16 %v1535
    %v1894 = vunpack.c.h.b16 %v1535
    %v1895 = vunpack.c.l.b16 %v1536
    %v1896 = vunpack.c.h.b16 %v1536
    %v1897 = vunpack.c.l.b16 %v1537
    %v1898 = vunpack.c.h.b16 %v1537
    %v1899 = vunpack.c.l.b16 %v1538
    %v1900 = vunpack.c.h.b16 %v1538
    %v1901 = vunpack.c.l.b16 %v1539
    %v1902 = vunpack.c.h.b16 %v1539
    %v1903 = vunpack.c.l.b16 %v1540
    %v1904 = vunpack.c.h.b16 %v1540
    %v1905 = vunpack.c.l.b16 %v1541
    %v1906 = vunpack.c.h.b16 %v1541
    %v1907 = vunpack.c.l.b16 %v1542
    %v1908 = vunpack.c.h.b16 %v1542
    %v1909 = vunpack.c.l.b16 %v1543
    %v1910 = vunpack.c.h.b16 %v1543
    %v1911 = vunpack.c.l.b16 %v1544
    %v1912 = vunpack.c.h.b16 %v1544
    %v1913 = vunpack.c.l.b16 %v1545
    %v1914 = vunpack.c.h.b16 %v1545
    %v1915 = vunpack.c.l.b16 %v1546
    %v1916 = vunpack.c.h.b16 %v1546
    %v1917 = vunpack.c.l.b16 %v1547
    %v1918 = vunpack.c.h.b16 %v1547
    %v1919 = vunpack.c.l.b16 %v1548
    %v1920 = vunpack.c.h.b16 %v1548
    %v1921 = vunpack.c.l.b16 %v1549
    %v1922 = vunpack.c.h.b16 %v1549
    %v1923 = vunpack.c.l.b16 %v1550
    %v1924 = vunpack.c.h.b16 %v1550
    %v1925 = vunpack.c.l.b16 %v1551
    %v1926 = vunpack.c.h.b16 %v1551
    %v1927 = vunpack.c.l.b16 %v1552
    %v1928 = vunpack.c.h.b16 %v1552
    %v1929 = vunpack.c.l.b16 %v1553
    %v1930 = vunpack.c.h.b16 %v1553
    %v1931 = vunpack.c.l.b16 %v1554
    %v1932 = vunpack.c.h.b16 %v1554
    %v1933 = vunpack.c.l.b16 %v1555
    %v1934 = vunpack.c.h.b16 %v1555
    %v1935 = vunpack.c.l.b16 %v1556
    %v1936 = vunpack.c.h.b16 %v1556
    %v1937 = vunpack.c.l.b16 %v1557
    %v1938 = vunpack.c.h.b16 %v1557
    %v1939 = vunpack.c.l.b16 %v1558
    %v1940 = vunpack.c.h.b16 %v1558
    %v1941 = vunpack.c.l.b16 %v1559
    %v1942 = vunpack.c.h.b16 %v1559
    %v1943 = vunpack.c.l.b16 %v1560
    %v1944 = vunpack.c.h.b16 %v1560
    %v1945 = vunpack.c.l.b16 %v1561
    %v1946 = vunpack.c.h.b16 %v1561
    %v1947 = vunpack.c.l.b16 %v1562
    %v1948 = vunpack.c.h.b16 %v1562
    %v1949 = vunpack.c.l.b16 %v1563
    %v1950 = vunpack.c.h.b16 %v1563
    %v1951 = vunpack.c.l.b16 %v1564
    %v1952 = vunpack.c.h.b16 %v1564
    %v1953 = vunpack.c.l.b16 %v1565
    %v1954 = vunpack.c.h.b16 %v1565
    %v1955 = vunpack.c.l.b16 %v1566
    %v1956 = vunpack.c.h.b16 %v1566
    %v1957 = vunpack.c.l.b16 %v1567
    %v1958 = vunpack.c.h.b16 %v1567
    %v1959 = vunpack.c.l.b16 %v1568
    %v1960 = vunpack.c.h.b16 %v1568
    %v1961 = vunpack.c.l.b16 %v1569
    %v1962 = vunpack.c.h.b16 %v1569
    %v1963 = vunpack.c.l.b16 %v1570
    %v1964 = vunpack.c.h.b16 %v1570
    %v1965 = vpack.c.b16 %v1713, %v1709
    %v1966 = vpack.c.b16 %v1714, %v1710
    %v1967 = vpack.c.b16 %v1715, %v1711
    %v1968 = vpack.c.b16 %v1716, %v1712
    %v1969 = vpack.c.b16 %v1721, %v1717
    %v1970 = vpack.c.b16 %v1722, %v1718
    %v1971 = vpack.c.b16 %v1723, %v1719
    %v1972 = vpack.c.b16 %v1724, %v1720
    %v1973 = vpack.c.b16 %v1729, %v1725
    %v1974 = vpack.c.b16 %v1730, %v1726
    %v1975 = vpack.c.b16 %v1731, %v1727
    %v1976 = vpack.c.b16 %v1732, %v1728
    %v1977 = vpack.c.b16 %v1737, %v1733
    %v1978 = vpack.c.b16 %v1738, %v1734
    %v1979 = vpack.c.b16 %v1739, %v1735
    %v1980 = vpack.c.b16 %v1740, %v1736
    %v1981 = vpack.c.b16 %v1745, %v1741
    %v1982 = vpack.c.b16 %v1746, %v1742
    %v1983 = vpack.c.b16 %v1747, %v1743
    %v1984 = vpack.c.b16 %v1748, %v1744
    %v1985 = vpack.c.b16 %v1753, %v1749
    %v1986 = vpack.c.b16 %v1754, %v1750
    %v1987 = vpack.c.b16 %v1755, %v1751
    %v1988 = vpack.c.b16 %v1756, %v1752
    %v1989 = vpack.c.b16 %v1761, %v1757
    %v1990 = vpack.c.b16 %v1762, %v1758
    %v1991 = vpack.c.b16 %v1763, %v1759
    %v1992 = vpack.c.b16 %v1764, %v1760
    %v1993 = vpack.c.b16 %v1769, %v1765
    %v1994 = vpack.c.b16 %v1770, %v1766
    %v1995 = vpack.c.b16 %v1771, %v1767
    %v1996 = vpack.c.b16 %v1772, %v1768
    %v1997 = vpack.c.b16 %v1777, %v1773
    %v1998 = vpack.c.b16 %v1778, %v1774
    %v1999 = vpack.c.b16 %v1779, %v1775
    %v2000 = vpack.c.b16 %v1780, %v1776
    %v2001 = vpack.c.b16 %v1785, %v1781
    %v2002 = vpack.c.b16 %v1786, %v1782
    %v2003 = vpack.c.b16 %v1787, %v1783
    %v2004 = vpack.c.b16 %v1788, %v1784
    %v2005 = vpack.c.b16 %v1793, %v1789
    %v2006 = vpack.c.b16 %v1794, %v1790
    %v2007 = vpack.c.b16 %v1795, %v1791
    %v2008 = vpack.c.b16 %v1796, %v1792
    %v2009 = vpack.c.b16 %v1801, %v1797
    %v2010 = vpack.c.b16 %v1802, %v1798
    %v2011 = vpack.c.b16 %v1803, %v1799
    %v2012 = vpack.c.b16 %v1804, %v1800
    %v2013 = vpack.c.b16 %v1809, %v1805
    %v2014 = vpack.c.b16 %v1810, %v1806
    %v2015 = vpack.c.b16 %v1811, %v1807
    %v2016 = vpack.c.b16 %v1812, %v1808
    %v2017 = vpack.c.b16 %v1817, %v1813
    %v2018 = vpack.c.b16 %v1818, %v1814
    %v2019 = vpack.c.b16 %v1819, %v1815
    %v2020 = vpack.c.b16 %v1820, %v1816
    %v2021 = vpack.c.b16 %v1825, %v1821
    %v2022 = vpack.c.b16 %v1826, %v1822
    %v2023 = vpack.c.b16 %v1827, %v1823
    %v2024 = vpack.c.b16 %v1828, %v1824
    %v2025 = vpack.c.b16 %v1833, %v1829
    %v2026 = vpack.c.b16 %v1834, %v1830
    %v2027 = vpack.c.b16 %v1835, %v1831
    %v2028 = vpack.c.b16 %v1836, %v1832
    %v2029 = vpack.c.b16 %v1841, %v1837
    %v2030 = vpack.c.b16 %v1842, %v1838
    %v2031 = vpack.c.b16 %v1843, %v1839
    %v2032 = vpack.c.b16 %v1844, %v1840
    %v2033 = vpack.c.b16 %v1849, %v1845
    %v2034 = vpack.c.b16 %v1850, %v1846
    %v2035 = vpack.c.b16 %v1851, %v1847
    %v2036 = vpack.c.b16 %v1852, %v1848
    %v2037 = vpack.c.b16 %v1857, %v1853
    %v2038 = vpack.c.b16 %v1858, %v1854
    %v2039 = vpack.c.b16 %v1859, %v1855
    %v2040 = vpack.c.b16 %v1860, %v1856
    %v2041 = vpack.c.b16 %v1865, %v1861
    %v2042 = vpack.c.b16 %v1866, %v1862
    %v2043 = vpack.c.b16 %v1867, %v1863
    %v2044 = vpack.c.b16 %v1868, %v1864
    %v2045 = vpack.c.b16 %v1873, %v1869
    %v2046 = vpack.c.b16 %v1874, %v1870
    %v2047 = vpack.c.b16 %v1875, %v1871
    %v2048 = vpack.c.b16 %v1876, %v1872
    %v2049 = vpack.c.b16 %v1881, %v1877
    %v2050 = vpack.c.b16 %v1882, %v1878
    %v2051 = vpack.c.b16 %v1883, %v1879
    %v2052 = vpack.c.b16 %v1884, %v1880
    %v2053 = vpack.c.b16 %v1889, %v1885
    %v2054 = vpack.c.b16 %v1890, %v1886
    %v2055 = vpack.c.b16 %v1891, %v1887
    %v2056 = vpack.c.b16 %v1892, %v1888
    %v2057 = vpack.c.b16 %v1897, %v1893
    %v2058 = vpack.c.b16 %v1898, %v1894
    %v2059 = vpack.c.b16 %v1899, %v1895
    %v2060 = vpack.c.b16 %v1900, %v1896
    %v2061 = vpack.c.b16 %v1905, %v1901
    %v2062 = vpack.c.b16 %v1906, %v1902
    %v2063 = vpack.c.b16 %v1907, %v1903
    %v2064 = vpack.c.b16 %v1908, %v1904
    %v2065 = vpack.c.b16 %v1913, %v1909
    %v2066 = vpack.c.b16 %v1914, %v1910
    %v2067 = vpack.c.b16 %v1915, %v1911
    %v2068 = vpack.c.b16 %v1916, %v1912
    %v2069 = vpack.c.b16 %v1921, %v1917
    %v2070 = vpack.c.b16 %v1922, %v1918
    %v2071 = vpack.c.b16 %v1923, %v1919
    %v2072 = vpack.c.b16 %v1924, %v1920
    %v2073 = vpack.c.b16 %v1929, %v1925
    %v2074 = vpack.c.b16 %v1930, %v1926
    %v2075 = vpack.c.b16 %v1931, %v1927
    %v2076 = vpack.c.b16 %v1932, %v1928
    %v2077 = vpack.c.b16 %v1937, %v1933
    %v2078 = vpack.c.b16 %v1938, %v1934
    %v2079 = vpack.c.b16 %v1939, %v1935
    %v2080 = vpack.c.b16 %v1940, %v1936
    %v2081 = vpack.c.b16 %v1945, %v1941
    %v2082 = vpack.c.b16 %v1946, %v1942
    %v2083 = vpack.c.b16 %v1947, %v1943
    %v2084 = vpack.c.b16 %v1948, %v1944
    %v2085 = vpack.c.b16 %v1953, %v1949
    %v2086 = vpack.c.b16 %v1954, %v1950
    %v2087 = vpack.c.b16 %v1955, %v1951
    %v2088 = vpack.c.b16 %v1956, %v1952
    %v2089 = vpack.c.b16 %v1961, %v1957
    %v2090 = vpack.c.b16 %v1962, %v1958
    %v2091 = vpack.c.b16 %v1963, %v1959
    %v2092 = vpack.c.b16 %v1964, %v1960
    %2221 = vmatpush.bf16.msra.mxu0 %v1993
    %2222 = vmatpush.bf16.msra.mxu0 %v1989
    %2223 = vmatpush.bf16.msra.mxu0 %v1985
    %2224 = vmatpush.bf16.msra.mxu0 %v1981
    %2225 = vmatpush.bf16.msra.mxu0 %v1977
    %2226 = vmatpush.bf16.msra.mxu0 %v1973
    %2227 = vmatpush.bf16.msra.mxu0 %v1969
    %2228 = vmatpush.bf16.msra.mxu0 %v1965
    %2229 = vmatmul.bf16.gmra.mxu0 %v1439
    %v2230 = vpop.f32.mrf.mxu0
    %v2231 = vadd.f32 %v1573, %v2230
    %v2232 = vpop.f32.mrf.mxu0
    %2233 = vdwg.mxu0
    %2234 = vmatpush.bf16.msra.mxu0 %v2025
    %2235 = vmatpush.bf16.msra.mxu0 %v2021
    %2236 = vmatpush.bf16.msra.mxu0 %v2017
    %2237 = vmatpush.bf16.msra.mxu0 %v2013
    %2238 = vmatpush.bf16.msra.mxu0 %v2009
    %2239 = vmatpush.bf16.msra.mxu0 %v2005
    %2240 = vmatpush.bf16.msra.mxu0 %v2001
    %2241 = vmatpush.bf16.msra.mxu0 %v1997
    %2242 = vmatmul.bf16.gmra.mxu0 %v1440
    %v2243 = vpop.f32.mrf.mxu0
    %v2244 = vadd.f32 %v2231, %v2243
    %v2245 = vpop.f32.mrf.mxu0
    %2246 = vdwg.mxu0
    %2247 = vmatpush.bf16.msra.mxu0 %v2057
    %2248 = vmatpush.bf16.msra.mxu0 %v2053
    %2249 = vmatpush.bf16.msra.mxu0 %v2049
    %2250 = vmatpush.bf16.msra.mxu0 %v2045
    %2251 = vmatpush.bf16.msra.mxu0 %v2041
    %2252 = vmatpush.bf16.msra.mxu0 %v2037
    %2253 = vmatpush.bf16.msra.mxu0 %v2033
    %2254 = vmatpush.bf16.msra.mxu0 %v2029
    %2255 = vmatmul.bf16.gmra.mxu0 %v1441
    %v2256 = vpop.f32.mrf.mxu0
    %v2257 = vadd.f32 %v2244, %v2256
    %v2258 = vpop.f32.mrf.mxu0
    %2259 = vdwg.mxu0
    %2260 = vmatpush.bf16.msra.mxu0 %v2089
    %2261 = vmatpush.bf16.msra.mxu0 %v2085
    %2262 = vmatpush.bf16.msra.mxu0 %v2081
    %2263 = vmatpush.bf16.msra.mxu0 %v2077
    %2264 = vmatpush.bf16.msra.mxu0 %v2073
    %2265 = vmatpush.bf16.msra.mxu0 %v2069
    %2266 = vmatpush.bf16.msra.mxu0 %v2065
    %2267 = vmatpush.bf16.msra.mxu0 %v2061
    %2268 = vmatmul.bf16.gmra.mxu0 %v1442
    %v2269 = vpop.f32.mrf.mxu0
    %v2270 = vadd.f32 %v2257, %v2269
    %v2271 = vpop.f32.mrf.mxu0
    %2272 = vdwg.mxu0
    %2273 = vmatpush.bf16.msra.mxu0 %v1994
    %2274 = vmatpush.bf16.msra.mxu0 %v1990
    %2275 = vmatpush.bf16.msra.mxu0 %v1986
    %2276 = vmatpush.bf16.msra.mxu0 %v1982
    %2277 = vmatpush.bf16.msra.mxu0 %v1978
    %2278 = vmatpush.bf16.msra.mxu0 %v1974
    %2279 = vmatpush.bf16.msra.mxu0 %v1970
    %2280 = vmatpush.bf16.msra.mxu0 %v1966
    %2281 = vmatmul.bf16.gmra.mxu0 %v1439
    %v2282 = vpop.f32.mrf.mxu0
    %v2283 = vadd.f32 %v1574, %v2282
    %v2284 = vpop.f32.mrf.mxu0
    %2285 = vdwg.mxu0
    %2286 = vmatpush.bf16.msra.mxu0 %v2026
    %2287 = vmatpush.bf16.msra.mxu0 %v2022
    %2288 = vmatpush.bf16.msra.mxu0 %v2018
    %2289 = vmatpush.bf16.msra.mxu0 %v2014
    %2290 = vmatpush.bf16.msra.mxu0 %v2010
    %2291 = vmatpush.bf16.msra.mxu0 %v2006
    %2292 = vmatpush.bf16.msra.mxu0 %v2002
    %2293 = vmatpush.bf16.msra.mxu0 %v1998
    %2294 = vmatmul.bf16.gmra.mxu0 %v1440
    %v2295 = vpop.f32.mrf.mxu0
    %v2296 = vadd.f32 %v2283, %v2295
    %v2297 = vpop.f32.mrf.mxu0
    %2298 = vdwg.mxu0
    %2299 = vmatpush.bf16.msra.mxu0 %v2058
    %2300 = vmatpush.bf16.msra.mxu0 %v2054
    %2301 = vmatpush.bf16.msra.mxu0 %v2050
    %2302 = vmatpush.bf16.msra.mxu0 %v2046
    %2303 = vmatpush.bf16.msra.mxu0 %v2042
    %2304 = vmatpush.bf16.msra.mxu0 %v2038
    %2305 = vmatpush.bf16.msra.mxu0 %v2034
    %2306 = vmatpush.bf16.msra.mxu0 %v2030
    %2307 = vmatmul.bf16.gmra.mxu0 %v1441
    %v2308 = vpop.f32.mrf.mxu0
    %v2309 = vadd.f32 %v2296, %v2308
    %v2310 = vpop.f32.mrf.mxu0
    %2311 = vdwg.mxu0
    %2312 = vmatpush.bf16.msra.mxu0 %v2090
    %2313 = vmatpush.bf16.msra.mxu0 %v2086
    %2314 = vmatpush.bf16.msra.mxu0 %v2082
    %2315 = vmatpush.bf16.msra.mxu0 %v2078
    %2316 = vmatpush.bf16.msra.mxu0 %v2074
    %2317 = vmatpush.bf16.msra.mxu0 %v2070
    %2318 = vmatpush.bf16.msra.mxu0 %v2066
    %2319 = vmatpush.bf16.msra.mxu0 %v2062
    %2320 = vmatmul.bf16.gmra.mxu0 %v1442
    %v2321 = vpop.f32.mrf.mxu0
    %v2322 = vadd.f32 %v2309, %v2321
    %v2323 = vpop.f32.mrf.mxu0
    %2324 = vdwg.mxu0
    %2325 = vmatpush.bf16.msra.mxu0 %v1995
    %2326 = vmatpush.bf16.msra.mxu0 %v1991
    %2327 = vmatpush.bf16.msra.mxu0 %v1987
    %2328 = vmatpush.bf16.msra.mxu0 %v1983
    %2329 = vmatpush.bf16.msra.mxu0 %v1979
    %2330 = vmatpush.bf16.msra.mxu0 %v1975
    %2331 = vmatpush.bf16.msra.mxu0 %v1971
    %2332 = vmatpush.bf16.msra.mxu0 %v1967
    %2333 = vmatmul.bf16.gmra.mxu0 %v1439
    %v2334 = vpop.f32.mrf.mxu0
    %v2335 = vadd.f32 %v1575, %v2334
    %v2336 = vpop.f32.mrf.mxu0
    %2337 = vdwg.mxu0
    %2338 = vmatpush.bf16.msra.mxu0 %v2027
    %2339 = vmatpush.bf16.msra.mxu0 %v2023
    %2340 = vmatpush.bf16.msra.mxu0 %v2019
    %2341 = vmatpush.bf16.msra.mxu0 %v2015
    %2342 = vmatpush.bf16.msra.mxu0 %v2011
    %2343 = vmatpush.bf16.msra.mxu0 %v2007
    %2344 = vmatpush.bf16.msra.mxu0 %v2003
    %2345 = vmatpush.bf16.msra.mxu0 %v1999
    %2346 = vmatmul.bf16.gmra.mxu0 %v1440
    %v2347 = vpop.f32.mrf.mxu0
    %v2348 = vadd.f32 %v2335, %v2347
    %v2349 = vpop.f32.mrf.mxu0
    %2350 = vdwg.mxu0
    %2351 = vmatpush.bf16.msra.mxu0 %v2059
    %2352 = vmatpush.bf16.msra.mxu0 %v2055
    %2353 = vmatpush.bf16.msra.mxu0 %v2051
    %2354 = vmatpush.bf16.msra.mxu0 %v2047
    %2355 = vmatpush.bf16.msra.mxu0 %v2043
    %2356 = vmatpush.bf16.msra.mxu0 %v2039
    %2357 = vmatpush.bf16.msra.mxu0 %v2035
    %2358 = vmatpush.bf16.msra.mxu0 %v2031
    %2359 = vmatmul.bf16.gmra.mxu0 %v1441
    %v2360 = vpop.f32.mrf.mxu0
    %v2361 = vadd.f32 %v2348, %v2360
    %v2362 = vpop.f32.mrf.mxu0
    %2363 = vdwg.mxu0
    %2364 = vmatpush.bf16.msra.mxu0 %v2091
    %2365 = vmatpush.bf16.msra.mxu0 %v2087
    %2366 = vmatpush.bf16.msra.mxu0 %v2083
    %2367 = vmatpush.bf16.msra.mxu0 %v2079
    %2368 = vmatpush.bf16.msra.mxu0 %v2075
    %2369 = vmatpush.bf16.msra.mxu0 %v2071
    %2370 = vmatpush.bf16.msra.mxu0 %v2067
    %2371 = vmatpush.bf16.msra.mxu0 %v2063
    %2372 = vmatmul.bf16.gmra.mxu0 %v1442
    %v2373 = vpop.f32.mrf.mxu0
    %v2374 = vadd.f32 %v2361, %v2373
    %v2375 = vpop.f32.mrf.mxu0
    %2376 = vdwg.mxu0
    %2377 = vmatpush.bf16.msra.mxu0 %v1996
    %2378 = vmatpush.bf16.msra.mxu0 %v1992
    %2379 = vmatpush.bf16.msra.mxu0 %v1988
    %2380 = vmatpush.bf16.msra.mxu0 %v1984
    %2381 = vmatpush.bf16.msra.mxu0 %v1980
    %2382 = vmatpush.bf16.msra.mxu0 %v1976
    %2383 = vmatpush.bf16.msra.mxu0 %v1972
    %2384 = vmatpush.bf16.msra.mxu0 %v1968
    %2385 = vmatmul.bf16.gmra.mxu0 %v1439
    %v2386 = vpop.f32.mrf.mxu0
    %v2387 = vadd.f32 %v1576, %v2386
    %v2388 = vpop.f32.mrf.mxu0
    %2389 = vdwg.mxu0
    %2390 = vmatpush.bf16.msra.mxu0 %v2028
    %2391 = vmatpush.bf16.msra.mxu0 %v2024
    %2392 = vmatpush.bf16.msra.mxu0 %v2020
    %2393 = vmatpush.bf16.msra.mxu0 %v2016
    %2394 = vmatpush.bf16.msra.mxu0 %v2012
    %2395 = vmatpush.bf16.msra.mxu0 %v2008
    %2396 = vmatpush.bf16.msra.mxu0 %v2004
    %2397 = vmatpush.bf16.msra.mxu0 %v2000
    %2398 = vmatmul.bf16.gmra.mxu0 %v1440
    %v2399 = vpop.f32.mrf.mxu0
    %v2400 = vadd.f32 %v2387, %v2399
    %v2401 = vpop.f32.mrf.mxu0
    %2402 = vdwg.mxu0
    %2403 = vmatpush.bf16.msra.mxu0 %v2060
    %2404 = vmatpush.bf16.msra.mxu0 %v2056
    %2405 = vmatpush.bf16.msra.mxu0 %v2052
    %2406 = vmatpush.bf16.msra.mxu0 %v2048
    %2407 = vmatpush.bf16.msra.mxu0 %v2044
    %2408 = vmatpush.bf16.msra.mxu0 %v2040
    %2409 = vmatpush.bf16.msra.mxu0 %v2036
    %2410 = vmatpush.bf16.msra.mxu0 %v2032
    %2411 = vmatmul.bf16.gmra.mxu0 %v1441
    %v2412 = vpop.f32.mrf.mxu0
    %v2413 = vadd.f32 %v2400, %v2412
    %v2414 = vpop.f32.mrf.mxu0
    %2415 = vdwg.mxu0
    %2416 = vmatpush.bf16.msra.mxu0 %v2092
    %2417 = vmatpush.bf16.msra.mxu0 %v2088
    %2418 = vmatpush.bf16.msra.mxu0 %v2084
    %2419 = vmatpush.bf16.msra.mxu0 %v2080
    %2420 = vmatpush.bf16.msra.mxu0 %v2076
    %2421 = vmatpush.bf16.msra.mxu0 %v2072
    %2422 = vmatpush.bf16.msra.mxu0 %v2068
    %2423 = vmatpush.bf16.msra.mxu0 %v2064
    %2424 = vmatmul.bf16.gmra.mxu0 %v1442
    %v2425 = vpop.f32.mrf.mxu0
    %v2426 = vadd.f32 %v2413, %v2425
    %v2427 = vpop.f32.mrf.mxu0
    %2428 = vdwg.mxu0
    %v2429 = vmax.f32 %v2270, 0.0
    %v2430 = vmax.f32 %v2322, 0.0
    %v2431 = vmax.f32 %v2374, 0.0
    %v2432 = vmax.f32 %v2426, 0.0
    %v2437 = vrot.slane %v2430, 6
    %v2438 = vrot.slane %v2431, 4
    %v2439 = vrot.slane %v2432, 2
    %v2440 = vsel %vm403, %v2429, %v2437
    %v2441 = vsel %vm405, %v2438, %v2439
    %v2442 = vsel %vm407, %v2440, %v2441
    %2444 = vst [vmem:[#allocation2] sm:$0xff] %v2442
    %v2445 = vld [vmem:[#allocation2] sm:$0xff]
    %2447 = vst [vmem:[#allocation1] ss:$4 sm:$0xff] %v2445
    %v2448 = vld.sshfl [vmem:[#allocation1] sm:$0xff pattern:$0x73625140]
    %v2449 = vld.sshfl [vmem:[#allocation1 + $0x8] sm:$0xff pattern:$0x73625140]
    %v2450 = vld.sshfl [vmem:[#allocation1 + $0x10] sm:$0xff pattern:$0x73625140]
    %v2451 = vld.sshfl [vmem:[#allocation1 + $0x18] sm:$0xff pattern:$0x73625140]
    %v2456 = vpack.c.bf16 %v2448, %v2448
    %v2457 = vpack.c.bf16 %v2449, %v2449
    %v2458 = vpack.c.bf16 %v2450, %v2450
    %v2459 = vpack.c.bf16 %v2451, %v2451
    %v2460 = vld [vmem:[#allocation14] sm:$0xf]
    %v2461 = vld [vmem:[#allocation14 + $0x4] sm:$0xf]
    %v2462 = vld [vmem:[#allocation14 + $0x8] sm:$0xf]
    %v2463 = vld [vmem:[#allocation14 + $0xc] sm:$0xf]
    %v2464 = vld [vmem:[#allocation14 + $0x10] sm:$0xf]
    %v2465 = vld [vmem:[#allocation14 + $0x14] sm:$0xf]
    %v2466 = vld [vmem:[#allocation14 + $0x18] sm:$0xf]
    %v2467 = vld [vmem:[#allocation14 + $0x1c] sm:$0xf]
    %v2468 = vld [vmem:[#allocation14 + $0x20] sm:$0xf]
    %v2469 = vld [vmem:[#allocation14 + $0x24] sm:$0xf]
    %v2470 = vld [vmem:[#allocation14 + $0x28] sm:$0xf]
    %v2471 = vld [vmem:[#allocation14 + $0x2c] sm:$0xf]
    %v2472 = vld [vmem:[#allocation14 + $0x30] sm:$0xf]
    %v2473 = vld [vmem:[#allocation14 + $0x34] sm:$0xf]
    %v2474 = vld [vmem:[#allocation14 + $0x38] sm:$0xf]
    %v2475 = vld [vmem:[#allocation14 + $0x3c] sm:$0xf]
    %v2476 = vld [vmem:[#allocation14 + $0x40] sm:$0xf]
    %v2477 = vld [vmem:[#allocation14 + $0x44] sm:$0xf]
    %v2478 = vld [vmem:[#allocation14 + $0x48] sm:$0xf]
    %v2479 = vld [vmem:[#allocation14 + $0x4c] sm:$0xf]
    %v2480 = vld [vmem:[#allocation14 + $0x50] sm:$0xf]
    %v2481 = vld [vmem:[#allocation14 + $0x54] sm:$0xf]
    %v2482 = vld [vmem:[#allocation14 + $0x58] sm:$0xf]
    %v2483 = vld [vmem:[#allocation14 + $0x5c] sm:$0xf]
    %v2484 = vld [vmem:[#allocation14 + $0x60] sm:$0xf]
    %v2485 = vld [vmem:[#allocation14 + $0x64] sm:$0xf]
    %v2486 = vld [vmem:[#allocation14 + $0x68] sm:$0xf]
    %v2487 = vld [vmem:[#allocation14 + $0x6c] sm:$0xf]
    %v2488 = vld [vmem:[#allocation14 + $0x70] sm:$0xf]
    %v2489 = vld [vmem:[#allocation14 + $0x74] sm:$0xf]
    %v2490 = vld [vmem:[#allocation14 + $0x78] sm:$0xf]
    %v2491 = vld [vmem:[#allocation14 + $0x7c] sm:$0xf]
    %v2492 = vld [vmem:[#allocation14 + $0x80] sm:$0xf]
    %v2493 = vld [vmem:[#allocation14 + $0x84] sm:$0xf]
    %v2494 = vld [vmem:[#allocation14 + $0x88] sm:$0xf]
    %v2495 = vld [vmem:[#allocation14 + $0x8c] sm:$0xf]
    %v2496 = vld [vmem:[#allocation14 + $0x90] sm:$0xf]
    %v2497 = vld [vmem:[#allocation14 + $0x94] sm:$0xf]
    %v2498 = vld [vmem:[#allocation14 + $0x98] sm:$0xf]
    %v2499 = vld [vmem:[#allocation14 + $0x9c] sm:$0xf]
    %v2500 = vld [vmem:[#allocation14 + $0xa0] sm:$0xf]
    %v2501 = vld [vmem:[#allocation14 + $0xa4] sm:$0xf]
    %v2502 = vld [vmem:[#allocation14 + $0xa8] sm:$0xf]
    %v2503 = vld [vmem:[#allocation14 + $0xac] sm:$0xf]
    %v2504 = vld [vmem:[#allocation14 + $0xb0] sm:$0xf]
    %v2505 = vld [vmem:[#allocation14 + $0xb4] sm:$0xf]
    %v2506 = vld [vmem:[#allocation14 + $0xb8] sm:$0xf]
    %v2507 = vld [vmem:[#allocation14 + $0xbc] sm:$0xf]
    %v2508 = vld [vmem:[#allocation14 + $0xc0] sm:$0xf]
    %v2509 = vld [vmem:[#allocation14 + $0xc4] sm:$0xf]
    %v2510 = vld [vmem:[#allocation14 + $0xc8] sm:$0xf]
    %v2511 = vld [vmem:[#allocation14 + $0xcc] sm:$0xf]
    %v2512 = vld [vmem:[#allocation14 + $0xd0] sm:$0xf]
    %v2513 = vld [vmem:[#allocation14 + $0xd4] sm:$0xf]
    %v2514 = vld [vmem:[#allocation14 + $0xd8] sm:$0xf]
    %v2515 = vld [vmem:[#allocation14 + $0xdc] sm:$0xf]
    %v2516 = vld [vmem:[#allocation14 + $0xe0] sm:$0xf]
    %v2517 = vld [vmem:[#allocation14 + $0xe4] sm:$0xf]
    %v2518 = vld [vmem:[#allocation14 + $0xe8] sm:$0xf]
    %v2519 = vld [vmem:[#allocation14 + $0xec] sm:$0xf]
    %v2520 = vld [vmem:[#allocation14 + $0xf0] sm:$0xf]
    %v2521 = vld [vmem:[#allocation14 + $0xf4] sm:$0xf]
    %v2522 = vld [vmem:[#allocation14 + $0xf8] sm:$0xf]
    %v2523 = vld [vmem:[#allocation14 + $0xfc] sm:$0xf]
    %v2524 = vld [vmem:[%s8] sm:$0x1]
    %v2526 = vperm.slane %v2524, 0
    %v2592 = vunpack.c.l.b16 %v2460
    %v2593 = vunpack.c.l.b16 %v2461
    %v2594 = vunpack.c.l.b16 %v2462
    %v2595 = vunpack.c.l.b16 %v2463
    %v2596 = vunpack.c.l.b16 %v2464
    %v2597 = vunpack.c.l.b16 %v2465
    %v2598 = vunpack.c.l.b16 %v2466
    %v2599 = vunpack.c.l.b16 %v2467
    %v2600 = vunpack.c.l.b16 %v2468
    %v2601 = vunpack.c.l.b16 %v2469
    %v2602 = vunpack.c.l.b16 %v2470
    %v2603 = vunpack.c.l.b16 %v2471
    %v2604 = vunpack.c.l.b16 %v2472
    %v2605 = vunpack.c.l.b16 %v2473
    %v2606 = vunpack.c.l.b16 %v2474
    %v2607 = vunpack.c.l.b16 %v2475
    %v2608 = vunpack.c.l.b16 %v2476
    %v2609 = vunpack.c.l.b16 %v2477
    %v2610 = vunpack.c.l.b16 %v2478
    %v2611 = vunpack.c.l.b16 %v2479
    %v2612 = vunpack.c.l.b16 %v2480
    %v2613 = vunpack.c.l.b16 %v2481
    %v2614 = vunpack.c.l.b16 %v2482
    %v2615 = vunpack.c.l.b16 %v2483
    %v2616 = vunpack.c.l.b16 %v2484
    %v2617 = vunpack.c.l.b16 %v2485
    %v2618 = vunpack.c.l.b16 %v2486
    %v2619 = vunpack.c.l.b16 %v2487
    %v2620 = vunpack.c.l.b16 %v2488
    %v2621 = vunpack.c.l.b16 %v2489
    %v2622 = vunpack.c.l.b16 %v2490
    %v2623 = vunpack.c.l.b16 %v2491
    %v2624 = vunpack.c.l.b16 %v2492
    %v2625 = vunpack.c.l.b16 %v2493
    %v2626 = vunpack.c.l.b16 %v2494
    %v2627 = vunpack.c.l.b16 %v2495
    %v2628 = vunpack.c.l.b16 %v2496
    %v2629 = vunpack.c.l.b16 %v2497
    %v2630 = vunpack.c.l.b16 %v2498
    %v2631 = vunpack.c.l.b16 %v2499
    %v2632 = vunpack.c.l.b16 %v2500
    %v2633 = vunpack.c.l.b16 %v2501
    %v2634 = vunpack.c.l.b16 %v2502
    %v2635 = vunpack.c.l.b16 %v2503
    %v2636 = vunpack.c.l.b16 %v2504
    %v2637 = vunpack.c.l.b16 %v2505
    %v2638 = vunpack.c.l.b16 %v2506
    %v2639 = vunpack.c.l.b16 %v2507
    %v2640 = vunpack.c.l.b16 %v2508
    %v2641 = vunpack.c.l.b16 %v2509
    %v2642 = vunpack.c.l.b16 %v2510
    %v2643 = vunpack.c.l.b16 %v2511
    %v2644 = vunpack.c.l.b16 %v2512
    %v2645 = vunpack.c.l.b16 %v2513
    %v2646 = vunpack.c.l.b16 %v2514
    %v2647 = vunpack.c.l.b16 %v2515
    %v2648 = vunpack.c.l.b16 %v2516
    %v2649 = vunpack.c.l.b16 %v2517
    %v2650 = vunpack.c.l.b16 %v2518
    %v2651 = vunpack.c.l.b16 %v2519
    %v2652 = vunpack.c.l.b16 %v2520
    %v2653 = vunpack.c.l.b16 %v2521
    %v2654 = vunpack.c.l.b16 %v2522
    %v2655 = vunpack.c.l.b16 %v2523
    %v2656 = vpack.c.b16 %v2593, %v2592
    %v2657 = vpack.c.b16 %v2595, %v2594
    %v2658 = vpack.c.b16 %v2597, %v2596
    %v2659 = vpack.c.b16 %v2599, %v2598
    %v2660 = vpack.c.b16 %v2601, %v2600
    %v2661 = vpack.c.b16 %v2603, %v2602
    %v2662 = vpack.c.b16 %v2605, %v2604
    %v2663 = vpack.c.b16 %v2607, %v2606
    %v2664 = vpack.c.b16 %v2609, %v2608
    %v2665 = vpack.c.b16 %v2611, %v2610
    %v2666 = vpack.c.b16 %v2613, %v2612
    %v2667 = vpack.c.b16 %v2615, %v2614
    %v2668 = vpack.c.b16 %v2617, %v2616
    %v2669 = vpack.c.b16 %v2619, %v2618
    %v2670 = vpack.c.b16 %v2621, %v2620
    %v2671 = vpack.c.b16 %v2623, %v2622
    %v2672 = vpack.c.b16 %v2625, %v2624
    %v2673 = vpack.c.b16 %v2627, %v2626
    %v2674 = vpack.c.b16 %v2629, %v2628
    %v2675 = vpack.c.b16 %v2631, %v2630
    %v2676 = vpack.c.b16 %v2633, %v2632
    %v2677 = vpack.c.b16 %v2635, %v2634
    %v2678 = vpack.c.b16 %v2637, %v2636
    %v2679 = vpack.c.b16 %v2639, %v2638
    %v2680 = vpack.c.b16 %v2641, %v2640
    %v2681 = vpack.c.b16 %v2643, %v2642
    %v2682 = vpack.c.b16 %v2645, %v2644
    %v2683 = vpack.c.b16 %v2647, %v2646
    %v2684 = vpack.c.b16 %v2649, %v2648
    %v2685 = vpack.c.b16 %v2651, %v2650
    %v2686 = vpack.c.b16 %v2653, %v2652
    %v2687 = vpack.c.b16 %v2655, %v2654
    %2720 = vmatpush.bf16.msra.mxu0 %v2663
    %2721 = vmatpush.bf16.msra.mxu0 %v2662
    %2722 = vmatpush.bf16.msra.mxu0 %v2661
    %2723 = vmatpush.bf16.msra.mxu0 %v2660
    %2724 = vmatpush.bf16.msra.mxu0 %v2659
    %2725 = vmatpush.bf16.msra.mxu0 %v2658
    %2726 = vmatpush.bf16.msra.mxu0 %v2657
    %2727 = vmatpush.bf16.msra.mxu0 %v2656
    %2728 = vmatmul.bf16.gmra.mxu0 %v2456
    %v2729 = vpop.f32.mrf.mxu0
    %v2730 = vadd.f32 %v2526, %v2729
    %v2731 = vpop.f32.mrf.mxu0
    %2732 = vdwg.mxu0
    %2733 = vmatpush.bf16.msra.mxu0 %v2671
    %2734 = vmatpush.bf16.msra.mxu0 %v2670
    %2735 = vmatpush.bf16.msra.mxu0 %v2669
    %2736 = vmatpush.bf16.msra.mxu0 %v2668
    %2737 = vmatpush.bf16.msra.mxu0 %v2667
    %2738 = vmatpush.bf16.msra.mxu0 %v2666
    %2739 = vmatpush.bf16.msra.mxu0 %v2665
    %2740 = vmatpush.bf16.msra.mxu0 %v2664
    %2741 = vmatmul.bf16.gmra.mxu0 %v2457
    %v2742 = vpop.f32.mrf.mxu0
    %v2743 = vadd.f32 %v2730, %v2742
    %v2744 = vpop.f32.mrf.mxu0
    %2745 = vdwg.mxu0
    %2746 = vmatpush.bf16.msra.mxu0 %v2679
    %2747 = vmatpush.bf16.msra.mxu0 %v2678
    %2748 = vmatpush.bf16.msra.mxu0 %v2677
    %2749 = vmatpush.bf16.msra.mxu0 %v2676
    %2750 = vmatpush.bf16.msra.mxu0 %v2675
    %2751 = vmatpush.bf16.msra.mxu0 %v2674
    %2752 = vmatpush.bf16.msra.mxu0 %v2673
    %2753 = vmatpush.bf16.msra.mxu0 %v2672
    %2754 = vmatmul.bf16.gmra.mxu0 %v2458
    %v2755 = vpop.f32.mrf.mxu0
    %v2756 = vadd.f32 %v2743, %v2755
    %v2757 = vpop.f32.mrf.mxu0
    %2758 = vdwg.mxu0
    %2759 = vmatpush.bf16.msra.mxu0 %v2687
    %2760 = vmatpush.bf16.msra.mxu0 %v2686
    %2761 = vmatpush.bf16.msra.mxu0 %v2685
    %2762 = vmatpush.bf16.msra.mxu0 %v2684
    %2763 = vmatpush.bf16.msra.mxu0 %v2683
    %2764 = vmatpush.bf16.msra.mxu0 %v2682
    %2765 = vmatpush.bf16.msra.mxu0 %v2681
    %2766 = vmatpush.bf16.msra.mxu0 %v2680
    %2767 = vmatmul.bf16.gmra.mxu0 %v2459
    %v2768 = vpop.f32.mrf.mxu0
    %v2769 = vadd.f32 %v2756, %v2768
    %v2770 = vpop.f32.mrf.mxu0
    %2771 = vdwg.mxu0
    %2772 = vst [vmem:[#allocation15] sm:$0x3] %v2769
    // Predicated region
    $region66: #{tpu_custom_call.1} parent=1 // pred_check
      _
    $region67: #{tpu_custom_call.1} parent=1 // pred_check_branch
      %2774 = sbr.rel (0) target = $region69
    $region68: #{tpu_custom_call.1} parent=1 // pred_region
      %2776 = vsyncadd [#allocation5], 0
      %s2778 = sshll.u32 [#allocation15], 4
      %s2779 = int_to_ptr.vmem [resolvable:$true] %s2778
      %s2780 = sshll.u32 %s9, 4
      %s2781 = int_to_ptr.hbm [resolvable:$true] %s2780
      %2783 = dma.vmem_to_hbm [thread:$0]  %s2779, 32, %s2781, [#allocation5]
    $region69: #{tpu_custom_call.1} parent=1 // pred_fallthru
      _
    // Predicated region
    $region70: #{tpu_custom_call.1} parent=1 // pred_check
      _
    $region71: #{tpu_custom_call.1} parent=1 // pred_check_branch
      %2785 = sbr.rel (0) target = $region73
    $region72: #{tpu_custom_call.1} parent=1 // pred_region
      %2787 = dma.done [#allocation5], 32
    $region73: #{tpu_custom_call.1} parent=1 // pred_fallthru
      _
    %2788 = vsyncpa [#allocation4], 1
    %2789 = vsyncpa [#allocation7], 1
    %2790 = vsyncpa [#allocation10], 1
    %2791 = vsyncpa [#allocation13], 1
    %2792 = vsyncpa [#allocation5], 1

// kernel: tpu_custom_call.1
$region0: #{tpu_custom_call.1}
  #allocation0 [shape = 'u32[]', space=smem, size = 0x4, offset = 0x4, fixed_abs, tag = 'smem constant byte address 0x4 - core index']
  #allocation1 [shape = 'u32[72,128]{1,0:T(1,128)}', space=vmem, size = 0x9000, scoped, tag = 'internal scratch']
  #allocation2 [shape = 'f32[2,512]{1,0:T(2,128)}', space=vmem, size = 0x1000, scoped, tag = 'scratch operand']
  %s0 = inlined_call_operand.hbm [shape: f32[2,128], index: 0, kind: input, shape index: {}]
  %s1 = inlined_call_operand.hbm [shape: bf16[128,512], index: 1, kind: input, shape index: {}]
  %s2 = inlined_call_operand.hbm [shape: f32[1,512], index: 2, kind: input, shape index: {}]
  %s3 = inlined_call_operand.hbm [shape: bf16[512,512], index: 3, kind: input, shape index: {}]
  %s4 = inlined_call_operand.hbm [shape: f32[1,512], index: 4, kind: input, shape index: {}]
  %s5 = inlined_call_operand.hbm [shape: bf16[512,512], index: 5, kind: input, shape index: {}]
  %s6 = inlined_call_operand.vmem [shape: f32[1,512], index: 6, kind: input, shape index: {}]
  %s7 = inlined_call_operand.hbm [shape: bf16[512,128], index: 7, kind: input, shape index: {}]
  %s8 = inlined_call_operand.vmem [shape: f32[1,128], index: 8, kind: input, shape index: {}]
  %s9 = inlined_call_operand.hbm [shape: f32[2,128], index: 9, kind: output, shape index: {}]
  %s10 = sld [smem:[#allocation0]]
  $region74: #{tpu_custom_call.1} parent=0
    _
  %s12 = ssub.s32 1, %s10
  %s13 = scalar_select 0, %s12, %s10
  $region1: #{tpu_custom_call.1} parent=0
    #allocation3 [shape = 'u8[1024]{0}', space=vmem, size = 0x400, scoped, tag = 'input window, operand 0, single buffered']
    #allocation4 [shape = 's32[1]{0}', space=sflag, size = 0x4, scoped, tag = 'scoped memory for tpu_custom_call.1']
    #allocation5 [shape = 's32[1]{0}', space=sflag, size = 0x4, scoped, tag = 'scoped memory for tpu_custom_call.1']
    #allocation6 [shape = 'u8[131072]{0}', space=vmem, size = 0x20000, scoped, tag = 'input window, operand 1, single buffered']
    #allocation7 [shape = 's32[1]{0}', space=sflag, size = 0x4, scoped, tag = 'scoped memory for tpu_custom_call.1']
    #allocation8 [shape = 'u8[2048]{0}', space=vmem, size = 0x800, scoped, tag = 'input window, operand 2, single buffered']
    #allocation9 [shape = 'u8[524288]{0}', space=vmem, size = 0x80000, scoped, tag = 'input window, operand 3, single buffered']
    #allocation10 [shape = 's32[1]{0}', space=sflag, size = 0x4, scoped, tag = 'scoped memory for tpu_custom_call.1']
    #allocation11 [shape = 'u8[2048]{0}', space=vmem, size = 0x800, scoped, tag = 'input window, operand 4, single buffered']
    #allocation12 [shape = 'u8[524288]{0}', space=vmem, size = 0x80000, scoped, tag = 'input window, operand 5, single buffered']
    #allocation13 [shape = 's32[1]{0}', space=sflag, size = 0x4, scoped, tag = 'scoped memory for tpu_custom_call.1']
    #allocation14 [shape = 'u8[131072]{0}', space=vmem, size = 0x20000, scoped, tag = 'input window, operand 7, single buffered']
    #allocation15 [shape = 'u8[1024]{0}', space=vmem, size = 0x400, scoped, tag = 'output window, operand 0, single buffered']
    %14 = vsyncpa [#allocation4], 0
    %15 = vsyncpa [#allocation7], 0
    %16 = vsyncpa [#allocation10], 0
    %17 = vsyncpa [#allocation13], 0
    %18 = vsyncpa [#allocation5], 0
    // Predicated region
    $region2: #{tpu_custom_call.1} parent=1 // pred_check
      _
    $region3: #{tpu_custom_call.1} parent=1 // pred_check_branch
      %20 = sbr.rel (0) target = $region5
    $region4: #{tpu_custom_call.1} parent=1 // pred_region
      %22 = vsyncadd [#allocation4], 0
      %s24 = sshll.u32 %s0, 4
      %s25 = int_to_ptr.hbm [resolvable:$true] %s24
      %s26 = sshll.u32 [#allocation3], 4
      %s27 = int_to_ptr.vmem [resolvable:$true] %s26
      %29 = dma.hbm_to_vmem [thread:$0]  %s25, 32, %s27, [#allocation4]
    $region5: #{tpu_custom_call.1} parent=1 // pred_fallthru
      _
    // Predicated region
    $region6: #{tpu_custom_call.1} parent=1 // pred_check
      _
    $region7: #{tpu_custom_call.1} parent=1 // pred_check_branch
      %31 = sbr.rel (0) target = $region9
    $region8: #{tpu_custom_call.1} parent=1 // pred_region
      %33 = vsyncadd [#allocation7], 0
      %s34 = sshll.u32 %s1, 4
      %s35 = int_to_ptr.hbm [resolvable:$true] %s34
      %s36 = sshll.u32 [#allocation6], 4
      %s37 = int_to_ptr.vmem [resolvable:$true] %s36
      %42 = dma.hbm_to_vmem [thread:$0]  %s35, 4096, %s37, [#allocation7], 256, 256, 16
    $region9: #{tpu_custom_call.1} parent=1 // pred_fallthru
      _
    // Predicated region
    $region10: #{tpu_custom_call.1} parent=1 // pred_check
      _
    $region11: #{tpu_custom_call.1} parent=1 // pred_check_branch
      %44 = sbr.rel (0) target = $region13
    $region12: #{tpu_custom_call.1} parent=1 // pred_region
      %46 = vsyncadd [#allocation7], 0
      %s48 = sshll.u32 %s2, 4
      %s49 = int_to_ptr.hbm [resolvable:$true] %s48
      %s50 = sshll.u32 [#allocation8], 4
      %s51 = int_to_ptr.vmem [resolvable:$true] %s50
      %53 = dma.hbm_to_vmem [thread:$0]  %s49, 64, %s51, [#allocation7]
    $region13: #{tpu_custom_call.1} parent=1 // pred_fallthru
      _
    // Predicated region
    $region14: #{tpu_custom_call.1} parent=1 // pred_check
      _
    $region15: #{tpu_custom_call.1} parent=1 // pred_check_branch
      %55 = sbr.rel (0) target = $region17
    $region16: #{tpu_custom_call.1} parent=1 // pred_region
      %57 = vsyncadd [#allocation10], 0
      %s58 = sshll.u32 %s3, 4
      %s59 = int_to_ptr.hbm [resolvable:$true] %s58
      %s60 = sshll.u32 [#allocation9], 4
      %s61 = int_to_ptr.vmem [resolvable:$true] %s60
      %66 = dma.hbm_to_vmem [thread:$0]  %s59, 16384, %s61, [#allocation10], 256, 256, 16
    $region17: #{tpu_custom_call.1} parent=1 // pred_fallthru
      _
    // Predicated region
    $region18: #{tpu_custom_call.1} parent=1 // pred_check
      _
    $region19: #{tpu_custom_call.1} parent=1 // pred_check_branch
      %68 = sbr.rel (0) target = $region21
    $region20: #{tpu_custom_call.1} parent=1 // pred_region
      %70 = vsyncadd [#allocation10], 0
      %s72 = sshll.u32 %s4, 4
      %s73 = int_to_ptr.hbm [resolvable:$true] %s72
      %s74 = sshll.u32 [#allocation11], 4
      %s75 = int_to_ptr.vmem [resolvable:$true] %s74
      %77 = dma.hbm_to_vmem [thread:$0]  %s73, 64, %s75, [#allocation10]
    $region21: #{tpu_custom_call.1} parent=1 // pred_fallthru
      _
    // Predicated region
    $region22: #{tpu_custom_call.1} parent=1 // pred_check
      _
    $region23: #{tpu_custom_call.1} parent=1 // pred_check_branch
      %79 = sbr.rel (0) target = $region25
    $region24: #{tpu_custom_call.1} parent=1 // pred_region
      %81 = vsyncadd [#allocation13], 0
      %s82 = sshll.u32 %s5, 4
      %s83 = int_to_ptr.hbm [resolvable:$true] %s82
      %s84 = sshll.u32 [#allocation12], 4
      %s85 = int_to_ptr.vmem [resolvable:$true] %s84
      %90 = dma.hbm_to_vmem [thread:$0]  %s83, 16384, %s85, [#allocation13], 256, 256, 16
    $region25: #{tpu_custom_call.1} parent=1 // pred_fallthru
      _
    // Predicated region
    $region26: #{tpu_custom_call.1} parent=1 // pred_check
      _
    $region27: #{tpu_custom_call.1} parent=1 // pred_check_branch
      %92 = sbr.rel (0) target = $region29
    $region28: #{tpu_custom_call.1} parent=1 // pred_region
      _
    $region29: #{tpu_custom_call.1} parent=1 // pred_fallthru
      _
    // Predicated region
    $region30: #{tpu_custom_call.1} parent=1 // pred_check
      _
    $region31: #{tpu_custom_call.1} parent=1 // pred_check_branch
      %94 = sbr.rel (0) target = $region33
    $region32: #{tpu_custom_call.1} parent=1 // pred_region
      %96 = vsyncadd [#allocation13], 0
      %s97 = sshll.u32 %s7, 4
      %s98 = int_to_ptr.hbm [resolvable:$true] %s97
      %s99 = sshll.u32 [#allocation14], 4
      %s100 = int_to_ptr.vmem [resolvable:$true] %s99
      %105 = dma.hbm_to_vmem [thread:$0]  %s98, 4096, %s100, [#allocation13], 64, 64, 4
    $region33: #{tpu_custom_call.1} parent=1 // pred_fallthru
      _
    // Predicated region
    $region34: #{tpu_custom_call.1} parent=1 // pred_check
      _
    $region35: #{tpu_custom_call.1} parent=1 // pred_check_branch
      %107 = sbr.rel (0) target = $region37
    $region36: #{tpu_custom_call.1} parent=1 // pred_region
      _
    $region37: #{tpu_custom_call.1} parent=1 // pred_fallthru
      _
    // Predicated region
    $region38: #{tpu_custom_call.1} parent=1 // pred_check
      _
    $region39: #{tpu_custom_call.1} parent=1 // pred_check_branch
      %109 = sbr.rel (0) target = $region41
    $region40: #{tpu_custom_call.1} parent=1 // pred_region
      %111 = dma.done [#allocation4], 32
    $region41: #{tpu_custom_call.1} parent=1 // pred_fallthru
      _
    // Predicated region
    $region42: #{tpu_custom_call.1} parent=1 // pred_check
      _
    $region43: #{tpu_custom_call.1} parent=1 // pred_check_branch
      %113 = sbr.rel (0) target = $region45
    $region44: #{tpu_custom_call.1} parent=1 // pred_region
      %115 = dma.done [#allocation7], 4096
    $region45: #{tpu_custom_call.1} parent=1 // pred_fallthru
      _
    // Predicated region
    $region46: #{tpu_custom_call.1} parent=1 // pred_check
      _
    $region47: #{tpu_custom_call.1} parent=1 // pred_check_branch
      %117 = sbr.rel (0) target = $region49
    $region48: #{tpu_custom_call.1} parent=1 // pred_region
      %119 = dma.done [#allocation7], 64
    $region49: #{tpu_custom_call.1} parent=1 // pred_fallthru
      _
    // Predicated region
    $region50: #{tpu_custom_call.1} parent=1 // pred_check
      _
    $region51: #{tpu_custom_call.1} parent=1 // pred_check_branch
      %121 = sbr.rel (0) target = $region53
    $region52: #{tpu_custom_call.1} parent=1 // pred_region
      %123 = dma.done [#allocation10], 16384
    $region53: #{tpu_custom_call.1} parent=1 // pred_fallthru
      _
    // Predicated region
    $region54: #{tpu_custom_call.1} parent=1 // pred_check
      _
    $region55: #{tpu_custom_call.1} parent=1 // pred_check_branch
      %125 = sbr.rel (0) target = $region57
    $region56: #{tpu_custom_call.1} parent=1 // pred_region
      %127 = dma.done [#allocation10], 64
    $region57: #{tpu_custom_call.1} parent=1 // pred_fallthru
      _
    // Predicated region
    $region58: #{tpu_custom_call.1} parent=1 // pred_check
      _
    $region59: #{tpu_custom_call.1} parent=1 // pred_check_branch
      %129 = sbr.rel (0) target = $region61
    $region60: #{tpu_custom_call.1} parent=1 // pred_region
      %131 = dma.done [#allocation13], 16384
    $region61: #{tpu_custom_call.1} parent=1 // pred_fallthru
      _
    // Predicated region
    $region62: #{tpu_custom_call.1} parent=1 // pred_check
      _
    $region63: #{tpu_custom_call.1} parent=1 // pred_check_branch
      %133 = sbr.rel (0) target = $region65
    $region64: #{tpu_custom_call.1} parent=1 // pred_region
      %135 = dma.done [#allocation13], 4096
    $region65: #{tpu_custom_call.1} parent=1 // pred_fallthru
      _
    %v136 = vld [vmem:[#allocation3] sm:$0x3]
    %v137 = vpack.c.bf16 %v136, %v136
    %v138 = vld [vmem:[#allocation6] sm:$0xff]
    %v139 = vld [vmem:[#allocation6 + $0x8] sm:$0xff]
    %v140 = vld [vmem:[#allocation6 + $0x10] sm:$0xff]
    %v141 = vld [vmem:[#allocation6 + $0x18] sm:$0xff]
    %v142 = vld [vmem:[#allocation6 + $0x20] sm:$0xff]
    %v143 = vld [vmem:[#allocation6 + $0x28] sm:$0xff]
    %v144 = vld [vmem:[#allocation6 + $0x30] sm:$0xff]
    %v145 = vld [vmem:[#allocation6 + $0x38] sm:$0xff]
    %v146 = vld [vmem:[#allocation6 + $0x40] sm:$0xff]
    %v147 = vld [vmem:[#allocation6 + $0x48] sm:$0xff]
    %v148 = vld [vmem:[#allocation6 + $0x50] sm:$0xff]
    %v149 = vld [vmem:[#allocation6 + $0x58] sm:$0xff]
    %v150 = vld [vmem:[#allocation6 + $0x60] sm:$0xff]
    %v151 = vld [vmem:[#allocation6 + $0x68] sm:$0xff]
    %v152 = vld [vmem:[#allocation6 + $0x70] sm:$0xff]
    %v153 = vld [vmem:[#allocation6 + $0x78] sm:$0xff]
    %v154 = vld [vmem:[#allocation6 + $0x80] sm:$0xff]
    %v155 = vld [vmem:[#allocation6 + $0x88] sm:$0xff]
    %v156 = vld [vmem:[#allocation6 + $0x90] sm:$0xff]
    %v157 = vld [vmem:[#allocation6 + $0x98] sm:$0xff]
    %v158 = vld [vmem:[#allocation6 + $0xa0] sm:$0xff]
    %v159 = vld [vmem:[#allocation6 + $0xa8] sm:$0xff]
    %v160 = vld [vmem:[#allocation6 + $0xb0] sm:$0xff]
    %v161 = vld [vmem:[#allocation6 + $0xb8] sm:$0xff]
    %v162 = vld [vmem:[#allocation6 + $0xc0] sm:$0xff]
    %v163 = vld [vmem:[#allocation6 + $0xc8] sm:$0xff]
    %v164 = vld [vmem:[#allocation6 + $0xd0] sm:$0xff]
    %v165 = vld [vmem:[#allocation6 + $0xd8] sm:$0xff]
    %v166 = vld [vmem:[#allocation6 + $0xe0] sm:$0xff]
    %v167 = vld [vmem:[#allocation6 + $0xe8] sm:$0xff]
    %v168 = vld [vmem:[#allocation6 + $0xf0] sm:$0xff]
    %v169 = vld [vmem:[#allocation6 + $0xf8] sm:$0xff]
    %v170 = vld [vmem:[#allocation8] sm:$0xf]
    %v172 = vperm.slane %v170, 0
    %v173 = vperm.slane %v170, 1
    %v174 = vperm.slane %v170, 2
    %v175 = vperm.slane %v170, 3
    %v212 = vunpack.c.l.b16 %v138
    %v213 = vunpack.c.h.b16 %v138
    %v214 = vunpack.c.l.b16 %v139
    %v215 = vunpack.c.h.b16 %v139
    %v216 = vunpack.c.l.b16 %v140
    %v217 = vunpack.c.h.b16 %v140
    %v218 = vunpack.c.l.b16 %v141
    %v219 = vunpack.c.h.b16 %v141
    %v220 = vunpack.c.l.b16 %v142
    %v221 = vunpack.c.h.b16 %v142
    %v222 = vunpack.c.l.b16 %v143
    %v223 = vunpack.c.h.b16 %v143
    %v224 = vunpack.c.l.b16 %v144
    %v225 = vunpack.c.h.b16 %v144
    %v226 = vunpack.c.l.b16 %v145
    %v227 = vunpack.c.h.b16 %v145
    %v228 = vunpack.c.l.b16 %v146
    %v229 = vunpack.c.h.b16 %v146
    %v230 = vunpack.c.l.b16 %v147
    %v231 = vunpack.c.h.b16 %v147
    %v232 = vunpack.c.l.b16 %v148
    %v233 = vunpack.c.h.b16 %v148
    %v234 = vunpack.c.l.b16 %v149
    %v235 = vunpack.c.h.b16 %v149
    %v236 = vunpack.c.l.b16 %v150
    %v237 = vunpack.c.h.b16 %v150
    %v238 = vunpack.c.l.b16 %v151
    %v239 = vunpack.c.h.b16 %v151
    %v240 = vunpack.c.l.b16 %v152
    %v241 = vunpack.c.h.b16 %v152
    %v242 = vunpack.c.l.b16 %v153
    %v243 = vunpack.c.h.b16 %v153
    %v244 = vunpack.c.l.b16 %v154
    %v245 = vunpack.c.h.b16 %v154
    %v246 = vunpack.c.l.b16 %v155
    %v247 = vunpack.c.h.b16 %v155
    %v248 = vunpack.c.l.b16 %v156
    %v249 = vunpack.c.h.b16 %v156
    %v250 = vunpack.c.l.b16 %v157
    %v251 = vunpack.c.h.b16 %v157
    %v252 = vunpack.c.l.b16 %v158
    %v253 = vunpack.c.h.b16 %v158
    %v254 = vunpack.c.l.b16 %v159
    %v255 = vunpack.c.h.b16 %v159
    %v256 = vunpack.c.l.b16 %v160
    %v257 = vunpack.c.h.b16 %v160
    %v258 = vunpack.c.l.b16 %v161
    %v259 = vunpack.c.h.b16 %v161
    %v260 = vunpack.c.l.b16 %v162
    %v261 = vunpack.c.h.b16 %v162
    %v262 = vunpack.c.l.b16 %v163
    %v263 = vunpack.c.h.b16 %v163
    %v264 = vunpack.c.l.b16 %v164
    %v265 = vunpack.c.h.b16 %v164
    %v266 = vunpack.c.l.b16 %v165
    %v267 = vunpack.c.h.b16 %v165
    %v268 = vunpack.c.l.b16 %v166
    %v269 = vunpack.c.h.b16 %v166
    %v270 = vunpack.c.l.b16 %v167
    %v271 = vunpack.c.h.b16 %v167
    %v272 = vunpack.c.l.b16 %v168
    %v273 = vunpack.c.h.b16 %v168
    %v274 = vunpack.c.l.b16 %v169
    %v275 = vunpack.c.h.b16 %v169
    %v276 = vpack.c.b16 %v216, %v212
    %v277 = vpack.c.b16 %v217, %v213
    %v278 = vpack.c.b16 %v218, %v214
    %v279 = vpack.c.b16 %v219, %v215
    %v280 = vpack.c.b16 %v224, %v220
    %v281 = vpack.c.b16 %v225, %v221
    %v282 = vpack.c.b16 %v226, %v222
    %v283 = vpack.c.b16 %v227, %v223
    %v284 = vpack.c.b16 %v232, %v228
    %v285 = vpack.c.b16 %v233, %v229
    %v286 = vpack.c.b16 %v234, %v230
    %v287 = vpack.c.b16 %v235, %v231
    %v288 = vpack.c.b16 %v240, %v236
    %v289 = vpack.c.b16 %v241, %v237
    %v290 = vpack.c.b16 %v242, %v238
    %v291 = vpack.c.b16 %v243, %v239
    %v292 = vpack.c.b16 %v248, %v244
    %v293 = vpack.c.b16 %v249, %v245
    %v294 = vpack.c.b16 %v250, %v246
    %v295 = vpack.c.b16 %v251, %v247
    %v296 = vpack.c.b16 %v256, %v252
    %v297 = vpack.c.b16 %v257, %v253
    %v298 = vpack.c.b16 %v258, %v254
    %v299 = vpack.c.b16 %v259, %v255
    %v300 = vpack.c.b16 %v264, %v260
    %v301 = vpack.c.b16 %v265, %v261
    %v302 = vpack.c.b16 %v266, %v262
    %v303 = vpack.c.b16 %v267, %v263
    %v304 = vpack.c.b16 %v272, %v268
    %v305 = vpack.c.b16 %v273, %v269
    %v306 = vpack.c.b16 %v274, %v270
    %v307 = vpack.c.b16 %v275, %v271
    %340 = vmatpush.bf16.msra.mxu0 %v304
    %341 = vmatpush.bf16.msra.mxu0 %v300
    %342 = vmatpush.bf16.msra.mxu0 %v296
    %343 = vmatpush.bf16.msra.mxu0 %v292
    %344 = vmatpush.bf16.msra.mxu0 %v288
    %345 = vmatpush.bf16.msra.mxu0 %v284
    %346 = vmatpush.bf16.msra.mxu0 %v280
    %347 = vmatpush.bf16.msra.mxu0 %v276
    %348 = vmatmul.bf16.gmra.mxu0 %v137
    %v349 = vpop.f32.mrf.mxu0
    %v350 = vadd.f32 %v172, %v349
    %v351 = vpop.f32.mrf.mxu0
    %352 = vdwg.mxu0
    %353 = vmatpush.bf16.msra.mxu0 %v305
    %354 = vmatpush.bf16.msra.mxu0 %v301
    %355 = vmatpush.bf16.msra.mxu0 %v297
    %356 = vmatpush.bf16.msra.mxu0 %v293
    %357 = vmatpush.bf16.msra.mxu0 %v289
    %358 = vmatpush.bf16.msra.mxu0 %v285
    %359 = vmatpush.bf16.msra.mxu0 %v281
    %360 = vmatpush.bf16.msra.mxu0 %v277
    %361 = vmatmul.bf16.gmra.mxu0 %v137
    %v362 = vpop.f32.mrf.mxu0
    %v363 = vadd.f32 %v173, %v362
    %v364 = vpop.f32.mrf.mxu0
    %365 = vdwg.mxu0
    %366 = vmatpush.bf16.msra.mxu0 %v306
    %367 = vmatpush.bf16.msra.mxu0 %v302
    %368 = vmatpush.bf16.msra.mxu0 %v298
    %369 = vmatpush.bf16.msra.mxu0 %v294
    %370 = vmatpush.bf16.msra.mxu0 %v290
    %371 = vmatpush.bf16.msra.mxu0 %v286
    %372 = vmatpush.bf16.msra.mxu0 %v282
    %373 = vmatpush.bf16.msra.mxu0 %v278
    %374 = vmatmul.bf16.gmra.mxu0 %v137
    %v375 = vpop.f32.mrf.mxu0
    %v376 = vadd.f32 %v174, %v375
    %v377 = vpop.f32.mrf.mxu0
    %378 = vdwg.mxu0
    %379 = vmatpush.bf16.msra.mxu0 %v307
    %380 = vmatpush.bf16.msra.mxu0 %v303
    %381 = vmatpush.bf16.msra.mxu0 %v299
    %382 = vmatpush.bf16.msra.mxu0 %v295
    %383 = vmatpush.bf16.msra.mxu0 %v291
    %384 = vmatpush.bf16.msra.mxu0 %v287
    %385 = vmatpush.bf16.msra.mxu0 %v283
    %386 = vmatpush.bf16.msra.mxu0 %v279
    %387 = vmatmul.bf16.gmra.mxu0 %v137
    %v388 = vpop.f32.mrf.mxu0
    %v389 = vadd.f32 %v175, %v388
    %v390 = vpop.f32.mrf.mxu0
    %391 = vdwg.mxu0
    %v392 = vmax.f32 %v350, 0.0
    %v393 = vmax.f32 %v363, 0.0
    %v394 = vmax.f32 %v376, 0.0
    %v395 = vmax.f32 %v389, 0.0
    %v400 = vrot.slane %v393, 6
    %v401 = vrot.slane %v394, 4
    %v402 = vrot.slane %v395, 2
    %vm403 = vcmask 1041408
    %v404 = vsel %vm403, %v392, %v400
    %vm405 = vcmask 1045508
    %v406 = vsel %vm405, %v401, %v402
    %vm407 = vcmask 1043456
    %v408 = vsel %vm407, %v404, %v406
    %410 = vst [vmem:[#allocation2] sm:$0xff] %v408
    %v411 = vld [vmem:[#allocation2] sm:$0xff]
    %413 = vst [vmem:[#allocation1] ss:$4 sm:$0xff] %v411
    %v414 = vld.sshfl [vmem:[#allocation1] sm:$0xff pattern:$0x73625140]
    %v415 = vld.sshfl [vmem:[#allocation1 + $0x8] sm:$0xff pattern:$0x73625140]
    %v416 = vld.sshfl [vmem:[#allocation1 + $0x10] sm:$0xff pattern:$0x73625140]
    %v417 = vld.sshfl [vmem:[#allocation1 + $0x18] sm:$0xff pattern:$0x73625140]
    %v422 = vpack.c.bf16 %v414, %v414
    %v423 = vpack.c.bf16 %v415, %v415
    %v424 = vpack.c.bf16 %v416, %v416
    %v425 = vpack.c.bf16 %v417, %v417
    %v426 = vld [vmem:[#allocation9] sm:$0xff]
    %v427 = vld [vmem:[#allocation9 + $0x8] sm:$0xff]
    %v428 = vld [vmem:[#allocation9 + $0x10] sm:$0xff]
    %v429 = vld [vmem:[#allocation9 + $0x18] sm:$0xff]
    %v430 = vld [vmem:[#allocation9 + $0x20] sm:$0xff]
    %v431 = vld [vmem:[#allocation9 + $0x28] sm:$0xff]
    %v432 = vld [vmem:[#allocation9 + $0x30] sm:$0xff]
    %v433 = vld [vmem:[#allocation9 + $0x38] sm:$0xff]
    %v434 = vld [vmem:[#allocation9 + $0x40] sm:$0xff]
    %v435 = vld [vmem:[#allocation9 + $0x48] sm:$0xff]
    %v436 = vld [vmem:[#allocation9 + $0x50] sm:$0xff]
    %v437 = vld [vmem:[#allocation9 + $0x58] sm:$0xff]
    %v438 = vld [vmem:[#allocation9 + $0x60] sm:$0xff]
    %v439 = vld [vmem:[#allocation9 + $0x68] sm:$0xff]
    %v440 = vld [vmem:[#allocation9 + $0x70] sm:$0xff]
    %v441 = vld [vmem:[#allocation9 + $0x78] sm:$0xff]
    %v442 = vld [vmem:[#allocation9 + $0x80] sm:$0xff]
    %v443 = vld [vmem:[#allocation9 + $0x88] sm:$0xff]
    %v444 = vld [vmem:[#allocation9 + $0x90] sm:$0xff]
    %v445 = vld [vmem:[#allocation9 + $0x98] sm:$0xff]
    %v446 = vld [vmem:[#allocation9 + $0xa0] sm:$0xff]
    %v447 = vld [vmem:[#allocation9 + $0xa8] sm:$0xff]
    %v448 = vld [vmem:[#allocation9 + $0xb0] sm:$0xff]
    %v449 = vld [vmem:[#allocation9 + $0xb8] sm:$0xff]
    %v450 = vld [vmem:[#allocation9 + $0xc0] sm:$0xff]
    %v451 = vld [vmem:[#allocation9 + $0xc8] sm:$0xff]
    %v452 = vld [vmem:[#allocation9 + $0xd0] sm:$0xff]
    %v453 = vld [vmem:[#allocation9 + $0xd8] sm:$0xff]
    %v454 = vld [vmem:[#allocation9 + $0xe0] sm:$0xff]
    %v455 = vld [vmem:[#allocation9 + $0xe8] sm:$0xff]
    %v456 = vld [vmem:[#allocation9 + $0xf0] sm:$0xff]
    %v457 = vld [vmem:[#allocation9 + $0xf8] sm:$0xff]
    %v458 = vld [vmem:[#allocation9 + $0x100] sm:$0xff]
    %v459 = vld [vmem:[#allocation9 + $0x108] sm:$0xff]
    %v460 = vld [vmem:[#allocation9 + $0x110] sm:$0xff]
    %v461 = vld [vmem:[#allocation9 + $0x118] sm:$0xff]
    %v462 = vld [vmem:[#allocation9 + $0x120] sm:$0xff]
    %v463 = vld [vmem:[#allocation9 + $0x128] sm:$0xff]
    %v464 = vld [vmem:[#allocation9 + $0x130] sm:$0xff]
    %v465 = vld [vmem:[#allocation9 + $0x138] sm:$0xff]
    %v466 = vld [vmem:[#allocation9 + $0x140] sm:$0xff]
    %v467 = vld [vmem:[#allocation9 + $0x148] sm:$0xff]
    %v468 = vld [vmem:[#allocation9 + $0x150] sm:$0xff]
    %v469 = vld [vmem:[#allocation9 + $0x158] sm:$0xff]
    %v470 = vld [vmem:[#allocation9 + $0x160] sm:$0xff]
    %v471 = vld [vmem:[#allocation9 + $0x168] sm:$0xff]
    %v472 = vld [vmem:[#allocation9 + $0x170] sm:$0xff]
    %v473 = vld [vmem:[#allocation9 + $0x178] sm:$0xff]
    %v474 = vld [vmem:[#allocation9 + $0x180] sm:$0xff]
    %v475 = vld [vmem:[#allocation9 + $0x188] sm:$0xff]
    %v476 = vld [vmem:[#allocation9 + $0x190] sm:$0xff]
    %v477 = vld [vmem:[#allocation9 + $0x198] sm:$0xff]
    %v478 = vld [vmem:[#allocation9 + $0x1a0] sm:$0xff]
    %v479 = vld [vmem:[#allocation9 + $0x1a8] sm:$0xff]
    %v480 = vld [vmem:[#allocation9 + $0x1b0] sm:$0xff]
    %v481 = vld [vmem:[#allocation9 + $0x1b8] sm:$0xff]
    %v482 = vld [vmem:[#allocation9 + $0x1c0] sm:$0xff]
    %v483 = vld [vmem:[#allocation9 + $0x1c8] sm:$0xff]
    %v484 = vld [vmem:[#allocation9 + $0x1d0] sm:$0xff]
    %v485 = vld [vmem:[#allocation9 + $0x1d8] sm:$0xff]
    %v486 = vld [vmem:[#allocation9 + $0x1e0] sm:$0xff]
    %v487 = vld [vmem:[#allocation9 + $0x1e8] sm:$0xff]
    %v488 = vld [vmem:[#allocation9 + $0x1f0] sm:$0xff]
    %v489 = vld [vmem:[#allocation9 + $0x1f8] sm:$0xff]
    %v490 = vld [vmem:[#allocation9 + $0x200] sm:$0xff]
    %v491 = vld [vmem:[#allocation9 + $0x208] sm:$0xff]
    %v492 = vld [vmem:[#allocation9 + $0x210] sm:$0xff]
    %v493 = vld [vmem:[#allocation9 + $0x218] sm:$0xff]
    %v494 = vld [vmem:[#allocation9 + $0x220] sm:$0xff]
    %v495 = vld [vmem:[#allocation9 + $0x228] sm:$0xff]
    %v496 = vld [vmem:[#allocation9 + $0x230] sm:$0xff]
    %v497 = vld [vmem:[#allocation9 + $0x238] sm:$0xff]
    %v498 = vld [vmem:[#allocation9 + $0x240] sm:$0xff]
    %v499 = vld [vmem:[#allocation9 + $0x248] sm:$0xff]
    %v500 = vld [vmem:[#allocation9 + $0x250] sm:$0xff]
    %v501 = vld [vmem:[#allocation9 + $0x258] sm:$0xff]
    %v502 = vld [vmem:[#allocation9 + $0x260] sm:$0xff]
    %v503 = vld [vmem:[#allocation9 + $0x268] sm:$0xff]
    %v504 = vld [vmem:[#allocation9 + $0x270] sm:$0xff]
    %v505 = vld [vmem:[#allocation9 + $0x278] sm:$0xff]
    %v506 = vld [vmem:[#allocation9 + $0x280] sm:$0xff]
    %v507 = vld [vmem:[#allocation9 + $0x288] sm:$0xff]
    %v508 = vld [vmem:[#allocation9 + $0x290] sm:$0xff]
    %v509 = vld [vmem:[#allocation9 + $0x298] sm:$0xff]
    %v510 = vld [vmem:[#allocation9 + $0x2a0] sm:$0xff]
    %v511 = vld [vmem:[#allocation9 + $0x2a8] sm:$0xff]
    %v512 = vld [vmem:[#allocation9 + $0x2b0] sm:$0xff]
    %v513 = vld [vmem:[#allocation9 + $0x2b8] sm:$0xff]
    %v514 = vld [vmem:[#allocation9 + $0x2c0] sm:$0xff]
    %v515 = vld [vmem:[#allocation9 + $0x2c8] sm:$0xff]
    %v516 = vld [vmem:[#allocation9 + $0x2d0] sm:$0xff]
    %v517 = vld [vmem:[#allocation9 + $0x2d8] sm:$0xff]
    %v518 = vld [vmem:[#allocation9 + $0x2e0] sm:$0xff]
    %v519 = vld [vmem:[#allocation9 + $0x2e8] sm:$0xff]
    %v520 = vld [vmem:[#allocation9 + $0x2f0] sm:$0xff]
    %v521 = vld [vmem:[#allocation9 + $0x2f8] sm:$0xff]
    %v522 = vld [vmem:[#allocation9 + $0x300] sm:$0xff]
    %v523 = vld [vmem:[#allocation9 + $0x308] sm:$0xff]
    %v524 = vld [vmem:[#allocation9 + $0x310] sm:$0xff]
    %v525 = vld [vmem:[#allocation9 + $0x318] sm:$0xff]
    %v526 = vld [vmem:[#allocation9 + $0x320] sm:$0xff]
    %v527 = vld [vmem:[#allocation9 + $0x328] sm:$0xff]
    %v528 = vld [vmem:[#allocation9 + $0x330] sm:$0xff]
    %v529 = vld [vmem:[#allocation9 + $0x338] sm:$0xff]
    %v530 = vld [vmem:[#allocation9 + $0x340] sm:$0xff]
    %v531 = vld [vmem:[#allocation9 + $0x348] sm:$0xff]
    %v532 = vld [vmem:[#allocation9 + $0x350] sm:$0xff]
    %v533 = vld [vmem:[#allocation9 + $0x358] sm:$0xff]
    %v534 = vld [vmem:[#allocation9 + $0x360] sm:$0xff]
    %v535 = vld [vmem:[#allocation9 + $0x368] sm:$0xff]
    %v536 = vld [vmem:[#allocation9 + $0x370] sm:$0xff]
    %v537 = vld [vmem:[#allocation9 + $0x378] sm:$0xff]
    %v538 = vld [vmem:[#allocation9 + $0x380] sm:$0xff]
    %v539 = vld [vmem:[#allocation9 + $0x388] sm:$0xff]
    %v540 = vld [vmem:[#allocation9 + $0x390] sm:$0xff]
    %v541 = vld [vmem:[#allocation9 + $0x398] sm:$0xff]
    %v542 = vld [vmem:[#allocation9 + $0x3a0] sm:$0xff]
    %v543 = vld [vmem:[#allocation9 + $0x3a8] sm:$0xff]
    %v544 = vld [vmem:[#allocation9 + $0x3b0] sm:$0xff]
    %v545 = vld [vmem:[#allocation9 + $0x3b8] sm:$0xff]
    %v546 = vld [vmem:[#allocation9 + $0x3c0] sm:$0xff]
    %v547 = vld [vmem:[#allocation9 + $0x3c8] sm:$0xff]
    %v548 = vld [vmem:[#allocation9 + $0x3d0] sm:$0xff]
    %v549 = vld [vmem:[#allocation9 + $0x3d8] sm:$0xff]
    %v550 = vld [vmem:[#allocation9 + $0x3e0] sm:$0xff]
    %v551 = vld [vmem:[#allocation9 + $0x3e8] sm:$0xff]
    %v552 = vld [vmem:[#allocation9 + $0x3f0] sm:$0xff]
    %v553 = vld [vmem:[#allocation9 + $0x3f8] sm:$0xff]
    %v554 = vld [vmem:[#allocation11] sm:$0xf]
    %v556 = vperm.slane %v554, 0
    %v557 = vperm.slane %v554, 1
    %v558 = vperm.slane %v554, 2
    %v559 = vperm.slane %v554, 3
    %v692 = vunpack.c.l.b16 %v426
    %v693 = vunpack.c.h.b16 %v426
    %v694 = vunpack.c.l.b16 %v427
    %v695 = vunpack.c.h.b16 %v427
    %v696 = vunpack.c.l.b16 %v428
    %v697 = vunpack.c.h.b16 %v428
    %v698 = vunpack.c.l.b16 %v429
    %v699 = vunpack.c.h.b16 %v429
    %v700 = vunpack.c.l.b16 %v430
    %v701 = vunpack.c.h.b16 %v430
    %v702 = vunpack.c.l.b16 %v431
    %v703 = vunpack.c.h.b16 %v431
    %v704 = vunpack.c.l.b16 %v432
    %v705 = vunpack.c.h.b16 %v432
    %v706 = vunpack.c.l.b16 %v433
    %v707 = vunpack.c.h.b16 %v433
    %v708 = vunpack.c.l.b16 %v434
    %v709 = vunpack.c.h.b16 %v434
    %v710 = vunpack.c.l.b16 %v435
    %v711 = vunpack.c.h.b16 %v435
    %v712 = vunpack.c.l.b16 %v436
    %v713 = vunpack.c.h.b16 %v436
    %v714 = vunpack.c.l.b16 %v437
    %v715 = vunpack.c.h.b16 %v437
    %v716 = vunpack.c.l.b16 %v438
    %v717 = vunpack.c.h.b16 %v438
    %v718 = vunpack.c.l.b16 %v439
    %v719 = vunpack.c.h.b16 %v439
    %v720 = vunpack.c.l.b16 %v440
    %v721 = vunpack.c.h.b16 %v440
    %v722 = vunpack.c.l.b16 %v441
    %v723 = vunpack.c.h.b16 %v441
    %v724 = vunpack.c.l.b16 %v442
    %v725 = vunpack.c.h.b16 %v442
    %v726 = vunpack.c.l.b16 %v443
    %v727 = vunpack.c.h.b16 %v443
    %v728 = vunpack.c.l.b16 %v444
    %v729 = vunpack.c.h.b16 %v444
    %v730 = vunpack.c.l.b16 %v445
    %v731 = vunpack.c.h.b16 %v445
    %v732 = vunpack.c.l.b16 %v446
    %v733 = vunpack.c.h.b16 %v446
    %v734 = vunpack.c.l.b16 %v447
    %v735 = vunpack.c.h.b16 %v447
    %v736 = vunpack.c.l.b16 %v448
    %v737 = vunpack.c.h.b16 %v448
    %v738 = vunpack.c.l.b16 %v449
    %v739 = vunpack.c.h.b16 %v449
    %v740 = vunpack.c.l.b16 %v450
    %v741 = vunpack.c.h.b16 %v450
    %v742 = vunpack.c.l.b16 %v451
    %v743 = vunpack.c.h.b16 %v451
    %v744 = vunpack.c.l.b16 %v452
    %v745 = vunpack.c.h.b16 %v452
    %v746 = vunpack.c.l.b16 %v453
    %v747 = vunpack.c.h.b16 %v453
    %v748 = vunpack.c.l.b16 %v454
    %v749 = vunpack.c.h.b16 %v454
    %v750 = vunpack.c.l.b16 %v455
    %v751 = vunpack.c.h.b16 %v455
    %v752 = vunpack.c.l.b16 %v456
    %v753 = vunpack.c.h.b16 %v456
    %v754 = vunpack.c.l.b16 %v457
    %v755 = vunpack.c.h.b16 %v457
    %v756 = vunpack.c.l.b16 %v458
    %v757 = vunpack.c.h.b16 %v458
    %v758 = vunpack.c.l.b16 %v459
    %v759 = vunpack.c.h.b16 %v459
    %v760 = vunpack.c.l.b16 %v460
    %v761 = vunpack.c.h.b16 %v460
    %v762 = vunpack.c.l.b16 %v461
    %v763 = vunpack.c.h.b16 %v461
    %v764 = vunpack.c.l.b16 %v462
    %v765 = vunpack.c.h.b16 %v462
    %v766 = vunpack.c.l.b16 %v463
    %v767 = vunpack.c.h.b16 %v463
    %v768 = vunpack.c.l.b16 %v464
    %v769 = vunpack.c.h.b16 %v464
    %v770 = vunpack.c.l.b16 %v465
    %v771 = vunpack.c.h.b16 %v465
    %v772 = vunpack.c.l.b16 %v466
    %v773 = vunpack.c.h.b16 %v466
    %v774 = vunpack.c.l.b16 %v467
    %v775 = vunpack.c.h.b16 %v467
    %v776 = vunpack.c.l.b16 %v468
    %v777 = vunpack.c.h.b16 %v468
    %v778 = vunpack.c.l.b16 %v469
    %v779 = vunpack.c.h.b16 %v469
    %v780 = vunpack.c.l.b16 %v470
    %v781 = vunpack.c.h.b16 %v470
    %v782 = vunpack.c.l.b16 %v471
    %v783 = vunpack.c.h.b16 %v471
    %v784 = vunpack.c.l.b16 %v472
    %v785 = vunpack.c.h.b16 %v472
    %v786 = vunpack.c.l.b16 %v473
    %v787 = vunpack.c.h.b16 %v473
    %v788 = vunpack.c.l.b16 %v474
    %v789 = vunpack.c.h.b16 %v474
    %v790 = vunpack.c.l.b16 %v475
    %v791 = vunpack.c.h.b16 %v475
    %v792 = vunpack.c.l.b16 %v476
    %v793 = vunpack.c.h.b16 %v476
    %v794 = vunpack.c.l.b16 %v477
    %v795 = vunpack.c.h.b16 %v477
    %v796 = vunpack.c.l.b16 %v478
    %v797 = vunpack.c.h.b16 %v478
    %v798 = vunpack.c.l.b16 %v479
    %v799 = vunpack.c.h.b16 %v479
    %v800 = vunpack.c.l.b16 %v480
    %v801 = vunpack.c.h.b16 %v480
    %v802 = vunpack.c.l.b16 %v481
    %v803 = vunpack.c.h.b16 %v481
    %v804 = vunpack.c.l.b16 %v482
    %v805 = vunpack.c.h.b16 %v482
    %v806 = vunpack.c.l.b16 %v483
    %v807 = vunpack.c.h.b16 %v483
    %v808 = vunpack.c.l.b16 %v484
    %v809 = vunpack.c.h.b16 %v484
    %v810 = vunpack.c.l.b16 %v485
    %v811 = vunpack.c.h.b16 %v485
    %v812 = vunpack.c.l.b16 %v486
    %v813 = vunpack.c.h.b16 %v486
    %v814 = vunpack.c.l.b16 %v487
    %v815 = vunpack.c.h.b16 %v487
    %v816 = vunpack.c.l.b16 %v488
    %v817 = vunpack.c.h.b16 %v488
    %v818 = vunpack.c.l.b16 %v489
    %v819 = vunpack.c.h.b16 %v489
    %v820 = vunpack.c.l.b16 %v490
    %v821 = vunpack.c.h.b16 %v490
    %v822 = vunpack.c.l.b16 %v491
    %v823 = vunpack.c.h.b16 %v491
    %v824 = vunpack.c.l.b16 %v492
    %v825 = vunpack.c.h.b16 %v492
    %v826 = vunpack.c.l.b16 %v493
    %v827 = vunpack.c.h.b16 %v493
    %v828 = vunpack.c.l.b16 %v494
    %v829 = vunpack.c.h.b16 %v494
    %v830 = vunpack.c.l.b16 %v495
    %v831 = vunpack.c.h.b16 %v495
    %v832 = vunpack.c.l.b16 %v496
    %v833 = vunpack.c.h.b16 %v496
    %v834 = vunpack.c.l.b16 %v497
    %v835 = vunpack.c.h.b16 %v497
    %v836 = vunpack.c.l.b16 %v498
    %v837 = vunpack.c.h.b16 %v498
    %v838 = vunpack.c.l.b16 %v499
    %v839 = vunpack.c.h.b16 %v499
    %v840 = vunpack.c.l.b16 %v500
    %v841 = vunpack.c.h.b16 %v500
    %v842 = vunpack.c.l.b16 %v501
    %v843 = vunpack.c.h.b16 %v501
    %v844 = vunpack.c.l.b16 %v502
    %v845 = vunpack.c.h.b16 %v502
    %v846 = vunpack.c.l.b16 %v503
    %v847 = vunpack.c.h.b16 %v503
    %v848 = vunpack.c.l.b16 %v504
    %v849 = vunpack.c.h.b16 %v504
    %v850 = vunpack.c.l.b16 %v505
    %v851 = vunpack.c.h.b16 %v505
    %v852 = vunpack.c.l.b16 %v506
    %v853 = vunpack.c.h.b16 %v506
    %v854 = vunpack.c.l.b16 %v507
    %v855 = vunpack.c.h.b16 %v507
    %v856 = vunpack.c.l.b16 %v508
    %v857 = vunpack.c.h.b16 %v508
    %v858 = vunpack.c.l.b16 %v509
    %v859 = vunpack.c.h.b16 %v509
    %v860 = vunpack.c.l.b16 %v510
    %v861 = vunpack.c.h.b16 %v510
    %v862 = vunpack.c.l.b16 %v511
    %v863 = vunpack.c.h.b16 %v511
    %v864 = vunpack.c.l.b16 %v512
    %v865 = vunpack.c.h.b16 %v512
    %v866 = vunpack.c.l.b16 %v513
    %v867 = vunpack.c.h.b16 %v513
    %v868 = vunpack.c.l.b16 %v514
    %v869 = vunpack.c.h.b16 %v514
    %v870 = vunpack.c.l.b16 %v515
    %v871 = vunpack.c.h.b16 %v515
    %v872 = vunpack.c.l.b16 %v516
    %v873 = vunpack.c.h.b16 %v516
    %v874 = vunpack.c.l.b16 %v517
    %v875 = vunpack.c.h.b16 %v517
    %v876 = vunpack.c.l.b16 %v518
    %v877 = vunpack.c.h.b16 %v518
    %v878 = vunpack.c.l.b16 %v519
    %v879 = vunpack.c.h.b16 %v519
    %v880 = vunpack.c.l.b16 %v520
    %v881 = vunpack.c.h.b16 %v520
    %v882 = vunpack.c.l.b16 %v521
    %v883 = vunpack.c.h.b16 %v521
    %v884 = vunpack.c.l.b16 %v522
    %v885 = vunpack.c.h.b16 %v522
    %v886 = vunpack.c.l.b16 %v523
    %v887 = vunpack.c.h.b16 %v523
    %v888 = vunpack.c.l.b16 %v524
    %v889 = vunpack.c.h.b16 %v524
    %v890 = vunpack.c.l.b16 %v525
    %v891 = vunpack.c.h.b16 %v525
    %v892 = vunpack.c.l.b16 %v526
    %v893 = vunpack.c.h.b16 %v526
    %v894 = vunpack.c.l.b16 %v527
    %v895 = vunpack.c.h.b16 %v527
    %v896 = vunpack.c.l.b16 %v528
    %v897 = vunpack.c.h.b16 %v528
    %v898 = vunpack.c.l.b16 %v529
    %v899 = vunpack.c.h.b16 %v529
    %v900 = vunpack.c.l.b16 %v530
    %v901 = vunpack.c.h.b16 %v530
    %v902 = vunpack.c.l.b16 %v531
    %v903 = vunpack.c.h.b16 %v531
    %v904 = vunpack.c.l.b16 %v532
    %v905 = vunpack.c.h.b16 %v532
    %v906 = vunpack.c.l.b16 %v533
    %v907 = vunpack.c.h.b16 %v533
    %v908 = vunpack.c.l.b16 %v534
    %v909 = vunpack.c.h.b16 %v534
    %v910 = vunpack.c.l.b16 %v535
    %v911 = vunpack.c.h.b16 %v535
    %v912 = vunpack.c.l.b16 %v536
    %v913 = vunpack.c.h.b16 %v536
    %v914 = vunpack.c.l.b16 %v537
    %v915 = vunpack.c.h.b16 %v537
    %v916 = vunpack.c.l.b16 %v538
    %v917 = vunpack.c.h.b16 %v538
    %v918 = vunpack.c.l.b16 %v539
    %v919 = vunpack.c.h.b16 %v539
    %v920 = vunpack.c.l.b16 %v540
    %v921 = vunpack.c.h.b16 %v540
    %v922 = vunpack.c.l.b16 %v541
    %v923 = vunpack.c.h.b16 %v541
    %v924 = vunpack.c.l.b16 %v542
    %v925 = vunpack.c.h.b16 %v542
    %v926 = vunpack.c.l.b16 %v543
    %v927 = vunpack.c.h.b16 %v543
    %v928 = vunpack.c.l.b16 %v544
    %v929 = vunpack.c.h.b16 %v544
    %v930 = vunpack.c.l.b16 %v545
    %v931 = vunpack.c.h.b16 %v545
    %v932 = vunpack.c.l.b16 %v546
    %v933 = vunpack.c.h.b16 %v546
    %v934 = vunpack.c.l.b16 %v547
    %v935 = vunpack.c.h.b16 %v547
    %v936 = vunpack.c.l.b16 %v548
    %v937 = vunpack.c.h.b16 %v548
    %v938 = vunpack.c.l.b16 %v549
    %v939 = vunpack.c.h.b16 %v549
    %v940 = vunpack.c.l.b16 %v550
    %v941 = vunpack.c.h.b16 %v550
    %v942 = vunpack.c.l.b16 %v551
    %v943 = vunpack.c.h.b16 %v551
    %v944 = vunpack.c.l.b16 %v552
    %v945 = vunpack.c.h.b16 %v552
    %v946 = vunpack.c.l.b16 %v553
    %v947 = vunpack.c.h.b16 %v553
    %v948 = vpack.c.b16 %v696, %v692
    %v949 = vpack.c.b16 %v697, %v693
    %v950 = vpack.c.b16 %v698, %v694
    %v951 = vpack.c.b16 %v699, %v695
    %v952 = vpack.c.b16 %v704, %v700
    %v953 = vpack.c.b16 %v705, %v701
    %v954 = vpack.c.b16 %v706, %v702
    %v955 = vpack.c.b16 %v707, %v703
    %v956 = vpack.c.b16 %v712, %v708
    %v957 = vpack.c.b16 %v713, %v709
    %v958 = vpack.c.b16 %v714, %v710
    %v959 = vpack.c.b16 %v715, %v711
    %v960 = vpack.c.b16 %v720, %v716
    %v961 = vpack.c.b16 %v721, %v717
    %v962 = vpack.c.b16 %v722, %v718
    %v963 = vpack.c.b16 %v723, %v719
    %v964 = vpack.c.b16 %v728, %v724
    %v965 = vpack.c.b16 %v729, %v725
    %v966 = vpack.c.b16 %v730, %v726
    %v967 = vpack.c.b16 %v731, %v727
    %v968 = vpack.c.b16 %v736, %v732
    %v969 = vpack.c.b16 %v737, %v733
    %v970 = vpack.c.b16 %v738, %v734
    %v971 = vpack.c.b16 %v739, %v735
    %v972 = vpack.c.b16 %v744, %v740
    %v973 = vpack.c.b16 %v745, %v741
    %v974 = vpack.c.b16 %v746, %v742
    %v975 = vpack.c.b16 %v747, %v743
    %v976 = vpack.c.b16 %v752, %v748
    %v977 = vpack.c.b16 %v753, %v749
    %v978 = vpack.c.b16 %v754, %v750
    %v979 = vpack.c.b16 %v755, %v751
    %v980 = vpack.c.b16 %v760, %v756
    %v981 = vpack.c.b16 %v761, %v757
    %v982 = vpack.c.b16 %v762, %v758
    %v983 = vpack.c.b16 %v763, %v759
    %v984 = vpack.c.b16 %v768, %v764
    %v985 = vpack.c.b16 %v769, %v765
    %v986 = vpack.c.b16 %v770, %v766
    %v987 = vpack.c.b16 %v771, %v767
    %v988 = vpack.c.b16 %v776, %v772
    %v989 = vpack.c.b16 %v777, %v773
    %v990 = vpack.c.b16 %v778, %v774
    %v991 = vpack.c.b16 %v779, %v775
    %v992 = vpack.c.b16 %v784, %v780
    %v993 = vpack.c.b16 %v785, %v781
    %v994 = vpack.c.b16 %v786, %v782
    %v995 = vpack.c.b16 %v787, %v783
    %v996 = vpack.c.b16 %v792, %v788
    %v997 = vpack.c.b16 %v793, %v789
    %v998 = vpack.c.b16 %v794, %v790
    %v999 = vpack.c.b16 %v795, %v791
    %v1000 = vpack.c.b16 %v800, %v796
    %v1001 = vpack.c.b16 %v801, %v797
    %v1002 = vpack.c.b16 %v802, %v798
    %v1003 = vpack.c.b16 %v803, %v799
    %v1004 = vpack.c.b16 %v808, %v804
    %v1005 = vpack.c.b16 %v809, %v805
    %v1006 = vpack.c.b16 %v810, %v806
    %v1007 = vpack.c.b16 %v811, %v807
    %v1008 = vpack.c.b16 %v816, %v812
    %v1009 = vpack.c.b16 %v817, %v813
    %v1010 = vpack.c.b16 %v818, %v814
    %v1011 = vpack.c.b16 %v819, %v815
    %v1012 = vpack.c.b16 %v824, %v820
    %v1013 = vpack.c.b16 %v825, %v821
    %v1014 = vpack.c.b16 %v826, %v822
    %v1015 = vpack.c.b16 %v827, %v823
    %v1016 = vpack.c.b16 %v832, %v828
    %v1017 = vpack.c.b16 %v833, %v829
    %v1018 = vpack.c.b16 %v834, %v830
    %v1019 = vpack.c.b16 %v835, %v831
    %v1020 = vpack.c.b16 %v840, %v836
    %v1021 = vpack.c.b16 %v841, %v837
    %v1022 = vpack.c.b16 %v842, %v838
    %v1023 = vpack.c.b16 %v843, %v839
    %v1024 = vpack.c.b16 %v848, %v844
    %v1025 = vpack.c.b16 %v849, %v845
    %v1026 = vpack.c.b16 %v850, %v846
    %v1027 = vpack.c.b16 %v851, %v847
    %v1028 = vpack.c.b16 %v856, %v852
    %v1029 = vpack.c.b16 %v857, %v853
    %v1030 = vpack.c.b16 %v858, %v854
    %v1031 = vpack.c.b16 %v859, %v855
    %v1032 = vpack.c.b16 %v864, %v860
    %v1033 = vpack.c.b16 %v865, %v861
    %v1034 = vpack.c.b16 %v866, %v862
    %v1035 = vpack.c.b16 %v867, %v863
    %v1036 = vpack.c.b16 %v872, %v868
    %v1037 = vpack.c.b16 %v873, %v869
    %v1038 = vpack.c.b16 %v874, %v870
    %v1039 = vpack.c.b16 %v875, %v871
    %v1040 = vpack.c.b16 %v880, %v876
    %v1041 = vpack.c.b16 %v881, %v877
    %v1042 = vpack.c.b16 %v882, %v878
    %v1043 = vpack.c.b16 %v883, %v879
    %v1044 = vpack.c.b16 %v888, %v884
    %v1045 = vpack.c.b16 %v889, %v885
    %v1046 = vpack.c.b16 %v890, %v886
    %v1047 = vpack.c.b16 %v891, %v887
    %v1048 = vpack.c.b16 %v896, %v892
    %v1049 = vpack.c.b16 %v897, %v893
    %v1050 = vpack.c.b16 %v898, %v894
    %v1051 = vpack.c.b16 %v899, %v895
    %v1052 = vpack.c.b16 %v904, %v900
    %v1053 = vpack.c.b16 %v905, %v901
    %v1054 = vpack.c.b16 %v906, %v902
    %v1055 = vpack.c.b16 %v907, %v903
    %v1056 = vpack.c.b16 %v912, %v908
    %v1057 = vpack.c.b16 %v913, %v909
    %v1058 = vpack.c.b16 %v914, %v910
    %v1059 = vpack.c.b16 %v915, %v911
    %v1060 = vpack.c.b16 %v920, %v916
    %v1061 = vpack.c.b16 %v921, %v917
    %v1062 = vpack.c.b16 %v922, %v918
    %v1063 = vpack.c.b16 %v923, %v919
    %v1064 = vpack.c.b16 %v928, %v924
    %v1065 = vpack.c.b16 %v929, %v925
    %v1066 = vpack.c.b16 %v930, %v926
    %v1067 = vpack.c.b16 %v931, %v927
    %v1068 = vpack.c.b16 %v936, %v932
    %v1069 = vpack.c.b16 %v937, %v933
    %v1070 = vpack.c.b16 %v938, %v934
    %v1071 = vpack.c.b16 %v939, %v935
    %v1072 = vpack.c.b16 %v944, %v940
    %v1073 = vpack.c.b16 %v945, %v941
    %v1074 = vpack.c.b16 %v946, %v942
    %v1075 = vpack.c.b16 %v947, %v943
    %1204 = vmatpush.bf16.msra.mxu0 %v976
    %1205 = vmatpush.bf16.msra.mxu0 %v972
    %1206 = vmatpush.bf16.msra.mxu0 %v968
    %1207 = vmatpush.bf16.msra.mxu0 %v964
    %1208 = vmatpush.bf16.msra.mxu0 %v960
    %1209 = vmatpush.bf16.msra.mxu0 %v956
    %1210 = vmatpush.bf16.msra.mxu0 %v952
    %1211 = vmatpush.bf16.msra.mxu0 %v948
    %1212 = vmatmul.bf16.gmra.mxu0 %v422
    %v1213 = vpop.f32.mrf.mxu0
    %v1214 = vadd.f32 %v556, %v1213
    %v1215 = vpop.f32.mrf.mxu0
    %1216 = vdwg.mxu0
    %1217 = vmatpush.bf16.msra.mxu0 %v1008
    %1218 = vmatpush.bf16.msra.mxu0 %v1004
    %1219 = vmatpush.bf16.msra.mxu0 %v1000
    %1220 = vmatpush.bf16.msra.mxu0 %v996
    %1221 = vmatpush.bf16.msra.mxu0 %v992
    %1222 = vmatpush.bf16.msra.mxu0 %v988
    %1223 = vmatpush.bf16.msra.mxu0 %v984
    %1224 = vmatpush.bf16.msra.mxu0 %v980
    %1225 = vmatmul.bf16.gmra.mxu0 %v423
    %v1226 = vpop.f32.mrf.mxu0
    %v1227 = vadd.f32 %v1214, %v1226
    %v1228 = vpop.f32.mrf.mxu0
    %1229 = vdwg.mxu0
    %1230 = vmatpush.bf16.msra.mxu0 %v1040
    %1231 = vmatpush.bf16.msra.mxu0 %v1036
    %1232 = vmatpush.bf16.msra.mxu0 %v1032
    %1233 = vmatpush.bf16.msra.mxu0 %v1028
    %1234 = vmatpush.bf16.msra.mxu0 %v1024
    %1235 = vmatpush.bf16.msra.mxu0 %v1020
    %1236 = vmatpush.bf16.msra.mxu0 %v1016
    %1237 = vmatpush.bf16.msra.mxu0 %v1012
    %1238 = vmatmul.bf16.gmra.mxu0 %v424
    %v1239 = vpop.f32.mrf.mxu0
    %v1240 = vadd.f32 %v1227, %v1239
    %v1241 = vpop.f32.mrf.mxu0
    %1242 = vdwg.mxu0
    %1243 = vmatpush.bf16.msra.mxu0 %v1072
    %1244 = vmatpush.bf16.msra.mxu0 %v1068
    %1245 = vmatpush.bf16.msra.mxu0 %v1064
    %1246 = vmatpush.bf16.msra.mxu0 %v1060
    %1247 = vmatpush.bf16.msra.mxu0 %v1056
    %1248 = vmatpush.bf16.msra.mxu0 %v1052
    %1249 = vmatpush.bf16.msra.mxu0 %v1048
    %1250 = vmatpush.bf16.msra.mxu0 %v1044
    %1251 = vmatmul.bf16.gmra.mxu0 %v425
    %v1252 = vpop.f32.mrf.mxu0
    %v1253 = vadd.f32 %v1240, %v1252
    %v1254 = vpop.f32.mrf.mxu0
    %1255 = vdwg.mxu0
    %1256 = vmatpush.bf16.msra.mxu0 %v977
    %1257 = vmatpush.bf16.msra.mxu0 %v973
    %1258 = vmatpush.bf16.msra.mxu0 %v969
    %1259 = vmatpush.bf16.msra.mxu0 %v965
    %1260 = vmatpush.bf16.msra.mxu0 %v961
    %1261 = vmatpush.bf16.msra.mxu0 %v957
    %1262 = vmatpush.bf16.msra.mxu0 %v953
    %1263 = vmatpush.bf16.msra.mxu0 %v949
    %1264 = vmatmul.bf16.gmra.mxu0 %v422
    %v1265 = vpop.f32.mrf.mxu0
    %v1266 = vadd.f32 %v557, %v1265
    %v1267 = vpop.f32.mrf.mxu0
    %1268 = vdwg.mxu0
    %1269 = vmatpush.bf16.msra.mxu0 %v1009
    %1270 = vmatpush.bf16.msra.mxu0 %v1005
    %1271 = vmatpush.bf16.msra.mxu0 %v1001
    %1272 = vmatpush.bf16.msra.mxu0 %v997
    %1273 = vmatpush.bf16.msra.mxu0 %v993
    %1274 = vmatpush.bf16.msra.mxu0 %v989
    %1275 = vmatpush.bf16.msra.mxu0 %v985
    %1276 = vmatpush.bf16.msra.mxu0 %v981
    %1277 = vmatmul.bf16.gmra.mxu0 %v423
    %v1278 = vpop.f32.mrf.mxu0
    %v1279 = vadd.f32 %v1266, %v1278
    %v1280 = vpop.f32.mrf.mxu0
    %1281 = vdwg.mxu0
    %1282 = vmatpush.bf16.msra.mxu0 %v1041
    %1283 = vmatpush.bf16.msra.mxu0 %v1037
    %1284 = vmatpush.bf16.msra.mxu0 %v1033
    %1285 = vmatpush.bf16.msra.mxu0 %v1029
    %1286 = vmatpush.bf16.msra.mxu0 %v1025
    %1287 = vmatpush.bf16.msra.mxu0 %v1021
    %1288 = vmatpush.bf16.msra.mxu0 %v1017
    %1289 = vmatpush.bf16.msra.mxu0 %v1013
    %1290 = vmatmul.bf16.gmra.mxu0 %v424
    %v1291 = vpop.f32.mrf.mxu0
    %v1292 = vadd.f32 %v1279, %v1291
    %v1293 = vpop.f32.mrf.mxu0
    %1294 = vdwg.mxu0
    %1295 = vmatpush.bf16.msra.mxu0 %v1073
    %1296 = vmatpush.bf16.msra.mxu0 %v1069
    %1297 = vmatpush.bf16.msra.mxu0 %v1065
    %1298 = vmatpush.bf16.msra.mxu0 %v1061
    %1299 = vmatpush.bf16.msra.mxu0 %v1057
    %1300 = vmatpush.bf16.msra.mxu0 %v1053
    %1301 = vmatpush.bf16.msra.mxu0 %v1049
    %1302 = vmatpush.bf16.msra.mxu0 %v1045
    %1303 = vmatmul.bf16.gmra.mxu0 %v425
    %v1304 = vpop.f32.mrf.mxu0
    %v1305 = vadd.f32 %v1292, %v1304
    %v1306 = vpop.f32.mrf.mxu0
    %1307 = vdwg.mxu0
    %1308 = vmatpush.bf16.msra.mxu0 %v978
    %1309 = vmatpush.bf16.msra.mxu0 %v974
    %1310 = vmatpush.bf16.msra.mxu0 %v970
    %1311 = vmatpush.bf16.msra.mxu0 %v966
    %1312 = vmatpush.bf16.msra.mxu0 %v962
    %1313 = vmatpush.bf16.msra.mxu0 %v958
    %1314 = vmatpush.bf16.msra.mxu0 %v954
    %1315 = vmatpush.bf16.msra.mxu0 %v950
    %1316 = vmatmul.bf16.gmra.mxu0 %v422
    %v1317 = vpop.f32.mrf.mxu0
    %v1318 = vadd.f32 %v558, %v1317
    %v1319 = vpop.f32.mrf.mxu0
    %1320 = vdwg.mxu0
    %1321 = vmatpush.bf16.msra.mxu0 %v1010
    %1322 = vmatpush.bf16.msra.mxu0 %v1006
    %1323 = vmatpush.bf16.msra.mxu0 %v1002
    %1324 = vmatpush.bf16.msra.mxu0 %v998
    %1325 = vmatpush.bf16.msra.mxu0 %v994
    %1326 = vmatpush.bf16.msra.mxu0 %v990
    %1327 = vmatpush.bf16.msra.mxu0 %v986
    %1328 = vmatpush.bf16.msra.mxu0 %v982
    %1329 = vmatmul.bf16.gmra.mxu0 %v423
    %v1330 = vpop.f32.mrf.mxu0
    %v1331 = vadd.f32 %v1318, %v1330
    %v1332 = vpop.f32.mrf.mxu0
    %1333 = vdwg.mxu0
    %1334 = vmatpush.bf16.msra.mxu0 %v1042
    %1335 = vmatpush.bf16.msra.mxu0 %v1038
    %1336 = vmatpush.bf16.msra.mxu0 %v1034
    %1337 = vmatpush.bf16.msra.mxu0 %v1030
    %1338 = vmatpush.bf16.msra.mxu0 %v1026
    %1339 = vmatpush.bf16.msra.mxu0 %v1022
    %1340 = vmatpush.bf16.msra.mxu0 %v1018
    %1341 = vmatpush.bf16.msra.mxu0 %v1014
    %1342 = vmatmul.bf16.gmra.mxu0 %v424
    %v1343 = vpop.f32.mrf.mxu0
    %v1344 = vadd.f32 %v1331, %v1343
    %v1345 = vpop.f32.mrf.mxu0
    %1346 = vdwg.mxu0
    %1347 = vmatpush.bf16.msra.mxu0 %v1074
    %1348 = vmatpush.bf16.msra.mxu0 %v1070
    %1349 = vmatpush.bf16.msra.mxu0 %v1066
    %1350 = vmatpush.bf16.msra.mxu0 %v1062
    %1351 = vmatpush.bf16.msra.mxu0 %v1058
    %1352 = vmatpush.bf16.msra.mxu0 %v1054
    %1353 = vmatpush.bf16.msra.mxu0 %v1050
    %1354 = vmatpush.bf16.msra.mxu0 %v1046
    %1355 = vmatmul.bf16.gmra.mxu0 %v425
    %v1356 = vpop.f32.mrf.mxu0
    %v1357 = vadd.f32 %v1344, %v1356
    %v1358 = vpop.f32.mrf.mxu0
    %1359 = vdwg.mxu0
    %1360 = vmatpush.bf16.msra.mxu0 %v979
    %1361 = vmatpush.bf16.msra.mxu0 %v975
    %1362 = vmatpush.bf16.msra.mxu0 %v971
    %1363 = vmatpush.bf16.msra.mxu0 %v967
    %1364 = vmatpush.bf16.msra.mxu0 %v963
    %1365 = vmatpush.bf16.msra.mxu0 %v959
    %1366 = vmatpush.bf16.msra.mxu0 %v955
    %1367 = vmatpush.bf16.msra.mxu0 %v951
    %1368 = vmatmul.bf16.gmra.mxu0 %v422
    %v1369 = vpop.f32.mrf.mxu0
    %v1370 = vadd.f32 %v559, %v1369
    %v1371 = vpop.f32.mrf.mxu0
    %1372 = vdwg.mxu0
    %1373 = vmatpush.bf16.msra.mxu0 %v1011
    %1374 = vmatpush.bf16.msra.mxu0 %v1007
    %1375 = vmatpush.bf16.msra.mxu0 %v1003
    %1376 = vmatpush.bf16.msra.mxu0 %v999
    %1377 = vmatpush.bf16.msra.mxu0 %v995
    %1378 = vmatpush.bf16.msra.mxu0 %v991
    %1379 = vmatpush.bf16.msra.mxu0 %v987
    %1380 = vmatpush.bf16.msra.mxu0 %v983
    %1381 = vmatmul.bf16.gmra.mxu0 %v423
    %v1382 = vpop.f32.mrf.mxu0
    %v1383 = vadd.f32 %v1370, %v1382
    %v1384 = vpop.f32.mrf.mxu0
    %1385 = vdwg.mxu0
    %1386 = vmatpush.bf16.msra.mxu0 %v1043
    %1387 = vmatpush.bf16.msra.mxu0 %v1039
    %1388 = vmatpush.bf16.msra.mxu0 %v1035
    %1389 = vmatpush.bf16.msra.mxu0 %v1031
    %1390 = vmatpush.bf16.msra.mxu0 %v1027
    %1391 = vmatpush.bf16.msra.mxu0 %v1023
    %1392 = vmatpush.bf16.msra.mxu0 %v1019
    %1393 = vmatpush.bf16.msra.mxu0 %v1015
    %1394 = vmatmul.bf16.gmra.mxu0 %v424
    %v1395 = vpop.f32.mrf.mxu0
    %v1396 = vadd.f32 %v1383, %v1395
    %v1397 = vpop.f32.mrf.mxu0
    %1398 = vdwg.mxu0
    %1399 = vmatpush.bf16.msra.mxu0 %v1075
    %1400 = vmatpush.bf16.msra.mxu0 %v1071
    %1401 = vmatpush.bf16.msra.mxu0 %v1067
    %1402 = vmatpush.bf16.msra.mxu0 %v1063
    %1403 = vmatpush.bf16.msra.mxu0 %v1059
    %1404 = vmatpush.bf16.msra.mxu0 %v1055
    %1405 = vmatpush.bf16.msra.mxu0 %v1051
    %1406 = vmatpush.bf16.msra.mxu0 %v1047
    %1407 = vmatmul.bf16.gmra.mxu0 %v425
    %v1408 = vpop.f32.mrf.mxu0
    %v1409 = vadd.f32 %v1396, %v1408
    %v1410 = vpop.f32.mrf.mxu0
    %1411 = vdwg.mxu0
    %v1412 = vmax.f32 %v1253, 0.0
    %v1413 = vmax.f32 %v1305, 0.0
    %v1414 = vmax.f32 %v1357, 0.0
    %v1415 = vmax.f32 %v1409, 0.0
    %v1420 = vrot.slane %v1413, 6
    %v1421 = vrot.slane %v1414, 4
    %v1422 = vrot.slane %v1415, 2
    %v1423 = vsel %vm403, %v1412, %v1420
    %v1424 = vsel %vm405, %v1421, %v1422
    %v1425 = vsel %vm407, %v1423, %v1424
    %1427 = vst [vmem:[#allocation2] sm:$0xff] %v1425
    %v1428 = vld [vmem:[#allocation2] sm:$0xff]
    %1430 = vst [vmem:[#allocation1] ss:$4 sm:$0xff] %v1428
    %v1431 = vld.sshfl [vmem:[#allocation1] sm:$0xff pattern:$0x73625140]
    %v1432 = vld.sshfl [vmem:[#allocation1 + $0x8] sm:$0xff pattern:$0x73625140]
    %v1433 = vld.sshfl [vmem:[#allocation1 + $0x10] sm:$0xff pattern:$0x73625140]
    %v1434 = vld.sshfl [vmem:[#allocation1 + $0x18] sm:$0xff pattern:$0x73625140]
    %v1439 = vpack.c.bf16 %v1431, %v1431
    %v1440 = vpack.c.bf16 %v1432, %v1432
    %v1441 = vpack.c.bf16 %v1433, %v1433
    %v1442 = vpack.c.bf16 %v1434, %v1434
    %v1443 = vld [vmem:[#allocation12] sm:$0xff]
    %v1444 = vld [vmem:[#allocation12 + $0x8] sm:$0xff]
    %v1445 = vld [vmem:[#allocation12 + $0x10] sm:$0xff]
    %v1446 = vld [vmem:[#allocation12 + $0x18] sm:$0xff]
    %v1447 = vld [vmem:[#allocation12 + $0x20] sm:$0xff]
    %v1448 = vld [vmem:[#allocation12 + $0x28] sm:$0xff]
    %v1449 = vld [vmem:[#allocation12 + $0x30] sm:$0xff]
    %v1450 = vld [vmem:[#allocation12 + $0x38] sm:$0xff]
    %v1451 = vld [vmem:[#allocation12 + $0x40] sm:$0xff]
    %v1452 = vld [vmem:[#allocation12 + $0x48] sm:$0xff]
    %v1453 = vld [vmem:[#allocation12 + $0x50] sm:$0xff]
    %v1454 = vld [vmem:[#allocation12 + $0x58] sm:$0xff]
    %v1455 = vld [vmem:[#allocation12 + $0x60] sm:$0xff]
    %v1456 = vld [vmem:[#allocation12 + $0x68] sm:$0xff]
    %v1457 = vld [vmem:[#allocation12 + $0x70] sm:$0xff]
    %v1458 = vld [vmem:[#allocation12 + $0x78] sm:$0xff]
    %v1459 = vld [vmem:[#allocation12 + $0x80] sm:$0xff]
    %v1460 = vld [vmem:[#allocation12 + $0x88] sm:$0xff]
    %v1461 = vld [vmem:[#allocation12 + $0x90] sm:$0xff]
    %v1462 = vld [vmem:[#allocation12 + $0x98] sm:$0xff]
    %v1463 = vld [vmem:[#allocation12 + $0xa0] sm:$0xff]
    %v1464 = vld [vmem:[#allocation12 + $0xa8] sm:$0xff]
    %v1465 = vld [vmem:[#allocation12 + $0xb0] sm:$0xff]
    %v1466 = vld [vmem:[#allocation12 + $0xb8] sm:$0xff]
    %v1467 = vld [vmem:[#allocation12 + $0xc0] sm:$0xff]
    %v1468 = vld [vmem:[#allocation12 + $0xc8] sm:$0xff]
    %v1469 = vld [vmem:[#allocation12 + $0xd0] sm:$0xff]
    %v1470 = vld [vmem:[#allocation12 + $0xd8] sm:$0xff]
    %v1471 = vld [vmem:[#allocation12 + $0xe0] sm:$0xff]
    %v1472 = vld [vmem:[#allocation12 + $0xe8] sm:$0xff]
    %v1473 = vld [vmem:[#allocation12 + $0xf0] sm:$0xff]
    %v1474 = vld [vmem:[#allocation12 + $0xf8] sm:$0xff]
    %v1475 = vld [vmem:[#allocation12 + $0x100] sm:$0xff]
    %v1476 = vld [vmem:[#allocation12 + $0x108] sm:$0xff]
    %v1477 = vld [vmem:[#allocation12 + $0x110] sm:$0xff]
    %v1478 = vld [vmem:[#allocation12 + $0x118] sm:$0xff]
    %v1479 = vld [vmem:[#allocation12 + $0x120] sm:$0xff]
    %v1480 = vld [vmem:[#allocation12 + $0x128] sm:$0xff]
    %v1481 = vld [vmem:[#allocation12 + $0x130] sm:$0xff]
    %v1482 = vld [vmem:[#allocation12 + $0x138] sm:$0xff]
    %v1483 = vld [vmem:[#allocation12 + $0x140] sm:$0xff]
    %v1484 = vld [vmem:[#allocation12 + $0x148] sm:$0xff]
    %v1485 = vld [vmem:[#allocation12 + $0x150] sm:$0xff]
    %v1486 = vld [vmem:[#allocation12 + $0x158] sm:$0xff]
    %v1487 = vld [vmem:[#allocation12 + $0x160] sm:$0xff]
    %v1488 = vld [vmem:[#allocation12 + $0x168] sm:$0xff]
    %v1489 = vld [vmem:[#allocation12 + $0x170] sm:$0xff]
    %v1490 = vld [vmem:[#allocation12 + $0x178] sm:$0xff]
    %v1491 = vld [vmem:[#allocation12 + $0x180] sm:$0xff]
    %v1492 = vld [vmem:[#allocation12 + $0x188] sm:$0xff]
    %v1493 = vld [vmem:[#allocation12 + $0x190] sm:$0xff]
    %v1494 = vld [vmem:[#allocation12 + $0x198] sm:$0xff]
    %v1495 = vld [vmem:[#allocation12 + $0x1a0] sm:$0xff]
    %v1496 = vld [vmem:[#allocation12 + $0x1a8] sm:$0xff]
    %v1497 = vld [vmem:[#allocation12 + $0x1b0] sm:$0xff]
    %v1498 = vld [vmem:[#allocation12 + $0x1b8] sm:$0xff]
    %v1499 = vld [vmem:[#allocation12 + $0x1c0] sm:$0xff]
    %v1500 = vld [vmem:[#allocation12 + $0x1c8] sm:$0xff]
    %v1501 = vld [vmem:[#allocation12 + $0x1d0] sm:$0xff]
    %v1502 = vld [vmem:[#allocation12 + $0x1d8] sm:$0xff]
    %v1503 = vld [vmem:[#allocation12 + $0x1e0] sm:$0xff]
    %v1504 = vld [vmem:[#allocation12 + $0x1e8] sm:$0xff]
    %v1505 = vld [vmem:[#allocation12 + $0x1f0] sm:$0xff]
    %v1506 = vld [vmem:[#allocation12 + $0x1f8] sm:$0xff]
    %v1507 = vld [vmem:[#allocation12 + $0x200] sm:$0xff]
    %v1508 = vld [vmem:[#allocation12 + $0x208] sm:$0xff]
    %v1509 = vld [vmem:[#allocation12 + $0x210] sm:$0xff]
    %v1510 = vld [vmem:[#allocation12 + $0x218] sm:$0xff]
    %v1511 = vld [vmem:[#allocation12 + $0x220] sm:$0xff]
    %v1512 = vld [vmem:[#allocation12 + $0x228] sm:$0xff]
    %v1513 = vld [vmem:[#allocation12 + $0x230] sm:$0xff]
    %v1514 = vld [vmem:[#allocation12 + $0x238] sm:$0xff]
    %v1515 = vld [vmem:[#allocation12 + $0x240] sm:$0xff]
    %v1516 = vld [vmem:[#allocation12 + $0x248] sm:$0xff]
    %v1517 = vld [vmem:[#allocation12 + $0x250] sm:$0xff]
    %v1518 = vld [vmem:[#allocation12 + $0x258] sm:$0xff]
    %v1519 = vld [vmem:[#allocation12 + $0x260] sm:$0xff]
    %v1520 = vld [vmem:[#allocation12 + $0x268] sm:$0xff]
    %v1521 = vld [vmem:[#allocation12 + $0x270] sm:$0xff]
    %v1522 = vld [vmem:[#allocation12 + $0x278] sm:$0xff]
    %v1523 = vld [vmem:[#allocation12 + $0x280] sm:$0xff]
    %v1524 = vld [vmem:[#allocation12 + $0x288] sm:$0xff]
    %v1525 = vld [vmem:[#allocation12 + $0x290] sm:$0xff]
    %v1526 = vld [vmem:[#allocation12 + $0x298] sm:$0xff]
    %v1527 = vld [vmem:[#allocation12 + $0x2a0] sm:$0xff]
    %v1528 = vld [vmem:[#allocation12 + $0x2a8] sm:$0xff]
    %v1529 = vld [vmem:[#allocation12 + $0x2b0] sm:$0xff]
    %v1530 = vld [vmem:[#allocation12 + $0x2b8] sm:$0xff]
    %v1531 = vld [vmem:[#allocation12 + $0x2c0] sm:$0xff]
    %v1532 = vld [vmem:[#allocation12 + $0x2c8] sm:$0xff]
    %v1533 = vld [vmem:[#allocation12 + $0x2d0] sm:$0xff]
    %v1534 = vld [vmem:[#allocation12 + $0x2d8] sm:$0xff]
    %v1535 = vld [vmem:[#allocation12 + $0x2e0] sm:$0xff]
    %v1536 = vld [vmem:[#allocation12 + $0x2e8] sm:$0xff]
    %v1537 = vld [vmem:[#allocation12 + $0x2f0] sm:$0xff]
    %v1538 = vld [vmem:[#allocation12 + $0x2f8] sm:$0xff]
    %v1539 = vld [vmem:[#allocation12 + $0x300] sm:$0xff]
    %v1540 = vld [vmem:[#allocation12 + $0x308] sm:$0xff]
    %v1541 = vld [vmem:[#allocation12 + $0x310] sm:$0xff]
    %v1542 = vld [vmem:[#allocation12 + $0x318] sm:$0xff]
    %v1543 = vld [vmem:[#allocation12 + $0x320] sm:$0xff]
    %v1544 = vld [vmem:[#allocation12 + $0x328] sm:$0xff]
    %v1545 = vld [vmem:[#allocation12 + $0x330] sm:$0xff]
    %v1546 = vld [vmem:[#allocation12 + $0x338] sm:$0xff]
    %v1547 = vld [vmem:[#allocation12 + $0x340] sm:$0xff]
    %v1548 = vld [vmem:[#allocation12 + $0x348] sm:$0xff]
    %v1549 = vld [vmem:[#allocation12 + $0x350] sm:$0xff]
    %v1550 = vld [vmem:[#allocation12 + $0x358] sm:$0xff]
    %v1551 = vld [vmem:[#allocation12 + $0x360] sm:$0xff]
    %v1552 = vld [vmem:[#allocation12 + $0x368] sm:$0xff]
    %v1553 = vld [vmem:[#allocation12 + $0x370] sm:$0xff]
    %v1554 = vld [vmem:[#allocation12 + $0x378] sm:$0xff]
    %v1555 = vld [vmem:[#allocation12 + $0x380] sm:$0xff]
    %v1556 = vld [vmem:[#allocation12 + $0x388] sm:$0xff]
    %v1557 = vld [vmem:[#allocation12 + $0x390] sm:$0xff]
    %v1558 = vld [vmem:[#allocation12 + $0x398] sm:$0xff]
    %v1559 = vld [vmem:[#allocation12 + $0x3a0] sm:$0xff]
    %v1560 = vld [vmem:[#allocation12 + $0x3a8] sm:$0xff]
    %v1561 = vld [vmem:[#allocation12 + $0x3b0] sm:$0xff]
    %v1562 = vld [vmem:[#allocation12 + $0x3b8] sm:$0xff]
    %v1563 = vld [vmem:[#allocation12 + $0x3c0] sm:$0xff]
    %v1564 = vld [vmem:[#allocation12 + $0x3c8] sm:$0xff]
    %v1565 = vld [vmem:[#allocation12 + $0x3d0] sm:$0xff]
    %v1566 = vld [vmem:[#allocation12 + $0x3d8] sm:$0xff]
    %v1567 = vld [vmem:[#allocation12 + $0x3e0] sm:$0xff]
    %v1568 = vld [vmem:[#allocation12 + $0x3e8] sm:$0xff]
    %v1569 = vld [vmem:[#allocation12 + $0x3f0] sm:$0xff]
    %v1570 = vld [vmem:[#allocation12 + $0x3f8] sm:$0xff]
    %v1571 = vld [vmem:[%s6] sm:$0xf]
    %v1573 = vperm.slane %v1571, 0
    %v1574 = vperm.slane %v1571, 1
    %v1575 = vperm.slane %v1571, 2
    %v1576 = vperm.slane %v1571, 3
    %v1709 = vunpack.c.l.b16 %v1443
    %v1710 = vunpack.c.h.b16 %v1443
    %v1711 = vunpack.c.l.b16 %v1444
    %v1712 = vunpack.c.h.b16 %v1444
    %v1713 = vunpack.c.l.b16 %v1445
    %v1714 = vunpack.c.h.b16 %v1445
    %v1715 = vunpack.c.l.b16 %v1446
    %v1716 = vunpack.c.h.b16 %v1446
    %v1717 = vunpack.c.l.b16 %v1447
    %v1718 = vunpack.c.h.b16 %v1447
    %v1719 = vunpack.c.l.b16 %v1448
    %v1720 = vunpack.c.h.b16 %v1448
    %v1721 = vunpack.c.l.b16 %v1449
    %v1722 = vunpack.c.h.b16 %v1449
    %v1723 = vunpack.c.l.b16 %v1450
    %v1724 = vunpack.c.h.b16 %v1450
    %v1725 = vunpack.c.l.b16 %v1451
    %v1726 = vunpack.c.h.b16 %v1451
    %v1727 = vunpack.c.l.b16 %v1452
    %v1728 = vunpack.c.h.b16 %v1452
    %v1729 = vunpack.c.l.b16 %v1453
    %v1730 = vunpack.c.h.b16 %v1453
    %v1731 = vunpack.c.l.b16 %v1454
    %v1732 = vunpack.c.h.b16 %v1454
    %v1733 = vunpack.c.l.b16 %v1455
    %v1734 = vunpack.c.h.b16 %v1455
    %v1735 = vunpack.c.l.b16 %v1456
    %v1736 = vunpack.c.h.b16 %v1456
    %v1737 = vunpack.c.l.b16 %v1457
    %v1738 = vunpack.c.h.b16 %v1457
    %v1739 = vunpack.c.l.b16 %v1458
    %v1740 = vunpack.c.h.b16 %v1458
    %v1741 = vunpack.c.l.b16 %v1459
    %v1742 = vunpack.c.h.b16 %v1459
    %v1743 = vunpack.c.l.b16 %v1460
    %v1744 = vunpack.c.h.b16 %v1460
    %v1745 = vunpack.c.l.b16 %v1461
    %v1746 = vunpack.c.h.b16 %v1461
    %v1747 = vunpack.c.l.b16 %v1462
    %v1748 = vunpack.c.h.b16 %v1462
    %v1749 = vunpack.c.l.b16 %v1463
    %v1750 = vunpack.c.h.b16 %v1463
    %v1751 = vunpack.c.l.b16 %v1464
    %v1752 = vunpack.c.h.b16 %v1464
    %v1753 = vunpack.c.l.b16 %v1465
    %v1754 = vunpack.c.h.b16 %v1465
    %v1755 = vunpack.c.l.b16 %v1466
    %v1756 = vunpack.c.h.b16 %v1466
    %v1757 = vunpack.c.l.b16 %v1467
    %v1758 = vunpack.c.h.b16 %v1467
    %v1759 = vunpack.c.l.b16 %v1468
    %v1760 = vunpack.c.h.b16 %v1468
    %v1761 = vunpack.c.l.b16 %v1469
    %v1762 = vunpack.c.h.b16 %v1469
    %v1763 = vunpack.c.l.b16 %v1470
    %v1764 = vunpack.c.h.b16 %v1470
    %v1765 = vunpack.c.l.b16 %v1471
    %v1766 = vunpack.c.h.b16 %v1471
    %v1767 = vunpack.c.l.b16 %v1472
    %v1768 = vunpack.c.h.b16 %v1472
    %v1769 = vunpack.c.l.b16 %v1473
    %v1770 = vunpack.c.h.b16 %v1473
    %v1771 = vunpack.c.l.b16 %v1474
    %v1772 = vunpack.c.h.b16 %v1474
    %v1773 = vunpack.c.l.b16 %v1475
    %v1774 = vunpack.c.h.b16 %v1475
    %v1775 = vunpack.c.l.b16 %v1476
    %v1776 = vunpack.c.h.b16 %v1476
    %v1777 = vunpack.c.l.b16 %v1477
    %v1778 = vunpack.c.h.b16 %v1477
    %v1779 = vunpack.c.l.b16 %v1478
    %v1780 = vunpack.c.h.b16 %v1478
    %v1781 = vunpack.c.l.b16 %v1479
    %v1782 = vunpack.c.h.b16 %v1479
    %v1783 = vunpack.c.l.b16 %v1480
    %v1784 = vunpack.c.h.b16 %v1480
    %v1785 = vunpack.c.l.b16 %v1481
    %v1786 = vunpack.c.h.b16 %v1481
    %v1787 = vunpack.c.l.b16 %v1482
    %v1788 = vunpack.c.h.b16 %v1482
    %v1789 = vunpack.c.l.b16 %v1483
    %v1790 = vunpack.c.h.b16 %v1483
    %v1791 = vunpack.c.l.b16 %v1484
    %v1792 = vunpack.c.h.b16 %v1484
    %v1793 = vunpack.c.l.b16 %v1485
    %v1794 = vunpack.c.h.b16 %v1485
    %v1795 = vunpack.c.l.b16 %v1486
    %v1796 = vunpack.c.h.b16 %v1486
    %v1797 = vunpack.c.l.b16 %v1487
    %v1798 = vunpack.c.h.b16 %v1487
    %v1799 = vunpack.c.l.b16 %v1488
    %v1800 = vunpack.c.h.b16 %v1488
    %v1801 = vunpack.c.l.b16 %v1489
    %v1802 = vunpack.c.h.b16 %v1489
    %v1803 = vunpack.c.l.b16 %v1490
    %v1804 = vunpack.c.h.b16 %v1490
    %v1805 = vunpack.c.l.b16 %v1491
    %v1806 = vunpack.c.h.b16 %v1491
    %v1807 = vunpack.c.l.b16 %v1492
    %v1808 = vunpack.c.h.b16 %v1492
    %v1809 = vunpack.c.l.b16 %v1493
    %v1810 = vunpack.c.h.b16 %v1493
    %v1811 = vunpack.c.l.b16 %v1494
    %v1812 = vunpack.c.h.b16 %v1494
    %v1813 = vunpack.c.l.b16 %v1495
    %v1814 = vunpack.c.h.b16 %v1495
    %v1815 = vunpack.c.l.b16 %v1496
    %v1816 = vunpack.c.h.b16 %v1496
    %v1817 = vunpack.c.l.b16 %v1497
    %v1818 = vunpack.c.h.b16 %v1497
    %v1819 = vunpack.c.l.b16 %v1498
    %v1820 = vunpack.c.h.b16 %v1498
    %v1821 = vunpack.c.l.b16 %v1499
    %v1822 = vunpack.c.h.b16 %v1499
    %v1823 = vunpack.c.l.b16 %v1500
    %v1824 = vunpack.c.h.b16 %v1500
    %v1825 = vunpack.c.l.b16 %v1501
    %v1826 = vunpack.c.h.b16 %v1501
    %v1827 = vunpack.c.l.b16 %v1502
    %v1828 = vunpack.c.h.b16 %v1502
    %v1829 = vunpack.c.l.b16 %v1503
    %v1830 = vunpack.c.h.b16 %v1503
    %v1831 = vunpack.c.l.b16 %v1504
    %v1832 = vunpack.c.h.b16 %v1504
    %v1833 = vunpack.c.l.b16 %v1505
    %v1834 = vunpack.c.h.b16 %v1505
    %v1835 = vunpack.c.l.b16 %v1506
    %v1836 = vunpack.c.h.b16 %v1506
    %v1837 = vunpack.c.l.b16 %v1507
    %v1838 = vunpack.c.h.b16 %v1507
    %v1839 = vunpack.c.l.b16 %v1508
    %v1840 = vunpack.c.h.b16 %v1508
    %v1841 = vunpack.c.l.b16 %v1509
    %v1842 = vunpack.c.h.b16 %v1509
    %v1843 = vunpack.c.l.b16 %v1510
    %v1844 = vunpack.c.h.b16 %v1510
    %v1845 = vunpack.c.l.b16 %v1511
    %v1846 = vunpack.c.h.b16 %v1511
    %v1847 = vunpack.c.l.b16 %v1512
    %v1848 = vunpack.c.h.b16 %v1512
    %v1849 = vunpack.c.l.b16 %v1513
    %v1850 = vunpack.c.h.b16 %v1513
    %v1851 = vunpack.c.l.b16 %v1514
    %v1852 = vunpack.c.h.b16 %v1514
    %v1853 = vunpack.c.l.b16 %v1515
    %v1854 = vunpack.c.h.b16 %v1515
    %v1855 = vunpack.c.l.b16 %v1516
    %v1856 = vunpack.c.h.b16 %v1516
    %v1857 = vunpack.c.l.b16 %v1517
    %v1858 = vunpack.c.h.b16 %v1517
    %v1859 = vunpack.c.l.b16 %v1518
    %v1860 = vunpack.c.h.b16 %v1518
    %v1861 = vunpack.c.l.b16 %v1519
    %v1862 = vunpack.c.h.b16 %v1519
    %v1863 = vunpack.c.l.b16 %v1520
    %v1864 = vunpack.c.h.b16 %v1520
    %v1865 = vunpack.c.l.b16 %v1521
    %v1866 = vunpack.c.h.b16 %v1521
    %v1867 = vunpack.c.l.b16 %v1522
    %v1868 = vunpack.c.h.b16 %v1522
    %v1869 = vunpack.c.l.b16 %v1523
    %v1870 = vunpack.c.h.b16 %v1523
    %v1871 = vunpack.c.l.b16 %v1524
    %v1872 = vunpack.c.h.b16 %v1524
    %v1873 = vunpack.c.l.b16 %v1525
    %v1874 = vunpack.c.h.b16 %v1525
    %v1875 = vunpack.c.l.b16 %v1526
    %v1876 = vunpack.c.h.b16 %v1526
    %v1877 = vunpack.c.l.b16 %v1527
    %v1878 = vunpack.c.h.b16 %v1527
    %v1879 = vunpack.c.l.b16 %v1528
    %v1880 = vunpack.c.h.b16 %v1528
    %v1881 = vunpack.c.l.b16 %v1529
    %v1882 = vunpack.c.h.b16 %v1529
    %v1883 = vunpack.c.l.b16 %v1530
    %v1884 = vunpack.c.h.b16 %v1530
    %v1885 = vunpack.c.l.b16 %v1531
    %v1886 = vunpack.c.h.b16 %v1531
    %v1887 = vunpack.c.l.b16 %v1532
    %v1888 = vunpack.c.h.b16 %v1532
    %v1889 = vunpack.c.l.b16 %v1533
    %v1890 = vunpack.c.h.b16 %v1533
    %v1891 = vunpack.c.l.b16 %v1534
    %v1892 = vunpack.c.h.b16 %v1534
    %v1893 = vunpack.c.l.b16 %v1535
    %v1894 = vunpack.c.h.b16 %v1535
    %v1895 = vunpack.c.l.b16 %v1536
    %v1896 = vunpack.c.h.b16 %v1536
    %v1897 = vunpack.c.l.b16 %v1537
    %v1898 = vunpack.c.h.b16 %v1537
    %v1899 = vunpack.c.l.b16 %v1538
    %v1900 = vunpack.c.h.b16 %v1538
    %v1901 = vunpack.c.l.b16 %v1539
    %v1902 = vunpack.c.h.b16 %v1539
    %v1903 = vunpack.c.l.b16 %v1540
    %v1904 = vunpack.c.h.b16 %v1540
    %v1905 = vunpack.c.l.b16 %v1541
    %v1906 = vunpack.c.h.b16 %v1541
    %v1907 = vunpack.c.l.b16 %v1542
    %v1908 = vunpack.c.h.b16 %v1542
    %v1909 = vunpack.c.l.b16 %v1543
    %v1910 = vunpack.c.h.b16 %v1543
    %v1911 = vunpack.c.l.b16 %v1544
    %v1912 = vunpack.c.h.b16 %v1544
    %v1913 = vunpack.c.l.b16 %v1545
    %v1914 = vunpack.c.h.b16 %v1545
    %v1915 = vunpack.c.l.b16 %v1546
    %v1916 = vunpack.c.h.b16 %v1546
    %v1917 = vunpack.c.l.b16 %v1547
    %v1918 = vunpack.c.h.b16 %v1547
    %v1919 = vunpack.c.l.b16 %v1548
    %v1920 = vunpack.c.h.b16 %v1548
    %v1921 = vunpack.c.l.b16 %v1549
    %v1922 = vunpack.c.h.b16 %v1549
    %v1923 = vunpack.c.l.b16 %v1550
    %v1924 = vunpack.c.h.b16 %v1550
    %v1925 = vunpack.c.l.b16 %v1551
    %v1926 = vunpack.c.h.b16 %v1551
    %v1927 = vunpack.c.l.b16 %v1552
    %v1928 = vunpack.c.h.b16 %v1552
    %v1929 = vunpack.c.l.b16 %v1553
    %v1930 = vunpack.c.h.b16 %v1553
    %v1931 = vunpack.c.l.b16 %v1554
    %v1932 = vunpack.c.h.b16 %v1554
    %v1933 = vunpack.c.l.b16 %v1555
    %v1934 = vunpack.c.h.b16 %v1555
    %v1935 = vunpack.c.l.b16 %v1556
    %v1936 = vunpack.c.h.b16 %v1556
    %v1937 = vunpack.c.l.b16 %v1557
    %v1938 = vunpack.c.h.b16 %v1557
    %v1939 = vunpack.c.l.b16 %v1558
    %v1940 = vunpack.c.h.b16 %v1558
    %v1941 = vunpack.c.l.b16 %v1559
    %v1942 = vunpack.c.h.b16 %v1559
    %v1943 = vunpack.c.l.b16 %v1560
    %v1944 = vunpack.c.h.b16 %v1560
    %v1945 = vunpack.c.l.b16 %v1561
    %v1946 = vunpack.c.h.b16 %v1561
    %v1947 = vunpack.c.l.b16 %v1562
    %v1948 = vunpack.c.h.b16 %v1562
    %v1949 = vunpack.c.l.b16 %v1563
    %v1950 = vunpack.c.h.b16 %v1563
    %v1951 = vunpack.c.l.b16 %v1564
    %v1952 = vunpack.c.h.b16 %v1564
    %v1953 = vunpack.c.l.b16 %v1565
    %v1954 = vunpack.c.h.b16 %v1565
    %v1955 = vunpack.c.l.b16 %v1566
    %v1956 = vunpack.c.h.b16 %v1566
    %v1957 = vunpack.c.l.b16 %v1567
    %v1958 = vunpack.c.h.b16 %v1567
    %v1959 = vunpack.c.l.b16 %v1568
    %v1960 = vunpack.c.h.b16 %v1568
    %v1961 = vunpack.c.l.b16 %v1569
    %v1962 = vunpack.c.h.b16 %v1569
    %v1963 = vunpack.c.l.b16 %v1570
    %v1964 = vunpack.c.h.b16 %v1570
    %v1965 = vpack.c.b16 %v1713, %v1709
    %v1966 = vpack.c.b16 %v1714, %v1710
    %v1967 = vpack.c.b16 %v1715, %v1711
    %v1968 = vpack.c.b16 %v1716, %v1712
    %v1969 = vpack.c.b16 %v1721, %v1717
    %v1970 = vpack.c.b16 %v1722, %v1718
    %v1971 = vpack.c.b16 %v1723, %v1719
    %v1972 = vpack.c.b16 %v1724, %v1720
    %v1973 = vpack.c.b16 %v1729, %v1725
    %v1974 = vpack.c.b16 %v1730, %v1726
    %v1975 = vpack.c.b16 %v1731, %v1727
    %v1976 = vpack.c.b16 %v1732, %v1728
    %v1977 = vpack.c.b16 %v1737, %v1733
    %v1978 = vpack.c.b16 %v1738, %v1734
    %v1979 = vpack.c.b16 %v1739, %v1735
    %v1980 = vpack.c.b16 %v1740, %v1736
    %v1981 = vpack.c.b16 %v1745, %v1741
    %v1982 = vpack.c.b16 %v1746, %v1742
    %v1983 = vpack.c.b16 %v1747, %v1743
    %v1984 = vpack.c.b16 %v1748, %v1744
    %v1985 = vpack.c.b16 %v1753, %v1749
    %v1986 = vpack.c.b16 %v1754, %v1750
    %v1987 = vpack.c.b16 %v1755, %v1751
    %v1988 = vpack.c.b16 %v1756, %v1752
    %v1989 = vpack.c.b16 %v1761, %v1757
    %v1990 = vpack.c.b16 %v1762, %v1758
    %v1991 = vpack.c.b16 %v1763, %v1759
    %v1992 = vpack.c.b16 %v1764, %v1760
    %v1993 = vpack.c.b16 %v1769, %v1765
    %v1994 = vpack.c.b16 %v1770, %v1766
    %v1995 = vpack.c.b16 %v1771, %v1767
    %v1996 = vpack.c.b16 %v1772, %v1768
    %v1997 = vpack.c.b16 %v1777, %v1773
    %v1998 = vpack.c.b16 %v1778, %v1774
    %v1999 = vpack.c.b16 %v1779, %v1775
    %v2000 = vpack.c.b16 %v1780, %v1776
    %v2001 = vpack.c.b16 %v1785, %v1781
    %v2002 = vpack.c.b16 %v1786, %v1782
    %v2003 = vpack.c.b16 %v1787, %v1783
    %v2004 = vpack.c.b16 %v1788, %v1784
    %v2005 = vpack.c.b16 %v1793, %v1789
    %v2006 = vpack.c.b16 %v1794, %v1790
    %v2007 = vpack.c.b16 %v1795, %v1791
    %v2008 = vpack.c.b16 %v1796, %v1792
    %v2009 = vpack.c.b16 %v1801, %v1797
    %v2010 = vpack.c.b16 %v1802, %v1798
    %v2011 = vpack.c.b16 %v1803, %v1799
    %v2012 = vpack.c.b16 %v1804, %v1800
    %v2013 = vpack.c.b16 %v1809, %v1805
    %v2014 = vpack.c.b16 %v1810, %v1806
    %v2015 = vpack.c.b16 %v1811, %v1807
    %v2016 = vpack.c.b16 %v1812, %v1808
    %v2017 = vpack.c.b16 %v1817, %v1813
    %v2018 = vpack.c.b16 %v1818, %v1814
    %v2019 = vpack.c.b16 %v1819, %v1815
    %v2020 = vpack.c.b16 %v1820, %v1816
    %v2021 = vpack.c.b16 %v1825, %v1821
    %v2022 = vpack.c.b16 %v1826, %v1822
    %v2023 = vpack.c.b16 %v1827, %v1823
    %v2024 = vpack.c.b16 %v1828, %v1824
    %v2025 = vpack.c.b16 %v1833, %v1829
    %v2026 = vpack.c.b16 %v1834, %v1830
    %v2027 = vpack.c.b16 %v1835, %v1831
    %v2028 = vpack.c.b16 %v1836, %v1832
    %v2029 = vpack.c.b16 %v1841, %v1837
    %v2030 = vpack.c.b16 %v1842, %v1838
    %v2031 = vpack.c.b16 %v1843, %v1839
    %v2032 = vpack.c.b16 %v1844, %v1840
    %v2033 = vpack.c.b16 %v1849, %v1845
    %v2034 = vpack.c.b16 %v1850, %v1846
    %v2035 = vpack.c.b16 %v1851, %v1847
    %v2036 = vpack.c.b16 %v1852, %v1848
    %v2037 = vpack.c.b16 %v1857, %v1853
    %v2038 = vpack.c.b16 %v1858, %v1854
    %v2039 = vpack.c.b16 %v1859, %v1855
    %v2040 = vpack.c.b16 %v1860, %v1856
    %v2041 = vpack.c.b16 %v1865, %v1861
    %v2042 = vpack.c.b16 %v1866, %v1862
    %v2043 = vpack.c.b16 %v1867, %v1863
    %v2044 = vpack.c.b16 %v1868, %v1864
    %v2045 = vpack.c.b16 %v1873, %v1869
    %v2046 = vpack.c.b16 %v1874, %v1870
    %v2047 = vpack.c.b16 %v1875, %v1871
    %v2048 = vpack.c.b16 %v1876, %v1872
    %v2049 = vpack.c.b16 %v1881, %v1877
    %v2050 = vpack.c.b16 %v1882, %v1878
    %v2051 = vpack.c.b16 %v1883, %v1879
    %v2052 = vpack.c.b16 %v1884, %v1880
    %v2053 = vpack.c.b16 %v1889, %v1885
    %v2054 = vpack.c.b16 %v1890, %v1886
    %v2055 = vpack.c.b16 %v1891, %v1887
    %v2056 = vpack.c.b16 %v1892, %v1888
    %v2057 = vpack.c.b16 %v1897, %v1893
    %v2058 = vpack.c.b16 %v1898, %v1894
    %v2059 = vpack.c.b16 %v1899, %v1895
    %v2060 = vpack.c.b16 %v1900, %v1896
    %v2061 = vpack.c.b16 %v1905, %v1901
    %v2062 = vpack.c.b16 %v1906, %v1902
    %v2063 = vpack.c.b16 %v1907, %v1903
    %v2064 = vpack.c.b16 %v1908, %v1904
    %v2065 = vpack.c.b16 %v1913, %v1909
    %v2066 = vpack.c.b16 %v1914, %v1910
    %v2067 = vpack.c.b16 %v1915, %v1911
    %v2068 = vpack.c.b16 %v1916, %v1912
    %v2069 = vpack.c.b16 %v1921, %v1917
    %v2070 = vpack.c.b16 %v1922, %v1918
    %v2071 = vpack.c.b16 %v1923, %v1919
    %v2072 = vpack.c.b16 %v1924, %v1920
    %v2073 = vpack.c.b16 %v1929, %v1925
    %v2074 = vpack.c.b16 %v1930, %v1926
    %v2075 = vpack.c.b16 %v1931, %v1927
    %v2076 = vpack.c.b16 %v1932, %v1928
    %v2077 = vpack.c.b16 %v1937, %v1933
    %v2078 = vpack.c.b16 %v1938, %v1934
    %v2079 = vpack.c.b16 %v1939, %v1935
    %v2080 = vpack.c.b16 %v1940, %v1936
    %v2081 = vpack.c.b16 %v1945, %v1941
    %v2082 = vpack.c.b16 %v1946, %v1942
    %v2083 = vpack.c.b16 %v1947, %v1943
    %v2084 = vpack.c.b16 %v1948, %v1944
    %v2085 = vpack.c.b16 %v1953, %v1949
    %v2086 = vpack.c.b16 %v1954, %v1950
    %v2087 = vpack.c.b16 %v1955, %v1951
    %v2088 = vpack.c.b16 %v1956, %v1952
    %v2089 = vpack.c.b16 %v1961, %v1957
    %v2090 = vpack.c.b16 %v1962, %v1958
    %v2091 = vpack.c.b16 %v1963, %v1959
    %v2092 = vpack.c.b16 %v1964, %v1960
    %2221 = vmatpush.bf16.msra.mxu0 %v1993
    %2222 = vmatpush.bf16.msra.mxu0 %v1989
    %2223 = vmatpush.bf16.msra.mxu0 %v1985
    %2224 = vmatpush.bf16.msra.mxu0 %v1981
    %2225 = vmatpush.bf16.msra.mxu0 %v1977
    %2226 = vmatpush.bf16.msra.mxu0 %v1973
    %2227 = vmatpush.bf16.msra.mxu0 %v1969
    %2228 = vmatpush.bf16.msra.mxu0 %v1965
    %2229 = vmatmul.bf16.gmra.mxu0 %v1439
    %v2230 = vpop.f32.mrf.mxu0
    %v2231 = vadd.f32 %v1573, %v2230
    %v2232 = vpop.f32.mrf.mxu0
    %2233 = vdwg.mxu0
    %2234 = vmatpush.bf16.msra.mxu0 %v2025
    %2235 = vmatpush.bf16.msra.mxu0 %v2021
    %2236 = vmatpush.bf16.msra.mxu0 %v2017
    %2237 = vmatpush.bf16.msra.mxu0 %v2013
    %2238 = vmatpush.bf16.msra.mxu0 %v2009
    %2239 = vmatpush.bf16.msra.mxu0 %v2005
    %2240 = vmatpush.bf16.msra.mxu0 %v2001
    %2241 = vmatpush.bf16.msra.mxu0 %v1997
    %2242 = vmatmul.bf16.gmra.mxu0 %v1440
    %v2243 = vpop.f32.mrf.mxu0
    %v2244 = vadd.f32 %v2231, %v2243
    %v2245 = vpop.f32.mrf.mxu0
    %2246 = vdwg.mxu0
    %2247 = vmatpush.bf16.msra.mxu0 %v2057
    %2248 = vmatpush.bf16.msra.mxu0 %v2053
    %2249 = vmatpush.bf16.msra.mxu0 %v2049
    %2250 = vmatpush.bf16.msra.mxu0 %v2045
    %2251 = vmatpush.bf16.msra.mxu0 %v2041
    %2252 = vmatpush.bf16.msra.mxu0 %v2037
    %2253 = vmatpush.bf16.msra.mxu0 %v2033
    %2254 = vmatpush.bf16.msra.mxu0 %v2029
    %2255 = vmatmul.bf16.gmra.mxu0 %v1441
    %v2256 = vpop.f32.mrf.mxu0
    %v2257 = vadd.f32 %v2244, %v2256
    %v2258 = vpop.f32.mrf.mxu0
    %2259 = vdwg.mxu0
    %2260 = vmatpush.bf16.msra.mxu0 %v2089
    %2261 = vmatpush.bf16.msra.mxu0 %v2085
    %2262 = vmatpush.bf16.msra.mxu0 %v2081
    %2263 = vmatpush.bf16.msra.mxu0 %v2077
    %2264 = vmatpush.bf16.msra.mxu0 %v2073
    %2265 = vmatpush.bf16.msra.mxu0 %v2069
    %2266 = vmatpush.bf16.msra.mxu0 %v2065
    %2267 = vmatpush.bf16.msra.mxu0 %v2061
    %2268 = vmatmul.bf16.gmra.mxu0 %v1442
    %v2269 = vpop.f32.mrf.mxu0
    %v2270 = vadd.f32 %v2257, %v2269
    %v2271 = vpop.f32.mrf.mxu0
    %2272 = vdwg.mxu0
    %2273 = vmatpush.bf16.msra.mxu0 %v1994
    %2274 = vmatpush.bf16.msra.mxu0 %v1990
    %2275 = vmatpush.bf16.msra.mxu0 %v1986
    %2276 = vmatpush.bf16.msra.mxu0 %v1982
    %2277 = vmatpush.bf16.msra.mxu0 %v1978
    %2278 = vmatpush.bf16.msra.mxu0 %v1974
    %2279 = vmatpush.bf16.msra.mxu0 %v1970
    %2280 = vmatpush.bf16.msra.mxu0 %v1966
    %2281 = vmatmul.bf16.gmra.mxu0 %v1439
    %v2282 = vpop.f32.mrf.mxu0
    %v2283 = vadd.f32 %v1574, %v2282
    %v2284 = vpop.f32.mrf.mxu0
    %2285 = vdwg.mxu0
    %2286 = vmatpush.bf16.msra.mxu0 %v2026
    %2287 = vmatpush.bf16.msra.mxu0 %v2022
    %2288 = vmatpush.bf16.msra.mxu0 %v2018
    %2289 = vmatpush.bf16.msra.mxu0 %v2014
    %2290 = vmatpush.bf16.msra.mxu0 %v2010
    %2291 = vmatpush.bf16.msra.mxu0 %v2006
    %2292 = vmatpush.bf16.msra.mxu0 %v2002
    %2293 = vmatpush.bf16.msra.mxu0 %v1998
    %2294 = vmatmul.bf16.gmra.mxu0 %v1440
    %v2295 = vpop.f32.mrf.mxu0
    %v2296 = vadd.f32 %v2283, %v2295
    %v2297 = vpop.f32.mrf.mxu0
    %2298 = vdwg.mxu0
    %2299 = vmatpush.bf16.msra.mxu0 %v2058
    %2300 = vmatpush.bf16.msra.mxu0 %v2054
    %2301 = vmatpush.bf16.msra.mxu0 %v2050
    %2302 = vmatpush.bf16.msra.mxu0 %v2046
    %2303 = vmatpush.bf16.msra.mxu0 %v2042
    %2304 = vmatpush.bf16.msra.mxu0 %v2038
    %2305 = vmatpush.bf16.msra.mxu0 %v2034
    %2306 = vmatpush.bf16.msra.mxu0 %v2030
    %2307 = vmatmul.bf16.gmra.mxu0 %v1441
    %v2308 = vpop.f32.mrf.mxu0
    %v2309 = vadd.f32 %v2296, %v2308
    %v2310 = vpop.f32.mrf.mxu0
    %2311 = vdwg.mxu0
    %2312 = vmatpush.bf16.msra.mxu0 %v2090
    %2313 = vmatpush.bf16.msra.mxu0 %v2086
    %2314 = vmatpush.bf16.msra.mxu0 %v2082
    %2315 = vmatpush.bf16.msra.mxu0 %v2078
    %2316 = vmatpush.bf16.msra.mxu0 %v2074
    %2317 = vmatpush.bf16.msra.mxu0 %v2070
    %2318 = vmatpush.bf16.msra.mxu0 %v2066
    %2319 = vmatpush.bf16.msra.mxu0 %v2062
    %2320 = vmatmul.bf16.gmra.mxu0 %v1442
    %v2321 = vpop.f32.mrf.mxu0
    %v2322 = vadd.f32 %v2309, %v2321
    %v2323 = vpop.f32.mrf.mxu0
    %2324 = vdwg.mxu0
    %2325 = vmatpush.bf16.msra.mxu0 %v1995
    %2326 = vmatpush.bf16.msra.mxu0 %v1991
    %2327 = vmatpush.bf16.msra.mxu0 %v1987
    %2328 = vmatpush.bf16.msra.mxu0 %v1983
    %2329 = vmatpush.bf16.msra.mxu0 %v1979
    %2330 = vmatpush.bf16.msra.mxu0 %v1975
    %2331 = vmatpush.bf16.msra.mxu0 %v1971
    %2332 = vmatpush.bf16.msra.mxu0 %v1967
    %2333 = vmatmul.bf16.gmra.mxu0 %v1439
    %v2334 = vpop.f32.mrf.mxu0
    %v2335 = vadd.f32 %v1575, %v2334
    %v2336 = vpop.f32.mrf.mxu0
    %2337 = vdwg.mxu0
    %2338 = vmatpush.bf16.msra.mxu0 %v2027
    %2339 = vmatpush.bf16.msra.mxu0 %v2023
    %2340 = vmatpush.bf16.msra.mxu0 %v2019
    %2341 = vmatpush.bf16.msra.mxu0 %v2015
    %2342 = vmatpush.bf16.msra.mxu0 %v2011
    %2343 = vmatpush.bf16.msra.mxu0 %v2007
    %2344 = vmatpush.bf16.msra.mxu0 %v2003
    %2345 = vmatpush.bf16.msra.mxu0 %v1999
    %2346 = vmatmul.bf16.gmra.mxu0 %v1440
    %v2347 = vpop.f32.mrf.mxu0
    %v2348 = vadd.f32 %v2335, %v2347
    %v2349 = vpop.f32.mrf.mxu0
    %2350 = vdwg.mxu0
    %2351 = vmatpush.bf16.msra.mxu0 %v2059
    %2352 = vmatpush.bf16.msra.mxu0 %v2055
    %2353 = vmatpush.bf16.msra.mxu0 %v2051
    %2354 = vmatpush.bf16.msra.mxu0 %v2047
    %2355 = vmatpush.bf16.msra.mxu0 %v2043
    %2356 = vmatpush.bf16.msra.mxu0 %v2039
    %2357 = vmatpush.bf16.msra.mxu0 %v2035
    %2358 = vmatpush.bf16.msra.mxu0 %v2031
    %2359 = vmatmul.bf16.gmra.mxu0 %v1441
    %v2360 = vpop.f32.mrf.mxu0
    %v2361 = vadd.f32 %v2348, %v2360
    %v2362 = vpop.f32.mrf.mxu0
    %2363 = vdwg.mxu0
    %2364 = vmatpush.bf16.msra.mxu0 %v2091
    %2365 = vmatpush.bf16.msra.mxu0 %v2087
    %2366 = vmatpush.bf16.msra.mxu0 %v2083
    %2367 = vmatpush.bf16.msra.mxu0 %v2079
    %2368 = vmatpush.bf16.msra.mxu0 %v2075
    %2369 = vmatpush.bf16.msra.mxu0 %v2071
    %2370 = vmatpush.bf16.msra.mxu0 %v2067
    %2371 = vmatpush.bf16.msra.mxu0 %v2063
    %2372 = vmatmul.bf16.gmra.mxu0 %v1442
    %v2373 = vpop.f32.mrf.mxu0
    %v2374 = vadd.f32 %v2361, %v2373
    %v2375 = vpop.f32.mrf.mxu0
    %2376 = vdwg.mxu0
    %2377 = vmatpush.bf16.msra.mxu0 %v1996
    %2378 = vmatpush.bf16.msra.mxu0 %v1992
    %2379 = vmatpush.bf16.msra.mxu0 %v1988
    %2380 = vmatpush.bf16.msra.mxu0 %v1984
    %2381 = vmatpush.bf16.msra.mxu0 %v1980
    %2382 = vmatpush.bf16.msra.mxu0 %v1976
    %2383 = vmatpush.bf16.msra.mxu0 %v1972
    %2384 = vmatpush.bf16.msra.mxu0 %v1968
    %2385 = vmatmul.bf16.gmra.mxu0 %v1439
    %v2386 = vpop.f32.mrf.mxu0
    %v2387 = vadd.f32 %v1576, %v2386
    %v2388 = vpop.f32.mrf.mxu0
    %2389 = vdwg.mxu0
    %2390 = vmatpush.bf16.msra.mxu0 %v2028
    %2391 = vmatpush.bf16.msra.mxu0 %v2024
    %2392 = vmatpush.bf16.msra.mxu0 %v2020
    %2393 = vmatpush.bf16.msra.mxu0 %v2016
    %2394 = vmatpush.bf16.msra.mxu0 %v2012
    %2395 = vmatpush.bf16.msra.mxu0 %v2008
    %2396 = vmatpush.bf16.msra.mxu0 %v2004
    %2397 = vmatpush.bf16.msra.mxu0 %v2000
    %2398 = vmatmul.bf16.gmra.mxu0 %v1440
    %v2399 = vpop.f32.mrf.mxu0
    %v2400 = vadd.f32 %v2387, %v2399
    %v2401 = vpop.f32.mrf.mxu0
    %2402 = vdwg.mxu0
    %2403 = vmatpush.bf16.msra.mxu0 %v2060
    %2404 = vmatpush.bf16.msra.mxu0 %v2056
    %2405 = vmatpush.bf16.msra.mxu0 %v2052
    %2406 = vmatpush.bf16.msra.mxu0 %v2048
    %2407 = vmatpush.bf16.msra.mxu0 %v2044
    %2408 = vmatpush.bf16.msra.mxu0 %v2040
    %2409 = vmatpush.bf16.msra.mxu0 %v2036
    %2410 = vmatpush.bf16.msra.mxu0 %v2032
    %2411 = vmatmul.bf16.gmra.mxu0 %v1441
    %v2412 = vpop.f32.mrf.mxu0
    %v2413 = vadd.f32 %v2400, %v2412
    %v2414 = vpop.f32.mrf.mxu0
    %2415 = vdwg.mxu0
    %2416 = vmatpush.bf16.msra.mxu0 %v2092
    %2417 = vmatpush.bf16.msra.mxu0 %v2088
    %2418 = vmatpush.bf16.msra.mxu0 %v2084
    %2419 = vmatpush.bf16.msra.mxu0 %v2080
    %2420 = vmatpush.bf16.msra.mxu0 %v2076
    %2421 = vmatpush.bf16.msra.mxu0 %v2072
    %2422 = vmatpush.bf16.msra.mxu0 %v2068
    %2423 = vmatpush.bf16.msra.mxu0 %v2064
    %2424 = vmatmul.bf16.gmra.mxu0 %v1442
    %v2425 = vpop.f32.mrf.mxu0
    %v2426 = vadd.f32 %v2413, %v2425
    %v2427 = vpop.f32.mrf.mxu0
    %2428 = vdwg.mxu0
    %v2429 = vmax.f32 %v2270, 0.0
    %v2430 = vmax.f32 %v2322, 0.0
    %v2431 = vmax.f32 %v2374, 0.0
    %v2432 = vmax.f32 %v2426, 0.0
    %v2437 = vrot.slane %v2430, 6
    %v2438 = vrot.slane %v2431, 4
    %v2439 = vrot.slane %v2432, 2
    %v2440 = vsel %vm403, %v2429, %v2437
    %v2441 = vsel %vm405, %v2438, %v2439
    %v2442 = vsel %vm407, %v2440, %v2441
    %2444 = vst [vmem:[#allocation2] sm:$0xff] %v2442
    %v2445 = vld [vmem:[#allocation2] sm:$0xff]
    %2447 = vst [vmem:[#allocation1] ss:$4 sm:$0xff] %v2445
    %v2448 = vld.sshfl [vmem:[#allocation1] sm:$0xff pattern:$0x73625140]
    %v2449 = vld.sshfl [vmem:[#allocation1 + $0x8] sm:$0xff pattern:$0x73625140]
    %v2450 = vld.sshfl [vmem:[#allocation1 + $0x10] sm:$0xff pattern:$0x73625140]
    %v2451 = vld.sshfl [vmem:[#allocation1 + $0x18] sm:$0xff pattern:$0x73625140]
    %v2456 = vpack.c.bf16 %v2448, %v2448
    %v2457 = vpack.c.bf16 %v2449, %v2449
    %v2458 = vpack.c.bf16 %v2450, %v2450
    %v2459 = vpack.c.bf16 %v2451, %v2451
    %v2460 = vld [vmem:[#allocation14] sm:$0xf]
    %v2461 = vld [vmem:[#allocation14 + $0x4] sm:$0xf]
    %v2462 = vld [vmem:[#allocation14 + $0x8] sm:$0xf]
    %v2463 = vld [vmem:[#allocation14 + $0xc] sm:$0xf]
    %v2464 = vld [vmem:[#allocation14 + $0x10] sm:$0xf]
    %v2465 = vld [vmem:[#allocation14 + $0x14] sm:$0xf]
    %v2466 = vld [vmem:[#allocation14 + $0x18] sm:$0xf]
    %v2467 = vld [vmem:[#allocation14 + $0x1c] sm:$0xf]
    %v2468 = vld [vmem:[#allocation14 + $0x20] sm:$0xf]
    %v2469 = vld [vmem:[#allocation14 + $0x24] sm:$0xf]
    %v2470 = vld [vmem:[#allocation14 + $0x28] sm:$0xf]
    %v2471 = vld [vmem:[#allocation14 + $0x2c] sm:$0xf]
    %v2472 = vld [vmem:[#allocation14 + $0x30] sm:$0xf]
    %v2473 = vld [vmem:[#allocation14 + $0x34] sm:$0xf]
    %v2474 = vld [vmem:[#allocation14 + $0x38] sm:$0xf]
    %v2475 = vld [vmem:[#allocation14 + $0x3c] sm:$0xf]
    %v2476 = vld [vmem:[#allocation14 + $0x40] sm:$0xf]
    %v2477 = vld [vmem:[#allocation14 + $0x44] sm:$0xf]
    %v2478 = vld [vmem:[#allocation14 + $0x48] sm:$0xf]
    %v2479 = vld [vmem:[#allocation14 + $0x4c] sm:$0xf]
    %v2480 = vld [vmem:[#allocation14 + $0x50] sm:$0xf]
    %v2481 = vld [vmem:[#allocation14 + $0x54] sm:$0xf]
    %v2482 = vld [vmem:[#allocation14 + $0x58] sm:$0xf]
    %v2483 = vld [vmem:[#allocation14 + $0x5c] sm:$0xf]
    %v2484 = vld [vmem:[#allocation14 + $0x60] sm:$0xf]
    %v2485 = vld [vmem:[#allocation14 + $0x64] sm:$0xf]
    %v2486 = vld [vmem:[#allocation14 + $0x68] sm:$0xf]
    %v2487 = vld [vmem:[#allocation14 + $0x6c] sm:$0xf]
    %v2488 = vld [vmem:[#allocation14 + $0x70] sm:$0xf]
    %v2489 = vld [vmem:[#allocation14 + $0x74] sm:$0xf]
    %v2490 = vld [vmem:[#allocation14 + $0x78] sm:$0xf]
    %v2491 = vld [vmem:[#allocation14 + $0x7c] sm:$0xf]
    %v2492 = vld [vmem:[#allocation14 + $0x80] sm:$0xf]
    %v2493 = vld [vmem:[#allocation14 + $0x84] sm:$0xf]
    %v2494 = vld [vmem:[#allocation14 + $0x88] sm:$0xf]
    %v2495 = vld [vmem:[#allocation14 + $0x8c] sm:$0xf]
    %v2496 = vld [vmem:[#allocation14 + $0x90] sm:$0xf]
    %v2497 = vld [vmem:[#allocation14 + $0x94] sm:$0xf]
    %v2498 = vld [vmem:[#allocation14 + $0x98] sm:$0xf]
    %v2499 = vld [vmem:[#allocation14 + $0x9c] sm:$0xf]
    %v2500 = vld [vmem:[#allocation14 + $0xa0] sm:$0xf]
    %v2501 = vld [vmem:[#allocation14 + $0xa4] sm:$0xf]
    %v2502 = vld [vmem:[#allocation14 + $0xa8] sm:$0xf]
    %v2503 = vld [vmem:[#allocation14 + $0xac] sm:$0xf]
    %v2504 = vld [vmem:[#allocation14 + $0xb0] sm:$0xf]
    %v2505 = vld [vmem:[#allocation14 + $0xb4] sm:$0xf]
    %v2506 = vld [vmem:[#allocation14 + $0xb8] sm:$0xf]
    %v2507 = vld [vmem:[#allocation14 + $0xbc] sm:$0xf]
    %v2508 = vld [vmem:[#allocation14 + $0xc0] sm:$0xf]
    %v2509 = vld [vmem:[#allocation14 + $0xc4] sm:$0xf]
    %v2510 = vld [vmem:[#allocation14 + $0xc8] sm:$0xf]
    %v2511 = vld [vmem:[#allocation14 + $0xcc] sm:$0xf]
    %v2512 = vld [vmem:[#allocation14 + $0xd0] sm:$0xf]
    %v2513 = vld [vmem:[#allocation14 + $0xd4] sm:$0xf]
    %v2514 = vld [vmem:[#allocation14 + $0xd8] sm:$0xf]
    %v2515 = vld [vmem:[#allocation14 + $0xdc] sm:$0xf]
    %v2516 = vld [vmem:[#allocation14 + $0xe0] sm:$0xf]
    %v2517 = vld [vmem:[#allocation14 + $0xe4] sm:$0xf]
    %v2518 = vld [vmem:[#allocation14 + $0xe8] sm:$0xf]
    %v2519 = vld [vmem:[#allocation14 + $0xec] sm:$0xf]
    %v2520 = vld [vmem:[#allocation14 + $0xf0] sm:$0xf]
    %v2521 = vld [vmem:[#allocation14 + $0xf4] sm:$0xf]
    %v2522 = vld [vmem:[#allocation14 + $0xf8] sm:$0xf]
    %v2523 = vld [vmem:[#allocation14 + $0xfc] sm:$0xf]
    %v2524 = vld [vmem:[%s8] sm:$0x1]
    %v2526 = vperm.slane %v2524, 0
    %v2592 = vunpack.c.l.b16 %v2460
    %v2593 = vunpack.c.l.b16 %v2461
    %v2594 = vunpack.c.l.b16 %v2462
    %v2595 = vunpack.c.l.b16 %v2463
    %v2596 = vunpack.c.l.b16 %v2464
    %v2597 = vunpack.c.l.b16 %v2465
    %v2598 = vunpack.c.l.b16 %v2466
    %v2599 = vunpack.c.l.b16 %v2467
    %v2600 = vunpack.c.l.b16 %v2468
    %v2601 = vunpack.c.l.b16 %v2469
    %v2602 = vunpack.c.l.b16 %v2470
    %v2603 = vunpack.c.l.b16 %v2471
    %v2604 = vunpack.c.l.b16 %v2472
    %v2605 = vunpack.c.l.b16 %v2473
    %v2606 = vunpack.c.l.b16 %v2474
    %v2607 = vunpack.c.l.b16 %v2475
    %v2608 = vunpack.c.l.b16 %v2476
    %v2609 = vunpack.c.l.b16 %v2477
    %v2610 = vunpack.c.l.b16 %v2478
    %v2611 = vunpack.c.l.b16 %v2479
    %v2612 = vunpack.c.l.b16 %v2480
    %v2613 = vunpack.c.l.b16 %v2481
    %v2614 = vunpack.c.l.b16 %v2482
    %v2615 = vunpack.c.l.b16 %v2483
    %v2616 = vunpack.c.l.b16 %v2484
    %v2617 = vunpack.c.l.b16 %v2485
    %v2618 = vunpack.c.l.b16 %v2486
    %v2619 = vunpack.c.l.b16 %v2487
    %v2620 = vunpack.c.l.b16 %v2488
    %v2621 = vunpack.c.l.b16 %v2489
    %v2622 = vunpack.c.l.b16 %v2490
    %v2623 = vunpack.c.l.b16 %v2491
    %v2624 = vunpack.c.l.b16 %v2492
    %v2625 = vunpack.c.l.b16 %v2493
    %v2626 = vunpack.c.l.b16 %v2494
    %v2627 = vunpack.c.l.b16 %v2495
    %v2628 = vunpack.c.l.b16 %v2496
    %v2629 = vunpack.c.l.b16 %v2497
    %v2630 = vunpack.c.l.b16 %v2498
    %v2631 = vunpack.c.l.b16 %v2499
    %v2632 = vunpack.c.l.b16 %v2500
    %v2633 = vunpack.c.l.b16 %v2501
    %v2634 = vunpack.c.l.b16 %v2502
    %v2635 = vunpack.c.l.b16 %v2503
    %v2636 = vunpack.c.l.b16 %v2504
    %v2637 = vunpack.c.l.b16 %v2505
    %v2638 = vunpack.c.l.b16 %v2506
    %v2639 = vunpack.c.l.b16 %v2507
    %v2640 = vunpack.c.l.b16 %v2508
    %v2641 = vunpack.c.l.b16 %v2509
    %v2642 = vunpack.c.l.b16 %v2510
    %v2643 = vunpack.c.l.b16 %v2511
    %v2644 = vunpack.c.l.b16 %v2512
    %v2645 = vunpack.c.l.b16 %v2513
    %v2646 = vunpack.c.l.b16 %v2514
    %v2647 = vunpack.c.l.b16 %v2515
    %v2648 = vunpack.c.l.b16 %v2516
    %v2649 = vunpack.c.l.b16 %v2517
    %v2650 = vunpack.c.l.b16 %v2518
    %v2651 = vunpack.c.l.b16 %v2519
    %v2652 = vunpack.c.l.b16 %v2520
    %v2653 = vunpack.c.l.b16 %v2521
    %v2654 = vunpack.c.l.b16 %v2522
    %v2655 = vunpack.c.l.b16 %v2523
    %v2656 = vpack.c.b16 %v2593, %v2592
    %v2657 = vpack.c.b16 %v2595, %v2594
    %v2658 = vpack.c.b16 %v2597, %v2596
    %v2659 = vpack.c.b16 %v2599, %v2598
    %v2660 = vpack.c.b16 %v2601, %v2600
    %v2661 = vpack.c.b16 %v2603, %v2602
    %v2662 = vpack.c.b16 %v2605, %v2604
    %v2663 = vpack.c.b16 %v2607, %v2606
    %v2664 = vpack.c.b16 %v2609, %v2608
    %v2665 = vpack.c.b16 %v2611, %v2610
    %v2666 = vpack.c.b16 %v2613, %v2612
    %v2667 = vpack.c.b16 %v2615, %v2614
    %v2668 = vpack.c.b16 %v2617, %v2616
    %v2669 = vpack.c.b16 %v2619, %v2618
    %v2670 = vpack.c.b16 %v2621, %v2620
    %v2671 = vpack.c.b16 %v2623, %v2622
    %v2672 = vpack.c.b16 %v2625, %v2624
    %v2673 = vpack.c.b16 %v2627, %v2626
    %v2674 = vpack.c.b16 %v2629, %v2628
    %v2675 = vpack.c.b16 %v2631, %v2630
    %v2676 = vpack.c.b16 %v2633, %v2632
    %v2677 = vpack.c.b16 %v2635, %v2634
    %v2678 = vpack.c.b16 %v2637, %v2636
    %v2679 = vpack.c.b16 %v2639, %v2638
    %v2680 = vpack.c.b16 %v2641, %v2640
    %v2681 = vpack.c.b16 %v2643, %v2642
    %v2682 = vpack.c.b16 %v2645, %v2644
    %v2683 = vpack.c.b16 %v2647, %v2646
    %v2684 = vpack.c.b16 %v2649, %v2648
    %v2685 = vpack.c.b16 %v2651, %v2650
    %v2686 = vpack.c.b16 %v2653, %v2652
    %v2687 = vpack.c.b16 %v2655, %v2654
    %2720 = vmatpush.bf16.msra.mxu0 %v2663
    %2721 = vmatpush.bf16.msra.mxu0 %v2662
    %2722 = vmatpush.bf16.msra.mxu0 %v2661
    %2723 = vmatpush.bf16.msra.mxu0 %v2660
    %2724 = vmatpush.bf16.msra.mxu0 %v2659
    %2725 = vmatpush.bf16.msra.mxu0 %v2658
    %2726 = vmatpush.bf16.msra.mxu0 %v2657
    %2727 = vmatpush.bf16.msra.mxu0 %v2656
    %2728 = vmatmul.bf16.gmra.mxu0 %v2456
    %v2729 = vpop.f32.mrf.mxu0
    %v2730 = vadd.f32 %v2526, %v2729
    %v2731 = vpop.f32.mrf.mxu0
    %2732 = vdwg.mxu0
    %2733 = vmatpush.bf16.msra.mxu0 %v2671
    %2734 = vmatpush.bf16.msra.mxu0 %v2670
    %2735 = vmatpush.bf16.msra.mxu0 %v2669
    %2736 = vmatpush.bf16.msra.mxu0 %v2668
    %2737 = vmatpush.bf16.msra.mxu0 %v2667
    %2738 = vmatpush.bf16.msra.mxu0 %v2666
    %2739 = vmatpush.bf16.msra.mxu0 %v2665
    %2740 = vmatpush.bf16.msra.mxu0 %v2664
    %2741 = vmatmul.bf16.gmra.mxu0 %v2457
    %v2742 = vpop.f32.mrf.mxu0
    %v2743 = vadd.f32 %v2730, %v2742
    %v2744 = vpop.f32.mrf.mxu0
    %2745 = vdwg.mxu0
    %2746 = vmatpush.bf16.msra.mxu0 %v2679
    %2747 = vmatpush.bf16.msra.mxu0 %v2678
    %2748 = vmatpush.bf16.msra.mxu0 %v2677
    %2749 = vmatpush.bf16.msra.mxu0 %v2676
    %2750 = vmatpush.bf16.msra.mxu0 %v2675
    %2751 = vmatpush.bf16.msra.mxu0 %v2674
    %2752 = vmatpush.bf16.msra.mxu0 %v2673
    %2753 = vmatpush.bf16.msra.mxu0 %v2672
    %2754 = vmatmul.bf16.gmra.mxu0 %v2458
    %v2755 = vpop.f32.mrf.mxu0
    %v2756 = vadd.f32 %v2743, %v2755
    %v2757 = vpop.f32.mrf.mxu0
    %2758 = vdwg.mxu0
    %2759 = vmatpush.bf16.msra.mxu0 %v2687
    %2760 = vmatpush.bf16.msra.mxu0 %v2686
    %2761 = vmatpush.bf16.msra.mxu0 %v2685
    %2762 = vmatpush.bf16.msra.mxu0 %v2684
    %2763 = vmatpush.bf16.msra.mxu0 %v2683
    %2764 = vmatpush.bf16.msra.mxu0 %v2682
    %2765 = vmatpush.bf16.msra.mxu0 %v2681
    %2766 = vmatpush.bf16.msra.mxu0 %v2680
    %2767 = vmatmul.bf16.gmra.mxu0 %v2459
    %v2768 = vpop.f32.mrf.mxu0
    %v2769 = vadd.f32 %v2756, %v2768
    %v2770 = vpop.f32.mrf.mxu0
    %2771 = vdwg.mxu0
    %2772 = vst [vmem:[#allocation15] sm:$0x3] %v2769
    // Predicated region
    $region66: #{tpu_custom_call.1} parent=1 // pred_check
      _
    $region67: #{tpu_custom_call.1} parent=1 // pred_check_branch
      %2774 = sbr.rel (0) target = $region69
    $region68: #{tpu_custom_call.1} parent=1 // pred_region
      %2776 = vsyncadd [#allocation5], 0
      %s2778 = sshll.u32 [#allocation15], 4
      %s2779 = int_to_ptr.vmem [resolvable:$true] %s2778
      %s2780 = sshll.u32 %s9, 4
      %s2781 = int_to_ptr.hbm [resolvable:$true] %s2780
      %2783 = dma.vmem_to_hbm [thread:$0]  %s2779, 32, %s2781, [#allocation5]
    $region69: #{tpu_custom_call.1} parent=1 // pred_fallthru
      _
    // Predicated region
    $region70: #{tpu_custom_call.1} parent=1 // pred_check
      _
    $region71: #{tpu_custom_call.1} parent=1 // pred_check_branch
      %2785 = sbr.rel (0) target = $region73
    $region72: #{tpu_custom_call.1} parent=1 // pred_region
      %2787 = dma.done [#allocation5], 32
    $region73: #{tpu_custom_call.1} parent=1 // pred_fallthru
      _
    %2788 = vsyncpa [#allocation4], 1
    %2789 = vsyncpa [#allocation7], 1
    %2790 = vsyncpa [#allocation10], 1
    %2791 = vsyncpa [#allocation13], 1
    %2792 = vsyncpa [#allocation5], 1

</llo_original>
